<compile_context>
chip_gen: v7x
topology: tpu7x:2x2x1
jax: 0.10.0
libtpu: 0.0.40
codegen_flags: <defaults>
</compile_context>

<pallas_src>
import functools
import numpy as np
import jax
import jax.numpy as jnp
from jax.experimental import pallas as pl
from jax.experimental.pallas import tpu as pltpu


# ----------------------------------------------------------------------------
# Pallas kernel: one post-LN decoder block, one (batch, query-tile) grid step.
# ----------------------------------------------------------------------------
def decoder_block_kernel(dec_ref, enc_ref, dpad_ref, epad_ref,
                         ln1_g, ln1_b, ln2_g, ln2_b, ln3_g, ln3_b,
                         s_wq, s_bq, s_wk, s_bk, s_wv, s_bv, s_wo, s_bo,
                         c_wq, c_bq, c_wk, c_bk, c_wv, c_bv, c_wo, c_bo,
                         f_w1, f_b1, f_w2, f_b2,
                         out_ref, *, num_heads, q_tile):
    Ld = dec_ref.shape[1]
    H = dec_ref.shape[2]
    dh = H // num_heads

    qi = pl.program_id(1)
    q_start = pl.multiple_of(qi * q_tile, q_tile)

    dec_bf = dec_ref[0]                                   # (Ld, H) bf16: self-attn K/V
    enc_bf = enc_ref[0]                                   # (Le, H) bf16: cross-attn K/V
    dq_bf = dec_ref[0, pl.ds(q_start, q_tile), :]         # (Tq, H) bf16: query tile
    dq_f32 = dq_bf.astype(jnp.float32)

    # --- additive masks built in-kernel (f32); no dense mask DMA -------------
    rows = q_start + jax.lax.broadcasted_iota(jnp.int32, (q_tile, Ld), 0)
    cols = jax.lax.broadcasted_iota(jnp.int32, (q_tile, Ld), 1)
    key_ok = dpad_ref[0] > 0.5                            # (1, Ld)
    dmask = jnp.where(jnp.logical_and(rows >= cols, key_ok), 0.0, -10000.0)
    emask = jnp.where(epad_ref[0] > 0.5, 0.0, -10000.0)   # (1, Le)

    def layer_norm(x, g, b):                              # f32 VPU math, eps=1e-5
        mu = jnp.mean(x, axis=-1, keepdims=True)
        xc = x - mu
        var = jnp.mean(xc * xc, axis=-1, keepdims=True)
        return xc * jax.lax.rsqrt(var + 1e-5) * g[...] + b[...]

    def mha(q_in_bf, kv_bf, mask, wq, bq, wk, bk, wv, bv, wo, bo):
        # bf16 MXU matmuls, f32 accumulation. 1/sqrt(sqrt(dh)) already folded
        # into wq/bq and wk/bk at parameter-prep time.
        q = (jnp.dot(q_in_bf, wq[...], preferred_element_type=jnp.float32)
             + bq[...]).astype(jnp.bfloat16)
        k = (jnp.dot(kv_bf, wk[...], preferred_element_type=jnp.float32)
             + bk[...]).astype(jnp.bfloat16)
        v = (jnp.dot(kv_bf, wv[...], preferred_element_type=jnp.float32)
             + bv[...]).astype(jnp.bfloat16)
        wo_full = wo[...]
        acc = jnp.zeros((q_in_bf.shape[0], H), jnp.float32)
        for h in range(num_heads):                        # static unroll over heads
            sl = slice(h * dh, (h + 1) * dh)
            scores = jax.lax.dot_general(                 # (Tq, Lk) = q_h . k_h^T
                q[:, sl], k[:, sl], (((1,), (1,)), ((), ())),
                preferred_element_type=jnp.float32) + mask
            scores = scores - jnp.max(scores, axis=-1, keepdims=True)
            p = jnp.exp(scores)                           # f32 softmax
            p = p * pl.reciprocal(jnp.sum(p, axis=-1, keepdims=True), approx=True)
            ctx = jnp.dot(p.astype(jnp.bfloat16), v[:, sl],
                          preferred_element_type=jnp.float32)
            # Fold per-head output-projection slice (no concat / relayout).
            acc = acc + jnp.dot(ctx.astype(jnp.bfloat16), wo_full[sl, :],
                                preferred_element_type=jnp.float32)
        return acc + bo[...]

    # ---- Post-LN ordering (forward_postln) ----------------------------------
    sa = mha(dq_bf, dec_bf, dmask,
             s_wq, s_bq, s_wk, s_bk, s_wv, s_bv, s_wo, s_bo) + dq_f32
    sa = layer_norm(sa, ln1_g, ln1_b)
    ca = mha(sa.astype(jnp.bfloat16), enc_bf, emask,
             c_wq, c_bq, c_wk, c_bk, c_wv, c_bv, c_wo, c_bo) + sa
    ca = layer_norm(ca, ln2_g, ln2_b)
    h1 = jnp.maximum(
        jnp.dot(ca.astype(jnp.bfloat16), f_w1[...],
                preferred_element_type=jnp.float32) + f_b1[...], 0.0)
    ff = jnp.dot(h1.astype(jnp.bfloat16), f_w2[...],
                 preferred_element_type=jnp.float32) + f_b2[...] + ca
    out_ref[0] = layer_norm(ff, ln3_g, ln3_b).astype(out_ref.dtype)


# ----------------------------------------------------------------------------
# Wrapper: one decoder block over (batch, query-tile) grid via pallas_call.
# ----------------------------------------------------------------------------
def _pick_q_tile(seq_len):
    for t in (512, 256, 128):
        if seq_len % t == 0:
            return t
    return seq_len


def decoder_block_pallas(dec_states, enc_states, dec_pad, enc_pad,
                         layer_params, num_heads):
    B, Ld, H = dec_states.shape
    Le = enc_states.shape[1]
    q_tile = _pick_q_tile(Ld)
    n_q = Ld // q_tile

    data_inputs = (dec_states, enc_states, dec_pad, enc_pad)
    data_specs = [
        pl.BlockSpec((1, Ld, H), lambda b, q: (b, 0, 0)),  # resident dec (Q + KV src)
        pl.BlockSpec((1, Le, H), lambda b, q: (b, 0, 0)),  # encoder states
        pl.BlockSpec((1, 1, Ld), lambda b, q: (b, 0, 0)),  # dec key-padding (thin)
        pl.BlockSpec((1, 1, Le), lambda b, q: (b, 0, 0)),  # enc key-padding (thin)
    ]
    # All params are 2-D with constant block index -> DMA'd once, stay resident.
    weight_specs = [pl.BlockSpec(w.shape, lambda b, q: (0, 0)) for w in layer_params]

    kernel = functools.partial(decoder_block_kernel,
                               num_heads=num_heads, q_tile=q_tile)
    return pl.pallas_call(
        kernel,
        out_shape=jax.ShapeDtypeStruct((B, Ld, H), jnp.bfloat16),
        grid=(B, n_q),
        in_specs=data_specs + weight_specs,
        out_specs=pl.BlockSpec((1, q_tile, H), lambda b, q: (b, q, 0)),
        compiler_params=pltpu.CompilerParams(
            dimension_semantics=("parallel", "parallel")),
    )(*data_inputs, *layer_params)


# ----------------------------------------------------------------------------
# Parameters: PyTorch-style f32 init + kernel-ready (bf16, scale-folded) prep.
# ----------------------------------------------------------------------------
def init_layer_params(key, hidden, inner):
    """Deterministic nn.Linear-style init; weights pre-transposed to (in, out)."""
    def lin(k, fan_in, fan_out):
        bound = 1.0 / np.sqrt(fan_in)
        kw, kb = jax.random.split(k)
        w = jax.random.uniform(kw, (fan_in, fan_out), jnp.float32, -bound, bound)
        b = jax.random.uniform(kb, (1, fan_out), jnp.float32, -bound, bound)
        return w, b

    keys = jax.random.split(key, 10)
    s_wq, s_bq = lin(keys[0], hidden, hidden)
    s_wk, s_bk = lin(keys[1], hidden, hidden)
    s_wv, s_bv = lin(keys[2], hidden, hidden)
    s_wo, s_bo = lin(keys[3], hidden, hidden)
    c_wq, c_bq = lin(keys[4], hidden, hidden)
    c_wk, c_bk = lin(keys[5], hidden, hidden)
    c_wv, c_bv = lin(keys[6], hidden, hidden)
    c_wo, c_bo = lin(keys[7], hidden, hidden)
    f_w1, f_b1 = lin(keys[8], hidden, inner)
    f_w2, f_b2 = lin(keys[9], inner, hidden)
    ln_g = jnp.ones((1, hidden), jnp.float32)
    ln_b = jnp.zeros((1, hidden), jnp.float32)
    return (ln_g, ln_b, ln_g, ln_b, ln_g, ln_b,
            s_wq, s_bq, s_wk, s_bk, s_wv, s_bv, s_wo, s_bo,
            c_wq, c_bq, c_wk, c_bk, c_wv, c_bv, c_wo, c_bo,
            f_w1, f_b1, f_w2, f_b2)


def prepare_layer_params(p, num_heads):
    """Cast W matrices to bf16 and fold 1/sqrt(sqrt(dh)) into q/k weights+biases.
    LayerNorm params and biases stay f32 (elementwise math stays on the f32 VPU)."""
    (ln1_g, ln1_b, ln2_g, ln2_b, ln3_g, ln3_b,
     s_wq, s_bq, s_wk, s_bk, s_wv, s_bv, s_wo, s_bo,
     c_wq, c_bq, c_wk, c_bk, c_wv, c_bv, c_wo, c_bo,
     f_w1, f_b1, f_w2, f_b2) = p
    H = s_wq.shape[0]
    dh = H // num_heads
    sc = np.float32(1.0 / np.sqrt(np.sqrt(dh)))
    bf = lambda w: w.astype(jnp.bfloat16)
    return (ln1_g, ln1_b, ln2_g, ln2_b, ln3_g, ln3_b,
            bf(s_wq * sc), s_bq * sc, bf(s_wk * sc), s_bk * sc,
            bf(s_wv), s_bv, bf(s_wo), s_bo,
            bf(c_wq * sc), c_bq * sc, bf(c_wk * sc), c_bk * sc,
            bf(c_wv), c_bv, bf(c_wo), c_bo,
            bf(f_w1), f_b1, bf(f_w2), f_b2)


def transformer_decoder_forward(params_list, dec_states, dec_mask,
                                enc_states, enc_mask, num_heads):
    # Only thin key-padding vectors cross the pallas_call boundary; the dense
    # causal+padding additive masks are built in-kernel from iota.
    dec_pad = dec_mask.astype(jnp.float32)[:, None, :]    # (B, 1, Ld)
    enc_pad = enc_mask.astype(jnp.float32)[:, None, :]    # (B, 1, Le)
    kernel_params = [prepare_layer_params(p, num_heads) for p in params_list]
    x = dec_states.astype(jnp.bfloat16)
    enc_bf = enc_states.astype(jnp.bfloat16)
    # decoder_mems_list is None => memory_states == dec_states each layer, so the
    # kernel reuses the single decoder input for both Q and self-attn K/V.
    for p in kernel_params:
        x = decoder_block_pallas(x, enc_bf, dec_pad, enc_pad, p, num_heads)
    return x                                              # return_mems=False path


# ----------------------------------------------------------------------------
# Pure-JAX f32 reference (mirrors the PyTorch module numerics) for validation.
# ----------------------------------------------------------------------------
def form_attention_mask(input_mask, diagonal=None):
    if input_mask is None:
        return None
    B, L = input_mask.shape
    m = input_mask.astype(bool)[:, None, :]                       # (B, 1, L)
    if diagonal is not None:
        causal = jnp.tril(jnp.ones((1, L, L), dtype=bool), diagonal)
        m = m & causal                                            # (B, L, L)
    return -10000.0 * (1.0 - m.astype(jnp.float32))


def _ref_block(dq, mem, enc, dmask, emask, p, num_heads):
    (ln1_g, ln1_b, ln2_g, ln2_b, ln3_g, ln3_b,
     s_wq, s_bq, s_wk, s_bk, s_wv, s_bv, s_wo, s_bo,
     c_wq, c_bq, c_wk, c_bk, c_wv, c_bv, c_wo, c_bo,
     f_w1, f_b1, f_w2, f_b2) = p
    H = dq.shape[-1]
    dh = H // num_heads
    sc = 1.0 / np.sqrt(np.sqrt(dh))

    def ln(x, g, b):
        mu = x.mean(-1, keepdims=True)
        var = ((x - mu) ** 2).mean(-1, keepdims=True)
        return (x - mu) / jnp.sqrt(var + 1e-5) * g + b

    def mha(qi, kvi, mask, wq, bq, wk, bk, wv, bv, wo, bo):
        B, Lq, _ = qi.shape
        Lk = kvi.shape[1]
        q = (qi @ wq + bq).reshape(B, Lq, num_heads, dh).transpose(0, 2, 1, 3) * sc
        k = (kvi @ wk + bk).reshape(B, Lk, num_heads, dh).transpose(0, 2, 1, 3) * sc
        v = (kvi @ wv + bv).reshape(B, Lk, num_heads, dh).transpose(0, 2, 1, 3)
        s = jnp.einsum('bhqd,bhkd->bhqk', q, k) + mask[:, None]
        pr = jax.nn.softmax(s, axis=-1)
        ctx = jnp.einsum('bhqk,bhkd->bhqd', pr, v).transpose(0, 2, 1, 3).reshape(B, Lq, H)
        return ctx @ wo + bo

    sa = mha(dq, mem, dmask, s_wq, s_bq, s_wk, s_bk, s_wv, s_bv, s_wo, s_bo) + dq
    sa = ln(sa, ln1_g, ln1_b)
    ca = mha(sa, enc, emask, c_wq, c_bq, c_wk, c_bk, c_wv, c_bv, c_wo, c_bo) + sa
    ca = ln(ca, ln2_g, ln2_b)
    ff = jnp.maximum(ca @ f_w1 + f_b1, 0.0) @ f_w2 + f_b2 + ca
    return ln(ff, ln3_g, ln3_b)


def _ref_decoder(params_list, dec_states, dec_mask, enc_states, enc_mask, num_heads):
    dmask = form_attention_mask(dec_mask, diagonal=0)
    emask = form_attention_mask(enc_mask)
    mem = dec_states
    for p in params_list:
        dec_states = _ref_block(dec_states, mem, enc_states, dmask, emask, p, num_heads)
        mem = dec_states
    return mem


# ----------------------------------------------------------------------------
if __name__ == "__main__":
    B, L_DEC, L_ENC = 2, 8, 12
    HIDDEN, INNER, N_HEADS, N_LAYERS = 32, 64, 2, 2

    key = jax.random.PRNGKey(0)
    k_dec, k_enc, k_par = jax.random.split(key, 3)

    decoder_states = jax.random.normal(k_dec, (B, L_DEC, HIDDEN), jnp.float32)
    encoder_states = jax.random.normal(k_enc, (B, L_ENC, HIDDEN), jnp.float32)
    decoder_mask = jnp.ones((B, L_DEC), jnp.int32).at[1, 6:].set(0)
    encoder_mask = jnp.ones((B, L_ENC), jnp.int32).at[0, 10:].set(0)

    params_list = [init_layer_params(jax.random.fold_in(k_par, i), HIDDEN, INNER)
                   for i in range(N_LAYERS)]

    out = transformer_decoder_forward(params_list, decoder_states, decoder_mask,
                                      encoder_states, encoder_mask, N_HEADS)
    out = jax.block_until_ready(out).astype(jnp.float32)

    ref = _ref_decoder(params_list, decoder_states, decoder_mask,
                       encoder_states, encoder_mask, N_HEADS)
    # Tolerance loosened relative to the f32 version: kernel feeds the MXU bf16
    # (f32 accumulation) and uses the approximate EUP reciprocal for softmax.
    np.testing.assert_allclose(np.asarray(out), np.asarray(ref), rtol=1e-1, atol=1e-1)

    print("KERNEL_OK")
</pallas_src>

<mosaic_0001>
module attributes {stable_mosaic.version = 11 : i64} {
  func.func @decoder_block_kernel(%arg0: i32, %arg1: i32, %arg2: memref<1x8x32xbf16, #tpu.memory_space<vmem>>, %arg3: memref<1x12x32xbf16, #tpu.memory_space<vmem>>, %arg4: memref<1x1x8xf32, #tpu.memory_space<vmem>>, %arg5: memref<1x1x12xf32, #tpu.memory_space<vmem>>, %arg6: memref<1x32xf32, #tpu.memory_space<vmem>>, %arg7: memref<1x32xf32, #tpu.memory_space<vmem>>, %arg8: memref<1x32xf32, #tpu.memory_space<vmem>>, %arg9: memref<1x32xf32, #tpu.memory_space<vmem>>, %arg10: memref<1x32xf32, #tpu.memory_space<vmem>>, %arg11: memref<1x32xf32, #tpu.memory_space<vmem>>, %arg12: memref<32x32xbf16, #tpu.memory_space<vmem>>, %arg13: memref<1x32xf32, #tpu.memory_space<vmem>>, %arg14: memref<32x32xbf16, #tpu.memory_space<vmem>>, %arg15: memref<1x32xf32, #tpu.memory_space<vmem>>, %arg16: memref<32x32xbf16, #tpu.memory_space<vmem>>, %arg17: memref<1x32xf32, #tpu.memory_space<vmem>>, %arg18: memref<32x32xbf16, #tpu.memory_space<vmem>>, %arg19: memref<1x32xf32, #tpu.memory_space<vmem>>, %arg20: memref<32x32xbf16, #tpu.memory_space<vmem>>, %arg21: memref<1x32xf32, #tpu.memory_space<vmem>>, %arg22: memref<32x32xbf16, #tpu.memory_space<vmem>>, %arg23: memref<1x32xf32, #tpu.memory_space<vmem>>, %arg24: memref<32x32xbf16, #tpu.memory_space<vmem>>, %arg25: memref<1x32xf32, #tpu.memory_space<vmem>>, %arg26: memref<32x32xbf16, #tpu.memory_space<vmem>>, %arg27: memref<1x32xf32, #tpu.memory_space<vmem>>, %arg28: memref<32x64xbf16, #tpu.memory_space<vmem>>, %arg29: memref<1x64xf32, #tpu.memory_space<vmem>>, %arg30: memref<64x32xbf16, #tpu.memory_space<vmem>>, %arg31: memref<1x32xf32, #tpu.memory_space<vmem>>, %arg32: memref<1x8x32xbf16, #tpu.memory_space<vmem>>) attributes {dimension_semantics = [#tpu.dimension_semantics<parallel>, #tpu.dimension_semantics<parallel>], iteration_bounds = array<i64: 2, 1>, scalar_prefetch = 0 : i64, scratch_operands = 0 : i64, tpu.core_type = #tpu.core_type<tc>, window_params = [{transform_indices = @transform_0, window_bounds = array<i64: 1, 8, 32>}, {transform_indices = @transform_1, window_bounds = array<i64: 1, 12, 32>}, {transform_indices = @transform_2, window_bounds = array<i64: 1, 1, 8>}, {transform_indices = @transform_3, window_bounds = array<i64: 1, 1, 12>}, {pipeline_mode = #tpu.pipeline_mode<synchronous>, transform_indices = @transform_4, window_bounds = array<i64: 1, 32>}, {pipeline_mode = #tpu.pipeline_mode<synchronous>, transform_indices = @transform_5, window_bounds = array<i64: 1, 32>}, {pipeline_mode = #tpu.pipeline_mode<synchronous>, transform_indices = @transform_6, window_bounds = array<i64: 1, 32>}, {pipeline_mode = #tpu.pipeline_mode<synchronous>, transform_indices = @transform_7, window_bounds = array<i64: 1, 32>}, {pipeline_mode = #tpu.pipeline_mode<synchronous>, transform_indices = @transform_8, window_bounds = array<i64: 1, 32>}, {pipeline_mode = #tpu.pipeline_mode<synchronous>, transform_indices = @transform_9, window_bounds = array<i64: 1, 32>}, {pipeline_mode = #tpu.pipeline_mode<synchronous>, transform_indices = @transform_10, window_bounds = array<i64: 32, 32>}, {pipeline_mode = #tpu.pipeline_mode<synchronous>, transform_indices = @transform_11, window_bounds = array<i64: 1, 32>}, {pipeline_mode = #tpu.pipeline_mode<synchronous>, transform_indices = @transform_12, window_bounds = array<i64: 32, 32>}, {pipeline_mode = #tpu.pipeline_mode<synchronous>, transform_indices = @transform_13, window_bounds = array<i64: 1, 32>}, {pipeline_mode = #tpu.pipeline_mode<synchronous>, transform_indices = @transform_14, window_bounds = array<i64: 32, 32>}, {pipeline_mode = #tpu.pipeline_mode<synchronous>, transform_indices = @transform_15, window_bounds = array<i64: 1, 32>}, {pipeline_mode = #tpu.pipeline_mode<synchronous>, transform_indices = @transform_16, window_bounds = array<i64: 32, 32>}, {pipeline_mode = #tpu.pipeline_mode<synchronous>, transform_indices = @transform_17, window_bounds = array<i64: 1, 32>}, {pipeline_mode = #tpu.pipeline_mode<synchronous>, transform_indices = @transform_18, window_bounds = array<i64: 32, 32>}, {pipeline_mode = #tpu.pipeline_mode<synchronous>, transform_indices = @transform_19, window_bounds = array<i64: 1, 32>}, {pipeline_mode = #tpu.pipeline_mode<synchronous>, transform_indices = @transform_20, window_bounds = array<i64: 32, 32>}, {pipeline_mode = #tpu.pipeline_mode<synchronous>, transform_indices = @transform_21, window_bounds = array<i64: 1, 32>}, {pipeline_mode = #tpu.pipeline_mode<synchronous>, transform_indices = @transform_22, window_bounds = array<i64: 32, 32>}, {pipeline_mode = #tpu.pipeline_mode<synchronous>, transform_indices = @transform_23, window_bounds = array<i64: 1, 32>}, {pipeline_mode = #tpu.pipeline_mode<synchronous>, transform_indices = @transform_24, window_bounds = array<i64: 32, 32>}, {pipeline_mode = #tpu.pipeline_mode<synchronous>, transform_indices = @transform_25, window_bounds = array<i64: 1, 32>}, {pipeline_mode = #tpu.pipeline_mode<synchronous>, transform_indices = @transform_26, window_bounds = array<i64: 32, 64>}, {pipeline_mode = #tpu.pipeline_mode<synchronous>, transform_indices = @transform_27, window_bounds = array<i64: 1, 64>}, {pipeline_mode = #tpu.pipeline_mode<synchronous>, transform_indices = @transform_28, window_bounds = array<i64: 64, 32>}, {pipeline_mode = #tpu.pipeline_mode<synchronous>, transform_indices = @transform_29, window_bounds = array<i64: 1, 32>}, {transform_indices = @transform_30, window_bounds = array<i64: 1, 8, 32>}]} {
    %c8_i32 = arith.constant 8 : i32
    %0 = arith.muli %arg1, %c8_i32 : i32
    %1 = tpu.assume_multiple %0, 8 : i32
    %c0 = arith.constant 0 : index
    %c0_0 = arith.constant 0 : index
    %c0_1 = arith.constant 0 : index
    %2 = vector.load %arg2[%c0, %c0_0, %c0_1] : memref<1x8x32xbf16, #tpu.memory_space<vmem>>, vector<1x8x32xbf16>
    %3 = vector.shape_cast %2 : vector<1x8x32xbf16> to vector<8x32xbf16>
    %c0_2 = arith.constant 0 : index
    %c0_3 = arith.constant 0 : index
    %c0_4 = arith.constant 0 : index
    %4 = vector.load %arg3[%c0_2, %c0_3, %c0_4] : memref<1x12x32xbf16, #tpu.memory_space<vmem>>, vector<1x12x32xbf16>
    %5 = vector.shape_cast %4 : vector<1x12x32xbf16> to vector<12x32xbf16>
    %c0_5 = arith.constant 0 : index
    %6 = arith.index_cast %1 : i32 to index
    %c0_6 = arith.constant 0 : index
    %7 = vector.load %arg2[%c0_5, %6, %c0_6] : memref<1x8x32xbf16, #tpu.memory_space<vmem>>, vector<1x8x32xbf16>
    %8 = vector.shape_cast %7 : vector<1x8x32xbf16> to vector<8x32xbf16>
    %9 = arith.extf %8 : vector<8x32xbf16> to vector<8x32xf32>
    %10 = tpu.iota {dimensions = array<i32: 0>} : vector<8x8xi32>
    %11 = vector.broadcast %1 : i32 to vector<8x8xi32>
    %12 = arith.addi %11, %10 : vector<8x8xi32>
    %13 = tpu.iota {dimensions = array<i32: 1>} : vector<8x8xi32>
    %c0_7 = arith.constant 0 : index
    %c0_8 = arith.constant 0 : index
    %c0_9 = arith.constant 0 : index
    %14 = vector.load %arg4[%c0_7, %c0_8, %c0_9] : memref<1x1x8xf32, #tpu.memory_space<vmem>>, vector<1x1x8xf32>
    %15 = vector.shape_cast %14 : vector<1x1x8xf32> to vector<1x8xf32>
    %cst = arith.constant 5.000000e-01 : f32
    %16 = vector.broadcast %cst : f32 to vector<1x8xf32>
    %17 = arith.cmpf ogt, %15, %16 : vector<1x8xf32>
    %18 = arith.cmpi sge, %12, %13 : vector<8x8xi32>
    %19 = vector.broadcast %17 : vector<1x8xi1> to vector<8x8xi1>
    %20 = arith.andi %18, %19 : vector<8x8xi1>
    %cst_10 = arith.constant 0.000000e+00 : f32
    %cst_11 = arith.constant -1.000000e+04 : f32
    %21 = vector.broadcast %cst_10 : f32 to vector<8x8xf32>
    %22 = vector.broadcast %cst_11 : f32 to vector<8x8xf32>
    %23 = arith.select %20, %21, %22 : vector<8x8xi1>, vector<8x8xf32>
    %c0_12 = arith.constant 0 : index
    %c0_13 = arith.constant 0 : index
    %c0_14 = arith.constant 0 : index
    %24 = vector.load %arg5[%c0_12, %c0_13, %c0_14] : memref<1x1x12xf32, #tpu.memory_space<vmem>>, vector<1x1x12xf32>
    %25 = vector.shape_cast %24 : vector<1x1x12xf32> to vector<1x12xf32>
    %cst_15 = arith.constant 5.000000e-01 : f32
    %26 = vector.broadcast %cst_15 : f32 to vector<1x12xf32>
    %27 = arith.cmpf ogt, %25, %26 : vector<1x12xf32>
    %cst_16 = arith.constant 0.000000e+00 : f32
    %cst_17 = arith.constant -1.000000e+04 : f32
    %28 = vector.broadcast %cst_16 : f32 to vector<1x12xf32>
    %29 = vector.broadcast %cst_17 : f32 to vector<1x12xf32>
    %30 = arith.select %27, %28, %29 : vector<1x12xi1>, vector<1x12xf32>
    %c0_18 = arith.constant 0 : index
    %c0_19 = arith.constant 0 : index
    %31 = vector.load %arg12[%c0_18, %c0_19] : memref<32x32xbf16, #tpu.memory_space<vmem>>, vector<32x32xbf16>
    %cst_20 = arith.constant dense<0.000000e+00> : vector<8x32xf32>
    %32 = tpu.matmul %8, %31, %cst_20 {dimension_numbers = #tpu.dot_dimension_numbers<[1], [0], [0], [1], [0, 0, 1, 1], [], []>} : vector<8x32xbf16>, vector<32x32xbf16>, vector<8x32xf32> -> vector<8x32xf32>
    %c0_21 = arith.constant 0 : index
    %c0_22 = arith.constant 0 : index
    %33 = vector.load %arg13[%c0_21, %c0_22] : memref<1x32xf32, #tpu.memory_space<vmem>>, vector<1x32xf32>
    %34 = vector.broadcast %33 : vector<1x32xf32> to vector<8x32xf32>
    %35 = arith.addf %32, %34 : vector<8x32xf32>
    %36 = arith.truncf %35 : vector<8x32xf32> to vector<8x32xbf16>
    %c0_23 = arith.constant 0 : index
    %c0_24 = arith.constant 0 : index
    %37 = vector.load %arg14[%c0_23, %c0_24] : memref<32x32xbf16, #tpu.memory_space<vmem>>, vector<32x32xbf16>
    %cst_25 = arith.constant dense<0.000000e+00> : vector<8x32xf32>
    %38 = tpu.matmul %3, %37, %cst_25 {dimension_numbers = #tpu.dot_dimension_numbers<[1], [0], [0], [1], [0, 0, 1, 1], [], []>} : vector<8x32xbf16>, vector<32x32xbf16>, vector<8x32xf32> -> vector<8x32xf32>
    %c0_26 = arith.constant 0 : index
    %c0_27 = arith.constant 0 : index
    %39 = vector.load %arg15[%c0_26, %c0_27] : memref<1x32xf32, #tpu.memory_space<vmem>>, vector<1x32xf32>
    %40 = vector.broadcast %39 : vector<1x32xf32> to vector<8x32xf32>
    %41 = arith.addf %38, %40 : vector<8x32xf32>
    %42 = arith.truncf %41 : vector<8x32xf32> to vector<8x32xbf16>
    %c0_28 = arith.constant 0 : index
    %c0_29 = arith.constant 0 : index
    %43 = vector.load %arg16[%c0_28, %c0_29] : memref<32x32xbf16, #tpu.memory_space<vmem>>, vector<32x32xbf16>
    %cst_30 = arith.constant dense<0.000000e+00> : vector<8x32xf32>
    %44 = tpu.matmul %3, %43, %cst_30 {dimension_numbers = #tpu.dot_dimension_numbers<[1], [0], [0], [1], [0, 0, 1, 1], [], []>} : vector<8x32xbf16>, vector<32x32xbf16>, vector<8x32xf32> -> vector<8x32xf32>
    %c0_31 = arith.constant 0 : index
    %c0_32 = arith.constant 0 : index
    %45 = vector.load %arg17[%c0_31, %c0_32] : memref<1x32xf32, #tpu.memory_space<vmem>>, vector<1x32xf32>
    %46 = vector.broadcast %45 : vector<1x32xf32> to vector<8x32xf32>
    %47 = arith.addf %44, %46 : vector<8x32xf32>
    %48 = arith.truncf %47 : vector<8x32xf32> to vector<8x32xbf16>
    %c0_33 = arith.constant 0 : index
    %c0_34 = arith.constant 0 : index
    %49 = vector.load %arg18[%c0_33, %c0_34] : memref<32x32xbf16, #tpu.memory_space<vmem>>, vector<32x32xbf16>
    %cst_35 = arith.constant 0.000000e+00 : f32
    %50 = vector.broadcast %cst_35 : f32 to vector<8x32xf32>
    %51 = vector.extract_strided_slice %36 {offsets = [0, 0], sizes = [8, 16], strides = [1, 1]} : vector<8x32xbf16> to vector<8x16xbf16>
    %52 = vector.extract_strided_slice %42 {offsets = [0, 0], sizes = [8, 16], strides = [1, 1]} : vector<8x32xbf16> to vector<8x16xbf16>
    %cst_36 = arith.constant dense<0.000000e+00> : vector<8x8xf32>
    %53 = tpu.matmul %51, %52, %cst_36 {dimension_numbers = #tpu.dot_dimension_numbers<[1], [1], [0], [0], [0, 0, 1, 0], [], []>} : vector<8x16xbf16>, vector<8x16xbf16>, vector<8x8xf32> -> vector<8x8xf32>
    %54 = arith.addf %53, %23 : vector<8x8xf32>
    %cst_37 = arith.constant dense<0xFF800000> : vector<8xf32>
    %55 = vector.multi_reduction <maximumf>, %54, %cst_37 [1] : vector<8x8xf32> to vector<8xf32>
    %56 = vector.shape_cast %55 : vector<8xf32> to vector<8x1xf32>
    %57 = vector.broadcast %56 : vector<8x1xf32> to vector<8x8xf32>
    %58 = arith.subf %54, %57 : vector<8x8xf32>
    %59 = math.exp %58 : vector<8x8xf32>
    %cst_38 = arith.constant dense<0.000000e+00> : vector<8xf32>
    %60 = vector.multi_reduction <add>, %59, %cst_38 [1] : vector<8x8xf32> to vector<8xf32>
    %61 = vector.shape_cast %60 : vector<8xf32> to vector<8x1xf32>
    %62 = tpu.reciprocal %61 {approx = true} : vector<8x1xf32> -> vector<8x1xf32>
    %63 = vector.broadcast %62 : vector<8x1xf32> to vector<8x8xf32>
    %64 = arith.mulf %59, %63 : vector<8x8xf32>
    %65 = arith.truncf %64 : vector<8x8xf32> to vector<8x8xbf16>
    %66 = vector.extract_strided_slice %48 {offsets = [0, 0], sizes = [8, 16], strides = [1, 1]} : vector<8x32xbf16> to vector<8x16xbf16>
    %cst_39 = arith.constant dense<0.000000e+00> : vector<8x16xf32>
    %67 = tpu.matmul %65, %66, %cst_39 {dimension_numbers = #tpu.dot_dimension_numbers<[1], [0], [0], [1], [0, 0, 1, 1], [], []>} : vector<8x8xbf16>, vector<8x16xbf16>, vector<8x16xf32> -> vector<8x16xf32>
    %68 = arith.truncf %67 : vector<8x16xf32> to vector<8x16xbf16>
    %69 = vector.extract_strided_slice %49 {offsets = [0, 0], sizes = [16, 32], strides = [1, 1]} : vector<32x32xbf16> to vector<16x32xbf16>
    %cst_40 = arith.constant dense<0.000000e+00> : vector<8x32xf32>
    %70 = tpu.matmul %68, %69, %cst_40 {dimension_numbers = #tpu.dot_dimension_numbers<[1], [0], [0], [1], [0, 0, 1, 1], [], []>} : vector<8x16xbf16>, vector<16x32xbf16>, vector<8x32xf32> -> vector<8x32xf32>
    %71 = arith.addf %50, %70 : vector<8x32xf32>
    %72 = vector.extract_strided_slice %36 {offsets = [0, 16], sizes = [8, 16], strides = [1, 1]} : vector<8x32xbf16> to vector<8x16xbf16>
    %73 = vector.extract_strided_slice %42 {offsets = [0, 16], sizes = [8, 16], strides = [1, 1]} : vector<8x32xbf16> to vector<8x16xbf16>
    %cst_41 = arith.constant dense<0.000000e+00> : vector<8x8xf32>
    %74 = tpu.matmul %72, %73, %cst_41 {dimension_numbers = #tpu.dot_dimension_numbers<[1], [1], [0], [0], [0, 0, 1, 0], [], []>} : vector<8x16xbf16>, vector<8x16xbf16>, vector<8x8xf32> -> vector<8x8xf32>
    %75 = arith.addf %74, %23 : vector<8x8xf32>
    %cst_42 = arith.constant dense<0xFF800000> : vector<8xf32>
    %76 = vector.multi_reduction <maximumf>, %75, %cst_42 [1] : vector<8x8xf32> to vector<8xf32>
    %77 = vector.shape_cast %76 : vector<8xf32> to vector<8x1xf32>
    %78 = vector.broadcast %77 : vector<8x1xf32> to vector<8x8xf32>
    %79 = arith.subf %75, %78 : vector<8x8xf32>
    %80 = math.exp %79 : vector<8x8xf32>
    %cst_43 = arith.constant dense<0.000000e+00> : vector<8xf32>
    %81 = vector.multi_reduction <add>, %80, %cst_43 [1] : vector<8x8xf32> to vector<8xf32>
    %82 = vector.shape_cast %81 : vector<8xf32> to vector<8x1xf32>
    %83 = tpu.reciprocal %82 {approx = true} : vector<8x1xf32> -> vector<8x1xf32>
    %84 = vector.broadcast %83 : vector<8x1xf32> to vector<8x8xf32>
    %85 = arith.mulf %80, %84 : vector<8x8xf32>
    %86 = arith.truncf %85 : vector<8x8xf32> to vector<8x8xbf16>
    %87 = vector.extract_strided_slice %48 {offsets = [0, 16], sizes = [8, 16], strides = [1, 1]} : vector<8x32xbf16> to vector<8x16xbf16>
    %cst_44 = arith.constant dense<0.000000e+00> : vector<8x16xf32>
    %88 = tpu.matmul %86, %87, %cst_44 {dimension_numbers = #tpu.dot_dimension_numbers<[1], [0], [0], [1], [0, 0, 1, 1], [], []>} : vector<8x8xbf16>, vector<8x16xbf16>, vector<8x16xf32> -> vector<8x16xf32>
    %89 = arith.truncf %88 : vector<8x16xf32> to vector<8x16xbf16>
    %90 = vector.extract_strided_slice %49 {offsets = [16, 0], sizes = [16, 32], strides = [1, 1]} : vector<32x32xbf16> to vector<16x32xbf16>
    %cst_45 = arith.constant dense<0.000000e+00> : vector<8x32xf32>
    %91 = tpu.matmul %89, %90, %cst_45 {dimension_numbers = #tpu.dot_dimension_numbers<[1], [0], [0], [1], [0, 0, 1, 1], [], []>} : vector<8x16xbf16>, vector<16x32xbf16>, vector<8x32xf32> -> vector<8x32xf32>
    %92 = arith.addf %71, %91 : vector<8x32xf32>
    %c0_46 = arith.constant 0 : index
    %c0_47 = arith.constant 0 : index
    %93 = vector.load %arg19[%c0_46, %c0_47] : memref<1x32xf32, #tpu.memory_space<vmem>>, vector<1x32xf32>
    %94 = vector.broadcast %93 : vector<1x32xf32> to vector<8x32xf32>
    %95 = arith.addf %92, %94 : vector<8x32xf32>
    %96 = arith.addf %95, %9 : vector<8x32xf32>
    %cst_48 = arith.constant dense<0.000000e+00> : vector<8xf32>
    %97 = vector.multi_reduction <add>, %96, %cst_48 [1] : vector<8x32xf32> to vector<8xf32>
    %98 = vector.shape_cast %97 : vector<8xf32> to vector<8x1xf32>
    %cst_49 = arith.constant 3.200000e+01 : f32
    %99 = vector.broadcast %cst_49 : f32 to vector<8x1xf32>
    %100 = arith.divf %98, %99 : vector<8x1xf32>
    %101 = vector.broadcast %100 : vector<8x1xf32> to vector<8x32xf32>
    %102 = arith.subf %96, %101 : vector<8x32xf32>
    %103 = arith.mulf %102, %102 : vector<8x32xf32>
    %cst_50 = arith.constant dense<0.000000e+00> : vector<8xf32>
    %104 = vector.multi_reduction <add>, %103, %cst_50 [1] : vector<8x32xf32> to vector<8xf32>
    %105 = vector.shape_cast %104 : vector<8xf32> to vector<8x1xf32>
    %cst_51 = arith.constant 3.200000e+01 : f32
    %106 = vector.broadcast %cst_51 : f32 to vector<8x1xf32>
    %107 = arith.divf %105, %106 : vector<8x1xf32>
    %cst_52 = arith.constant 9.99999974E-6 : f32
    %108 = vector.broadcast %cst_52 : f32 to vector<8x1xf32>
    %109 = arith.addf %107, %108 : vector<8x1xf32>
    %110 = math.rsqrt %109 : vector<8x1xf32>
    %111 = vector.broadcast %110 : vector<8x1xf32> to vector<8x32xf32>
    %112 = arith.mulf %102, %111 : vector<8x32xf32>
    %c0_53 = arith.constant 0 : index
    %c0_54 = arith.constant 0 : index
    %113 = vector.load %arg6[%c0_53, %c0_54] : memref<1x32xf32, #tpu.memory_space<vmem>>, vector<1x32xf32>
    %114 = vector.broadcast %113 : vector<1x32xf32> to vector<8x32xf32>
    %115 = arith.mulf %112, %114 : vector<8x32xf32>
    %c0_55 = arith.constant 0 : index
    %c0_56 = arith.constant 0 : index
    %116 = vector.load %arg7[%c0_55, %c0_56] : memref<1x32xf32, #tpu.memory_space<vmem>>, vector<1x32xf32>
    %117 = vector.broadcast %116 : vector<1x32xf32> to vector<8x32xf32>
    %118 = arith.addf %115, %117 : vector<8x32xf32>
    %119 = arith.truncf %118 : vector<8x32xf32> to vector<8x32xbf16>
    %c0_57 = arith.constant 0 : index
    %c0_58 = arith.constant 0 : index
    %120 = vector.load %arg20[%c0_57, %c0_58] : memref<32x32xbf16, #tpu.memory_space<vmem>>, vector<32x32xbf16>
    %cst_59 = arith.constant dense<0.000000e+00> : vector<8x32xf32>
    %121 = tpu.matmul %119, %120, %cst_59 {dimension_numbers = #tpu.dot_dimension_numbers<[1], [0], [0], [1], [0, 0, 1, 1], [], []>} : vector<8x32xbf16>, vector<32x32xbf16>, vector<8x32xf32> -> vector<8x32xf32>
    %c0_60 = arith.constant 0 : index
    %c0_61 = arith.constant 0 : index
    %122 = vector.load %arg21[%c0_60, %c0_61] : memref<1x32xf32, #tpu.memory_space<vmem>>, vector<1x32xf32>
    %123 = vector.broadcast %122 : vector<1x32xf32> to vector<8x32xf32>
    %124 = arith.addf %121, %123 : vector<8x32xf32>
    %125 = arith.truncf %124 : vector<8x32xf32> to vector<8x32xbf16>
    %c0_62 = arith.constant 0 : index
    %c0_63 = arith.constant 0 : index
    %126 = vector.load %arg22[%c0_62, %c0_63] : memref<32x32xbf16, #tpu.memory_space<vmem>>, vector<32x32xbf16>
    %cst_64 = arith.constant dense<0.000000e+00> : vector<12x32xf32>
    %127 = tpu.matmul %5, %126, %cst_64 {dimension_numbers = #tpu.dot_dimension_numbers<[1], [0], [0], [1], [0, 0, 1, 1], [], []>} : vector<12x32xbf16>, vector<32x32xbf16>, vector<12x32xf32> -> vector<12x32xf32>
    %c0_65 = arith.constant 0 : index
    %c0_66 = arith.constant 0 : index
    %128 = vector.load %arg23[%c0_65, %c0_66] : memref<1x32xf32, #tpu.memory_space<vmem>>, vector<1x32xf32>
    %129 = vector.broadcast %128 : vector<1x32xf32> to vector<12x32xf32>
    %130 = arith.addf %127, %129 : vector<12x32xf32>
    %131 = arith.truncf %130 : vector<12x32xf32> to vector<12x32xbf16>
    %c0_67 = arith.constant 0 : index
    %c0_68 = arith.constant 0 : index
    %132 = vector.load %arg24[%c0_67, %c0_68] : memref<32x32xbf16, #tpu.memory_space<vmem>>, vector<32x32xbf16>
    %cst_69 = arith.constant dense<0.000000e+00> : vector<12x32xf32>
    %133 = tpu.matmul %5, %132, %cst_69 {dimension_numbers = #tpu.dot_dimension_numbers<[1], [0], [0], [1], [0, 0, 1, 1], [], []>} : vector<12x32xbf16>, vector<32x32xbf16>, vector<12x32xf32> -> vector<12x32xf32>
    %c0_70 = arith.constant 0 : index
    %c0_71 = arith.constant 0 : index
    %134 = vector.load %arg25[%c0_70, %c0_71] : memref<1x32xf32, #tpu.memory_space<vmem>>, vector<1x32xf32>
    %135 = vector.broadcast %134 : vector<1x32xf32> to vector<12x32xf32>
    %136 = arith.addf %133, %135 : vector<12x32xf32>
    %137 = arith.truncf %136 : vector<12x32xf32> to vector<12x32xbf16>
    %c0_72 = arith.constant 0 : index
    %c0_73 = arith.constant 0 : index
    %138 = vector.load %arg26[%c0_72, %c0_73] : memref<32x32xbf16, #tpu.memory_space<vmem>>, vector<32x32xbf16>
    %cst_74 = arith.constant 0.000000e+00 : f32
    %139 = vector.broadcast %cst_74 : f32 to vector<8x32xf32>
    %140 = vector.extract_strided_slice %125 {offsets = [0, 0], sizes = [8, 16], strides = [1, 1]} : vector<8x32xbf16> to vector<8x16xbf16>
    %141 = vector.extract_strided_slice %131 {offsets = [0, 0], sizes = [12, 16], strides = [1, 1]} : vector<12x32xbf16> to vector<12x16xbf16>
    %cst_75 = arith.constant dense<0.000000e+00> : vector<8x12xf32>
    %142 = tpu.matmul %140, %141, %cst_75 {dimension_numbers = #tpu.dot_dimension_numbers<[1], [1], [0], [0], [0, 0, 1, 0], [], []>} : vector<8x16xbf16>, vector<12x16xbf16>, vector<8x12xf32> -> vector<8x12xf32>
    %143 = vector.broadcast %30 : vector<1x12xf32> to vector<8x12xf32>
    %144 = arith.addf %142, %143 : vector<8x12xf32>
    %cst_76 = arith.constant dense<0xFF800000> : vector<8xf32>
    %145 = vector.multi_reduction <maximumf>, %144, %cst_76 [1] : vector<8x12xf32> to vector<8xf32>
    %146 = vector.shape_cast %145 : vector<8xf32> to vector<8x1xf32>
    %147 = vector.broadcast %146 : vector<8x1xf32> to vector<8x12xf32>
    %148 = arith.subf %144, %147 : vector<8x12xf32>
    %149 = math.exp %148 : vector<8x12xf32>
    %cst_77 = arith.constant dense<0.000000e+00> : vector<8xf32>
    %150 = vector.multi_reduction <add>, %149, %cst_77 [1] : vector<8x12xf32> to vector<8xf32>
    %151 = vector.shape_cast %150 : vector<8xf32> to vector<8x1xf32>
    %152 = tpu.reciprocal %151 {approx = true} : vector<8x1xf32> -> vector<8x1xf32>
    %153 = vector.broadcast %152 : vector<8x1xf32> to vector<8x12xf32>
    %154 = arith.mulf %149, %153 : vector<8x12xf32>
    %155 = arith.truncf %154 : vector<8x12xf32> to vector<8x12xbf16>
    %156 = vector.extract_strided_slice %137 {offsets = [0, 0], sizes = [12, 16], strides = [1, 1]} : vector<12x32xbf16> to vector<12x16xbf16>
    %cst_78 = arith.constant dense<0.000000e+00> : vector<8x16xf32>
    %157 = tpu.matmul %155, %156, %cst_78 {dimension_numbers = #tpu.dot_dimension_numbers<[1], [0], [0], [1], [0, 0, 1, 1], [], []>} : vector<8x12xbf16>, vector<12x16xbf16>, vector<8x16xf32> -> vector<8x16xf32>
    %158 = arith.truncf %157 : vector<8x16xf32> to vector<8x16xbf16>
    %159 = vector.extract_strided_slice %138 {offsets = [0, 0], sizes = [16, 32], strides = [1, 1]} : vector<32x32xbf16> to vector<16x32xbf16>
    %cst_79 = arith.constant dense<0.000000e+00> : vector<8x32xf32>
    %160 = tpu.matmul %158, %159, %cst_79 {dimension_numbers = #tpu.dot_dimension_numbers<[1], [0], [0], [1], [0, 0, 1, 1], [], []>} : vector<8x16xbf16>, vector<16x32xbf16>, vector<8x32xf32> -> vector<8x32xf32>
    %161 = arith.addf %139, %160 : vector<8x32xf32>
    %162 = vector.extract_strided_slice %125 {offsets = [0, 16], sizes = [8, 16], strides = [1, 1]} : vector<8x32xbf16> to vector<8x16xbf16>
    %163 = vector.extract_strided_slice %131 {offsets = [0, 16], sizes = [12, 16], strides = [1, 1]} : vector<12x32xbf16> to vector<12x16xbf16>
    %cst_80 = arith.constant dense<0.000000e+00> : vector<8x12xf32>
    %164 = tpu.matmul %162, %163, %cst_80 {dimension_numbers = #tpu.dot_dimension_numbers<[1], [1], [0], [0], [0, 0, 1, 0], [], []>} : vector<8x16xbf16>, vector<12x16xbf16>, vector<8x12xf32> -> vector<8x12xf32>
    %165 = vector.broadcast %30 : vector<1x12xf32> to vector<8x12xf32>
    %166 = arith.addf %164, %165 : vector<8x12xf32>
    %cst_81 = arith.constant dense<0xFF800000> : vector<8xf32>
    %167 = vector.multi_reduction <maximumf>, %166, %cst_81 [1] : vector<8x12xf32> to vector<8xf32>
    %168 = vector.shape_cast %167 : vector<8xf32> to vector<8x1xf32>
    %169 = vector.broadcast %168 : vector<8x1xf32> to vector<8x12xf32>
    %170 = arith.subf %166, %169 : vector<8x12xf32>
    %171 = math.exp %170 : vector<8x12xf32>
    %cst_82 = arith.constant dense<0.000000e+00> : vector<8xf32>
    %172 = vector.multi_reduction <add>, %171, %cst_82 [1] : vector<8x12xf32> to vector<8xf32>
    %173 = vector.shape_cast %172 : vector<8xf32> to vector<8x1xf32>
    %174 = tpu.reciprocal %173 {approx = true} : vector<8x1xf32> -> vector<8x1xf32>
    %175 = vector.broadcast %174 : vector<8x1xf32> to vector<8x12xf32>
    %176 = arith.mulf %171, %175 : vector<8x12xf32>
    %177 = arith.truncf %176 : vector<8x12xf32> to vector<8x12xbf16>
    %178 = vector.extract_strided_slice %137 {offsets = [0, 16], sizes = [12, 16], strides = [1, 1]} : vector<12x32xbf16> to vector<12x16xbf16>
    %cst_83 = arith.constant dense<0.000000e+00> : vector<8x16xf32>
    %179 = tpu.matmul %177, %178, %cst_83 {dimension_numbers = #tpu.dot_dimension_numbers<[1], [0], [0], [1], [0, 0, 1, 1], [], []>} : vector<8x12xbf16>, vector<12x16xbf16>, vector<8x16xf32> -> vector<8x16xf32>
    %180 = arith.truncf %179 : vector<8x16xf32> to vector<8x16xbf16>
    %181 = vector.extract_strided_slice %138 {offsets = [16, 0], sizes = [16, 32], strides = [1, 1]} : vector<32x32xbf16> to vector<16x32xbf16>
    %cst_84 = arith.constant dense<0.000000e+00> : vector<8x32xf32>
    %182 = tpu.matmul %180, %181, %cst_84 {dimension_numbers = #tpu.dot_dimension_numbers<[1], [0], [0], [1], [0, 0, 1, 1], [], []>} : vector<8x16xbf16>, vector<16x32xbf16>, vector<8x32xf32> -> vector<8x32xf32>
    %183 = arith.addf %161, %182 : vector<8x32xf32>
    %c0_85 = arith.constant 0 : index
    %c0_86 = arith.constant 0 : index
    %184 = vector.load %arg27[%c0_85, %c0_86] : memref<1x32xf32, #tpu.memory_space<vmem>>, vector<1x32xf32>
    %185 = vector.broadcast %184 : vector<1x32xf32> to vector<8x32xf32>
    %186 = arith.addf %183, %185 : vector<8x32xf32>
    %187 = arith.addf %186, %118 : vector<8x32xf32>
    %cst_87 = arith.constant dense<0.000000e+00> : vector<8xf32>
    %188 = vector.multi_reduction <add>, %187, %cst_87 [1] : vector<8x32xf32> to vector<8xf32>
    %189 = vector.shape_cast %188 : vector<8xf32> to vector<8x1xf32>
    %cst_88 = arith.constant 3.200000e+01 : f32
    %190 = vector.broadcast %cst_88 : f32 to vector<8x1xf32>
    %191 = arith.divf %189, %190 : vector<8x1xf32>
    %192 = vector.broadcast %191 : vector<8x1xf32> to vector<8x32xf32>
    %193 = arith.subf %187, %192 : vector<8x32xf32>
    %194 = arith.mulf %193, %193 : vector<8x32xf32>
    %cst_89 = arith.constant dense<0.000000e+00> : vector<8xf32>
    %195 = vector.multi_reduction <add>, %194, %cst_89 [1] : vector<8x32xf32> to vector<8xf32>
    %196 = vector.shape_cast %195 : vector<8xf32> to vector<8x1xf32>
    %cst_90 = arith.constant 3.200000e+01 : f32
    %197 = vector.broadcast %cst_90 : f32 to vector<8x1xf32>
    %198 = arith.divf %196, %197 : vector<8x1xf32>
    %cst_91 = arith.constant 9.99999974E-6 : f32
    %199 = vector.broadcast %cst_91 : f32 to vector<8x1xf32>
    %200 = arith.addf %198, %199 : vector<8x1xf32>
    %201 = math.rsqrt %200 : vector<8x1xf32>
    %202 = vector.broadcast %201 : vector<8x1xf32> to vector<8x32xf32>
    %203 = arith.mulf %193, %202 : vector<8x32xf32>
    %c0_92 = arith.constant 0 : index
    %c0_93 = arith.constant 0 : index
    %204 = vector.load %arg8[%c0_92, %c0_93] : memref<1x32xf32, #tpu.memory_space<vmem>>, vector<1x32xf32>
    %205 = vector.broadcast %204 : vector<1x32xf32> to vector<8x32xf32>
    %206 = arith.mulf %203, %205 : vector<8x32xf32>
    %c0_94 = arith.constant 0 : index
    %c0_95 = arith.constant 0 : index
    %207 = vector.load %arg9[%c0_94, %c0_95] : memref<1x32xf32, #tpu.memory_space<vmem>>, vector<1x32xf32>
    %208 = vector.broadcast %207 : vector<1x32xf32> to vector<8x32xf32>
    %209 = arith.addf %206, %208 : vector<8x32xf32>
    %210 = arith.truncf %209 : vector<8x32xf32> to vector<8x32xbf16>
    %c0_96 = arith.constant 0 : index
    %c0_97 = arith.constant 0 : index
    %211 = vector.load %arg28[%c0_96, %c0_97] : memref<32x64xbf16, #tpu.memory_space<vmem>>, vector<32x64xbf16>
    %cst_98 = arith.constant dense<0.000000e+00> : vector<8x64xf32>
    %212 = tpu.matmul %210, %211, %cst_98 {dimension_numbers = #tpu.dot_dimension_numbers<[1], [0], [0], [1], [0, 0, 1, 1], [], []>} : vector<8x32xbf16>, vector<32x64xbf16>, vector<8x64xf32> -> vector<8x64xf32>
    %c0_99 = arith.constant 0 : index
    %c0_100 = arith.constant 0 : index
    %213 = vector.load %arg29[%c0_99, %c0_100] : memref<1x64xf32, #tpu.memory_space<vmem>>, vector<1x64xf32>
    %214 = vector.broadcast %213 : vector<1x64xf32> to vector<8x64xf32>
    %215 = arith.addf %212, %214 : vector<8x64xf32>
    %cst_101 = arith.constant 0.000000e+00 : f32
    %216 = vector.broadcast %cst_101 : f32 to vector<8x64xf32>
    %217 = arith.maximumf %215, %216 : vector<8x64xf32>
    %218 = arith.truncf %217 : vector<8x64xf32> to vector<8x64xbf16>
    %c0_102 = arith.constant 0 : index
    %c0_103 = arith.constant 0 : index
    %219 = vector.load %arg30[%c0_102, %c0_103] : memref<64x32xbf16, #tpu.memory_space<vmem>>, vector<64x32xbf16>
    %cst_104 = arith.constant dense<0.000000e+00> : vector<8x32xf32>
    %220 = tpu.matmul %218, %219, %cst_104 {dimension_numbers = #tpu.dot_dimension_numbers<[1], [0], [0], [1], [0, 0, 1, 1], [], []>} : vector<8x64xbf16>, vector<64x32xbf16>, vector<8x32xf32> -> vector<8x32xf32>
    %c0_105 = arith.constant 0 : index
    %c0_106 = arith.constant 0 : index
    %221 = vector.load %arg31[%c0_105, %c0_106] : memref<1x32xf32, #tpu.memory_space<vmem>>, vector<1x32xf32>
    %222 = vector.broadcast %221 : vector<1x32xf32> to vector<8x32xf32>
    %223 = arith.addf %220, %222 : vector<8x32xf32>
    %224 = arith.addf %223, %209 : vector<8x32xf32>
    %cst_107 = arith.constant dense<0.000000e+00> : vector<8xf32>
    %225 = vector.multi_reduction <add>, %224, %cst_107 [1] : vector<8x32xf32> to vector<8xf32>
    %226 = vector.shape_cast %225 : vector<8xf32> to vector<8x1xf32>
    %cst_108 = arith.constant 3.200000e+01 : f32
    %227 = vector.broadcast %cst_108 : f32 to vector<8x1xf32>
    %228 = arith.divf %226, %227 : vector<8x1xf32>
    %229 = vector.broadcast %228 : vector<8x1xf32> to vector<8x32xf32>
    %230 = arith.subf %224, %229 : vector<8x32xf32>
    %231 = arith.mulf %230, %230 : vector<8x32xf32>
    %cst_109 = arith.constant dense<0.000000e+00> : vector<8xf32>
    %232 = vector.multi_reduction <add>, %231, %cst_109 [1] : vector<8x32xf32> to vector<8xf32>
    %233 = vector.shape_cast %232 : vector<8xf32> to vector<8x1xf32>
    %cst_110 = arith.constant 3.200000e+01 : f32
    %234 = vector.broadcast %cst_110 : f32 to vector<8x1xf32>
    %235 = arith.divf %233, %234 : vector<8x1xf32>
    %cst_111 = arith.constant 9.99999974E-6 : f32
    %236 = vector.broadcast %cst_111 : f32 to vector<8x1xf32>
    %237 = arith.addf %235, %236 : vector<8x1xf32>
    %238 = math.rsqrt %237 : vector<8x1xf32>
    %239 = vector.broadcast %238 : vector<8x1xf32> to vector<8x32xf32>
    %240 = arith.mulf %230, %239 : vector<8x32xf32>
    %c0_112 = arith.constant 0 : index
    %c0_113 = arith.constant 0 : index
    %241 = vector.load %arg10[%c0_112, %c0_113] : memref<1x32xf32, #tpu.memory_space<vmem>>, vector<1x32xf32>
    %242 = vector.broadcast %241 : vector<1x32xf32> to vector<8x32xf32>
    %243 = arith.mulf %240, %242 : vector<8x32xf32>
    %c0_114 = arith.constant 0 : index
    %c0_115 = arith.constant 0 : index
    %244 = vector.load %arg11[%c0_114, %c0_115] : memref<1x32xf32, #tpu.memory_space<vmem>>, vector<1x32xf32>
    %245 = vector.broadcast %244 : vector<1x32xf32> to vector<8x32xf32>
    %246 = arith.addf %243, %245 : vector<8x32xf32>
    %247 = arith.truncf %246 : vector<8x32xf32> to vector<8x32xbf16>
    %c0_116 = arith.constant 0 : index
    %c0_117 = arith.constant 0 : index
    %c0_118 = arith.constant 0 : index
    %248 = vector.load %arg32[%c0_116, %c0_117, %c0_118] : memref<1x8x32xbf16, #tpu.memory_space<vmem>>, vector<1x8x32xbf16>
    %249 = vector.shape_cast %248 : vector<1x8x32xbf16> to vector<8x32xbf16>
    %250 = vector.shape_cast %247 : vector<8x32xbf16> to vector<1x8x32xbf16>
    tpu.vector_store %arg32[%c0_116, %c0_117, %c0_118], %250 {strides = array<i32>} : memref<1x8x32xbf16, #tpu.memory_space<vmem>>, vector<1x8x32xbf16>,
    return
  }
  func.func @transform_0(%arg0: i32, %arg1: i32) -> (i32, i32, i32) {
    %c0_i32 = arith.constant 0 : i32
    %c0_i32_0 = arith.constant 0 : i32
    %c0_i32_1 = arith.constant 0 : i32
    return %arg0, %c0_i32, %c0_i32_0 : i32, i32, i32
  }
  func.func @transform_1(%arg0: i32, %arg1: i32) -> (i32, i32, i32) {
    %c0_i32 = arith.constant 0 : i32
    %c0_i32_0 = arith.constant 0 : i32
    %c0_i32_1 = arith.constant 0 : i32
    return %arg0, %c0_i32, %c0_i32_0 : i32, i32, i32
  }
  func.func @transform_2(%arg0: i32, %arg1: i32) -> (i32, i32, i32) {
    %c0_i32 = arith.constant 0 : i32
    %c0_i32_0 = arith.constant 0 : i32
    %c0_i32_1 = arith.constant 0 : i32
    return %arg0, %c0_i32, %c0_i32_0 : i32, i32, i32
  }
  func.func @transform_3(%arg0: i32, %arg1: i32) -> (i32, i32, i32) {
    %c0_i32 = arith.constant 0 : i32
    %c0_i32_0 = arith.constant 0 : i32
    %c0_i32_1 = arith.constant 0 : i32
    return %arg0, %c0_i32, %c0_i32_0 : i32, i32, i32
  }
  func.func @transform_4(%arg0: i32, %arg1: i32) -> (i32, i32) {
    %c0_i32 = arith.constant 0 : i32
    %c0_i32_0 = arith.constant 0 : i32
    %c0_i32_1 = arith.constant 0 : i32
    return %c0_i32, %c0_i32_0 : i32, i32
  }
  func.func @transform_5(%arg0: i32, %arg1: i32) -> (i32, i32) {
    %c0_i32 = arith.constant 0 : i32
    %c0_i32_0 = arith.constant 0 : i32
    %c0_i32_1 = arith.constant 0 : i32
    return %c0_i32, %c0_i32_0 : i32, i32
  }
  func.func @transform_6(%arg0: i32, %arg1: i32) -> (i32, i32) {
    %c0_i32 = arith.constant 0 : i32
    %c0_i32_0 = arith.constant 0 : i32
    %c0_i32_1 = arith.constant 0 : i32
    return %c0_i32, %c0_i32_0 : i32, i32
  }
  func.func @transform_7(%arg0: i32, %arg1: i32) -> (i32, i32) {
    %c0_i32 = arith.constant 0 : i32
    %c0_i32_0 = arith.constant 0 : i32
    %c0_i32_1 = arith.constant 0 : i32
    return %c0_i32, %c0_i32_0 : i32, i32
  }
  func.func @transform_8(%arg0: i32, %arg1: i32) -> (i32, i32) {
    %c0_i32 = arith.constant 0 : i32
    %c0_i32_0 = arith.constant 0 : i32
    %c0_i32_1 = arith.constant 0 : i32
    return %c0_i32, %c0_i32_0 : i32, i32
  }
  func.func @transform_9(%arg0: i32, %arg1: i32) -> (i32, i32) {
    %c0_i32 = arith.constant 0 : i32
    %c0_i32_0 = arith.constant 0 : i32
    %c0_i32_1 = arith.constant 0 : i32
    return %c0_i32, %c0_i32_0 : i32, i32
  }
  func.func @transform_10(%arg0: i32, %arg1: i32) -> (i32, i32) {
    %c0_i32 = arith.constant 0 : i32
    %c0_i32_0 = arith.constant 0 : i32
    %c0_i32_1 = arith.constant 0 : i32
    return %c0_i32, %c0_i32_0 : i32, i32
  }
  func.func @transform_11(%arg0: i32, %arg1: i32) -> (i32, i32) {
    %c0_i32 = arith.constant 0 : i32
    %c0_i32_0 = arith.constant 0 : i32
    %c0_i32_1 = arith.constant 0 : i32
    return %c0_i32, %c0_i32_0 : i32, i32
  }
  func.func @transform_12(%arg0: i32, %arg1: i32) -> (i32, i32) {
    %c0_i32 = arith.constant 0 : i32
    %c0_i32_0 = arith.constant 0 : i32
    %c0_i32_1 = arith.constant 0 : i32
    return %c0_i32, %c0_i32_0 : i32, i32
  }
  func.func @transform_13(%arg0: i32, %arg1: i32) -> (i32, i32) {
    %c0_i32 = arith.constant 0 : i32
    %c0_i32_0 = arith.constant 0 : i32
    %c0_i32_1 = arith.constant 0 : i32
    return %c0_i32, %c0_i32_0 : i32, i32
  }
  func.func @transform_14(%arg0: i32, %arg1: i32) -> (i32, i32) {
    %c0_i32 = arith.constant 0 : i32
    %c0_i32_0 = arith.constant 0 : i32
    %c0_i32_1 = arith.constant 0 : i32
    return %c0_i32, %c0_i32_0 : i32, i32
  }
  func.func @transform_15(%arg0: i32, %arg1: i32) -> (i32, i32) {
    %c0_i32 = arith.constant 0 : i32
    %c0_i32_0 = arith.constant 0 : i32
    %c0_i32_1 = arith.constant 0 : i32
    return %c0_i32, %c0_i32_0 : i32, i32
  }
  func.func @transform_16(%arg0: i32, %arg1: i32) -> (i32, i32) {
    %c0_i32 = arith.constant 0 : i32
    %c0_i32_0 = arith.constant 0 : i32
    %c0_i32_1 = arith.constant 0 : i32
    return %c0_i32, %c0_i32_0 : i32, i32
  }
  func.func @transform_17(%arg0: i32, %arg1: i32) -> (i32, i32) {
    %c0_i32 = arith.constant 0 : i32
    %c0_i32_0 = arith.constant 0 : i32
    %c0_i32_1 = arith.constant 0 : i32
    return %c0_i32, %c0_i32_0 : i32, i32
  }
  func.func @transform_18(%arg0: i32, %arg1: i32) -> (i32, i32) {
    %c0_i32 = arith.constant 0 : i32
    %c0_i32_0 = arith.constant 0 : i32
    %c0_i32_1 = arith.constant 0 : i32
    return %c0_i32, %c0_i32_0 : i32, i32
  }
  func.func @transform_19(%arg0: i32, %arg1: i32) -> (i32, i32) {
    %c0_i32 = arith.constant 0 : i32
    %c0_i32_0 = arith.constant 0 : i32
    %c0_i32_1 = arith.constant 0 : i32
    return %c0_i32, %c0_i32_0 : i32, i32
  }
  func.func @transform_20(%arg0: i32, %arg1: i32) -> (i32, i32) {
    %c0_i32 = arith.constant 0 : i32
    %c0_i32_0 = arith.constant 0 : i32
    %c0_i32_1 = arith.constant 0 : i32
    return %c0_i32, %c0_i32_0 : i32, i32
  }
  func.func @transform_21(%arg0: i32, %arg1: i32) -> (i32, i32) {
    %c0_i32 = arith.constant 0 : i32
    %c0_i32_0 = arith.constant 0 : i32
    %c0_i32_1 = arith.constant 0 : i32
    return %c0_i32, %c0_i32_0 : i32, i32
  }
  func.func @transform_22(%arg0: i32, %arg1: i32) -> (i32, i32) {
    %c0_i32 = arith.constant 0 : i32
    %c0_i32_0 = arith.constant 0 : i32
    %c0_i32_1 = arith.constant 0 : i32
    return %c0_i32, %c0_i32_0 : i32, i32
  }
  func.func @transform_23(%arg0: i32, %arg1: i32) -> (i32, i32) {
    %c0_i32 = arith.constant 0 : i32
    %c0_i32_0 = arith.constant 0 : i32
    %c0_i32_1 = arith.constant 0 : i32
    return %c0_i32, %c0_i32_0 : i32, i32
  }
  func.func @transform_24(%arg0: i32, %arg1: i32) -> (i32, i32) {
    %c0_i32 = arith.constant 0 : i32
    %c0_i32_0 = arith.constant 0 : i32
    %c0_i32_1 = arith.constant 0 : i32
    return %c0_i32, %c0_i32_0 : i32, i32
  }
  func.func @transform_25(%arg0: i32, %arg1: i32) -> (i32, i32) {
    %c0_i32 = arith.constant 0 : i32
    %c0_i32_0 = arith.constant 0 : i32
    %c0_i32_1 = arith.constant 0 : i32
    return %c0_i32, %c0_i32_0 : i32, i32
  }
  func.func @transform_26(%arg0: i32, %arg1: i32) -> (i32, i32) {
    %c0_i32 = arith.constant 0 : i32
    %c0_i32_0 = arith.constant 0 : i32
    %c0_i32_1 = arith.constant 0 : i32
    return %c0_i32, %c0_i32_0 : i32, i32
  }
  func.func @transform_27(%arg0: i32, %arg1: i32) -> (i32, i32) {
    %c0_i32 = arith.constant 0 : i32
    %c0_i32_0 = arith.constant 0 : i32
    %c0_i32_1 = arith.constant 0 : i32
    return %c0_i32, %c0_i32_0 : i32, i32
  }
  func.func @transform_28(%arg0: i32, %arg1: i32) -> (i32, i32) {
    %c0_i32 = arith.constant 0 : i32
    %c0_i32_0 = arith.constant 0 : i32
    %c0_i32_1 = arith.constant 0 : i32
    return %c0_i32, %c0_i32_0 : i32, i32
  }
  func.func @transform_29(%arg0: i32, %arg1: i32) -> (i32, i32) {
    %c0_i32 = arith.constant 0 : i32
    %c0_i32_0 = arith.constant 0 : i32
    %c0_i32_1 = arith.constant 0 : i32
    return %c0_i32, %c0_i32_0 : i32, i32
  }
  func.func @transform_30(%arg0: i32, %arg1: i32) -> (i32, i32, i32) {
    %c0_i32 = arith.constant 0 : i32
    %c0_i32_0 = arith.constant 0 : i32
    return %arg0, %arg1, %c0_i32 : i32, i32, i32
  }
}

</mosaic_0001>

<llo_original>
// kernel: tpu_custom_call.1
$region0: #{tpu_custom_call.1}
  #allocation0 [shape = 'u32[]', space=smem, size = 0x4, offset = 0x4, fixed_abs, tag = 'smem constant byte address 0x4 - core index']
  #allocation1 [shape = 'u32[144,128]{1,0:T(1,128)}', space=vmem, size = 0x12000, scoped, tag = 'internal scratch']
  %s0 = inlined_call_operand.smem [shape: u32[31], index: -1, kind: input, shape index: {}]
  %s1 = sld [smem:[%s0]]
  %s2 = scalar_lea.smem %s0, 1
  %s3 = sld [smem:[%s2]]
  %s4 = scalar_lea.smem %s0, 2
  %s5 = sld [smem:[%s4]]
  %s6 = scalar_lea.smem %s0, 3
  %s7 = sld [smem:[%s6]]
  %s8 = scalar_lea.smem %s0, 4
  %s9 = sld [smem:[%s8]]
  %s10 = scalar_lea.smem %s0, 5
  %s11 = sld [smem:[%s10]]
  %s12 = scalar_lea.smem %s0, 6
  %s13 = sld [smem:[%s12]]
  %s14 = scalar_lea.smem %s0, 7
  %s15 = sld [smem:[%s14]]
  %s16 = scalar_lea.smem %s0, 8
  %s17 = sld [smem:[%s16]]
  %s18 = scalar_lea.smem %s0, 9
  %s19 = sld [smem:[%s18]]
  %s20 = scalar_lea.smem %s0, 10
  %s21 = sld [smem:[%s20]]
  %s22 = scalar_lea.smem %s0, 11
  %s23 = sld [smem:[%s22]]
  %s24 = scalar_lea.smem %s0, 12
  %s25 = sld [smem:[%s24]]
  %s26 = scalar_lea.smem %s0, 13
  %s27 = sld [smem:[%s26]]
  %s28 = scalar_lea.smem %s0, 14
  %s29 = sld [smem:[%s28]]
  %s30 = scalar_lea.smem %s0, 15
  %s31 = sld [smem:[%s30]]
  %s32 = scalar_lea.smem %s0, 16
  %s33 = sld [smem:[%s32]]
  %s34 = scalar_lea.smem %s0, 17
  %s35 = sld [smem:[%s34]]
  %s36 = scalar_lea.smem %s0, 18
  %s37 = sld [smem:[%s36]]
  %s38 = scalar_lea.smem %s0, 19
  %s39 = sld [smem:[%s38]]
  %s40 = scalar_lea.smem %s0, 20
  %s41 = sld [smem:[%s40]]
  %s42 = scalar_lea.smem %s0, 21
  %s43 = sld [smem:[%s42]]
  %s44 = scalar_lea.smem %s0, 22
  %s45 = sld [smem:[%s44]]
  %s46 = scalar_lea.smem %s0, 23
  %s47 = sld [smem:[%s46]]
  %s48 = scalar_lea.smem %s0, 24
  %s49 = sld [smem:[%s48]]
  %s50 = scalar_lea.smem %s0, 25
  %s51 = sld [smem:[%s50]]
  %s52 = scalar_lea.smem %s0, 26
  %s53 = sld [smem:[%s52]]
  %s54 = scalar_lea.smem %s0, 27
  %s55 = sld [smem:[%s54]]
  %s56 = scalar_lea.smem %s0, 28
  %s57 = sld [smem:[%s56]]
  %s58 = scalar_lea.smem %s0, 29
  %s59 = sld [smem:[%s58]]
  %s60 = scalar_lea.smem %s0, 30
  %s61 = sld [smem:[%s60]]
  %s62 = sld [smem:[#allocation0]]
  $region205: #{tpu_custom_call.1} parent=0
    _
  %s64 = ssub.s32 1, %s62
  %s65 = scalar_select 0, %s64, %s62
  $region1: #{tpu_custom_call.1} parent=0
    #allocation2 [shape = 'u8[4096]{0}', space=vmem, size = 0x1000, scoped, tag = 'input window, operand 0']
    #allocation3 [shape = 's32[2]{0}', space=sflag, size = 0x8, scoped, tag = 'scoped memory for tpu_custom_call.1']
    #allocation4 [shape = 's32[2]{0}', space=sflag, size = 0x8, scoped, tag = 'scoped memory for tpu_custom_call.1']
    #allocation5 [shape = 'u8[1024]{0}', space=vmem, size = 0x400, scoped, tag = 'input window, operand 2']
    #allocation6 [shape = 's32[2]{0}', space=sflag, size = 0x8, scoped, tag = 'scoped memory for tpu_custom_call.1']
    #allocation7 [shape = 'u8[1024]{0}', space=vmem, size = 0x400, scoped, tag = 'input window, operand 3']
    #allocation8 [shape = 'u8[512]{0}', space=vmem, size = 0x400, scoped, tag = 'input window, operand 4, single buffered']
    #allocation9 [shape = 's32[1]{0}', space=sflag, size = 0x4, scoped, tag = 'scoped memory for tpu_custom_call.1']
    #allocation10 [shape = 'u8[512]{0}', space=vmem, size = 0x400, scoped, tag = 'input window, operand 5, single buffered']
    #allocation11 [shape = 'u8[512]{0}', space=vmem, size = 0x400, scoped, tag = 'input window, operand 6, single buffered']
    #allocation12 [shape = 's32[1]{0}', space=sflag, size = 0x4, scoped, tag = 'scoped memory for tpu_custom_call.1']
    #allocation13 [shape = 'u8[512]{0}', space=vmem, size = 0x400, scoped, tag = 'input window, operand 7, single buffered']
    #allocation14 [shape = 'u8[512]{0}', space=vmem, size = 0x400, scoped, tag = 'input window, operand 8, single buffered']
    #allocation15 [shape = 's32[1]{0}', space=sflag, size = 0x4, scoped, tag = 'scoped memory for tpu_custom_call.1']
    #allocation16 [shape = 'u8[512]{0}', space=vmem, size = 0x400, scoped, tag = 'input window, operand 9, single buffered']
    #allocation17 [shape = 'u8[512]{0}', space=vmem, size = 0x400, scoped, tag = 'input window, operand 11, single buffered']
    #allocation18 [shape = 's32[1]{0}', space=sflag, size = 0x4, scoped, tag = 'scoped memory for tpu_custom_call.1']
    #allocation19 [shape = 'u8[512]{0}', space=vmem, size = 0x400, scoped, tag = 'input window, operand 13, single buffered']
    #allocation20 [shape = 'u8[512]{0}', space=vmem, size = 0x400, scoped, tag = 'input window, operand 15, single buffered']
    #allocation21 [shape = 's32[1]{0}', space=sflag, size = 0x4, scoped, tag = 'scoped memory for tpu_custom_call.1']
    #allocation22 [shape = 'u8[512]{0}', space=vmem, size = 0x400, scoped, tag = 'input window, operand 17, single buffered']
    #allocation23 [shape = 'u8[4096]{0}', space=vmem, size = 0x1000, scoped, tag = 'output window, operand 0']
    %66 = vsyncpa [#allocation3], 0
    %s67 = scalar_lea.sflag [#allocation3], 1
    %68 = vsyncpa %s67, 0
    %69 = vsyncpa [#allocation6], 0
    %s70 = scalar_lea.sflag [#allocation6], 1
    %71 = vsyncpa %s70, 0
    %72 = vsyncpa [#allocation9], 0
    %73 = vsyncpa [#allocation12], 0
    %74 = vsyncpa [#allocation15], 0
    %75 = vsyncpa [#allocation18], 0
    %76 = vsyncpa [#allocation21], 0
    %77 = vsyncpa [#allocation4], 0
    %s78 = scalar_lea.sflag [#allocation4], 1
    %79 = vsyncpa %s78, 0
    loop: start=0, step=1, limit=4
    $region2: #{tpu_custom_call.1} parent=1 // loop_pre_header
      _
    $region3: #{tpu_custom_call.1} parent=1 // loop_header
      %s81 = sphi 0, %s85
      %p82 = scmp.ge.s32.totalorder %s81, 4
      %s88 = sphi 0, %s100
      %s89 = sphi 0, %s96
      %s90 = sphi 0, %s88
      %s91 = sphi 0, %s89
      %s92 = sphi 0, %s90
      %s93 = sphi 0, %s91
      %s103 = sphi 0, %s105
      %s106 = sphi 0, %s103
      %s107 = sphi 0, %s106
      %s123 = sphi 0, %s107
      %s129 = sphi 0, %s131
      %s132 = sphi 0, %s129
      %s133 = sphi 0, %s132
      %s149 = sphi 0, %s133
      %s155 = sphi 0, %s157
      %s158 = sphi 0, %s155
      %s159 = sphi 0, %s158
      %s175 = sphi 0, %s159
      %s181 = sphi 0, %s183
      %s184 = sphi 0, %s181
      %s185 = sphi 0, %s184
      %s201 = sphi 0, %s185
      %s205 = sphi 0, %s205
      %s207 = sphi 0, %s205
      %s208 = sphi 0, %s207
      %s222 = sphi 0, %s208
      %s226 = sphi 0, %s226
      %s228 = sphi 0, %s226
      %s229 = sphi 0, %s228
      %s243 = sphi 0, %s229
      %s247 = sphi 0, %s247
      %s249 = sphi 0, %s247
      %s250 = sphi 0, %s249
      %s264 = sphi 0, %s250
      %s268 = sphi 0, %s268
      %s270 = sphi 0, %s268
      %s271 = sphi 0, %s270
      %s285 = sphi 0, %s271
      %s289 = sphi 0, %s289
      %s291 = sphi 0, %s289
      %s292 = sphi 0, %s291
      %s306 = sphi 0, %s292
      %s310 = sphi 0, %s310
      %s312 = sphi 0, %s310
      %s313 = sphi 0, %s312
      %s327 = sphi 0, %s313
      %s331 = sphi 0, %s331
      %s333 = sphi 0, %s331
      %s334 = sphi 0, %s333
      %s348 = sphi 0, %s334
      %s352 = sphi 0, %s352
      %s354 = sphi 0, %s352
      %s355 = sphi 0, %s354
      %s369 = sphi 0, %s355
      %s373 = sphi 0, %s373
      %s375 = sphi 0, %s373
      %s376 = sphi 0, %s375
      %s390 = sphi 0, %s376
      %s394 = sphi 0, %s394
      %s396 = sphi 0, %s394
      %s397 = sphi 0, %s396
      %s411 = sphi 0, %s397
      %s415 = sphi 0, %s415
      %s417 = sphi 0, %s415
      %s418 = sphi 0, %s417
      %s432 = sphi 0, %s418
      %s436 = sphi 0, %s436
      %s438 = sphi 0, %s436
      %s439 = sphi 0, %s438
      %s453 = sphi 0, %s439
      %s457 = sphi 0, %s457
      %s459 = sphi 0, %s457
      %s460 = sphi 0, %s459
      %s474 = sphi 0, %s460
      %s478 = sphi 0, %s478
      %s480 = sphi 0, %s478
      %s481 = sphi 0, %s480
      %s495 = sphi 0, %s481
      %s499 = sphi 0, %s499
      %s501 = sphi 0, %s499
      %s502 = sphi 0, %s501
      %s516 = sphi 0, %s502
      %s520 = sphi 0, %s520
      %s522 = sphi 0, %s520
      %s523 = sphi 0, %s522
      %s537 = sphi 0, %s523
      %s541 = sphi 0, %s541
      %s543 = sphi 0, %s541
      %s544 = sphi 0, %s543
      %s558 = sphi 0, %s544
      %s562 = sphi 0, %s562
      %s564 = sphi 0, %s562
      %s565 = sphi 0, %s564
      %s579 = sphi 0, %s565
      %s583 = sphi 0, %s583
      %s585 = sphi 0, %s583
      %s586 = sphi 0, %s585
      %s600 = sphi 0, %s586
      %s604 = sphi 0, %s604
      %s606 = sphi 0, %s604
      %s607 = sphi 0, %s606
      %s621 = sphi 0, %s607
      %s625 = sphi 0, %s625
      %s627 = sphi 0, %s625
      %s628 = sphi 0, %s627
      %s642 = sphi 0, %s628
      %s646 = sphi 0, %s646
      %s648 = sphi 0, %s646
      %s649 = sphi 0, %s648
      %s663 = sphi 0, %s649
      %s667 = sphi 0, %s667
      %s669 = sphi 0, %s667
      %s670 = sphi 0, %s669
      %s684 = sphi 0, %s670
      %s688 = sphi 0, %s688
      %s690 = sphi 0, %s688
      %s691 = sphi 0, %s690
      %s705 = sphi 0, %s691
      %s709 = sphi 0, %s709
      %s711 = sphi 0, %s709
      %s712 = sphi 0, %s711
      %s726 = sphi 0, %s712
      %s730 = sphi 0, %s730
      %s732 = sphi 0, %s730
      %s733 = sphi 0, %s732
      %s747 = sphi 0, %s733
      %s755 = sphi 0, %s757
      %s758 = sphi 0, %s755
      %s759 = sphi 0, %s758
      %s775 = sphi 0, %s759
    $region4: #{tpu_custom_call.1} parent=1 // loop_header_branch
      %84 = sbr.rel (%p82) target = $region8
    $region5: #{tpu_custom_call.1} parent=1 // loop_body
      %s86 = ssub.s32 %s81, 1
      %s87 = ssub.s32 %s81, 2
      %s94 = sadd.s32 1, %s89
      %p95 = scmp.ge.s32.totalorder %s94, 1
      %s96 = scalar_select %p95, 0, %s94
      %s97 = sadd.s32 1, %s88
      %s98 = scalar_select %p95, %s97, %s88
      %p99 = scmp.ge.s32.totalorder %s98, 2
      %s100 = scalar_select %p99, 0, %s98
      %s101 = ssub.s32 %s88, %s100
      %p102 = scmp.eq.s32.totalorder %s101, 0
      %s104 = sadd.s32 %s103, 1
      %s105 = scalar_select %p102, %s103, %s104
      %p108 = pneg %p102
      %p109 = scmp.eq.s32.totalorder %s81, 1
      %p110 = por %p108, %p109
      %p111 = scmp.ne.s32.totalorder %s103, %s106
      %p112 = scmp.eq.s32.totalorder %s81, 0
      %p113 = por %p111, %p112
      %p114 = scmp.ne.s32.totalorder %s103, %s106
      %p115 = scmp.eq.s32.totalorder %s86, 1
      %p116 = por %p114, %p115
      %p117 = scmp.ne.s32.totalorder %s106, %s107
      %p118 = scmp.eq.s32.totalorder %s86, 0
      %p119 = por %p117, %p118
      %p120 = scmp.ne.s32.totalorder %s106, %s107
      %p121 = scmp.eq.s32.totalorder %s87, 1
      %p122 = por %p120, %p121
      %p124 = scmp.ne.s32.totalorder %s107, %s123
      %p125 = scmp.eq.s32.totalorder %s87, 0
      %p126 = por %p124, %p125
      %s127 = ssub.s32 %s88, %s100
      %p128 = scmp.eq.s32.totalorder %s127, 0
      %s130 = sadd.s32 %s129, 1
      %s131 = scalar_select %p128, %s129, %s130
      %p134 = pneg %p128
      %p135 = scmp.eq.s32.totalorder %s81, 1
      %p136 = por %p134, %p135
      %p137 = scmp.ne.s32.totalorder %s129, %s132
      %p138 = scmp.eq.s32.totalorder %s81, 0
      %p139 = por %p137, %p138
      %p140 = scmp.ne.s32.totalorder %s129, %s132
      %p141 = scmp.eq.s32.totalorder %s86, 1
      %p142 = por %p140, %p141
      %p143 = scmp.ne.s32.totalorder %s132, %s133
      %p144 = scmp.eq.s32.totalorder %s86, 0
      %p145 = por %p143, %p144
      %p146 = scmp.ne.s32.totalorder %s132, %s133
      %p147 = scmp.eq.s32.totalorder %s87, 1
      %p148 = por %p146, %p147
      %p150 = scmp.ne.s32.totalorder %s133, %s149
      %p151 = scmp.eq.s32.totalorder %s87, 0
      %p152 = por %p150, %p151
      %s153 = ssub.s32 %s88, %s100
      %p154 = scmp.eq.s32.totalorder %s153, 0
      %s156 = sadd.s32 %s155, 1
      %s157 = scalar_select %p154, %s155, %s156
      %p160 = pneg %p154
      %p161 = scmp.eq.s32.totalorder %s81, 1
      %p162 = por %p160, %p161
      %p163 = scmp.ne.s32.totalorder %s155, %s158
      %p164 = scmp.eq.s32.totalorder %s81, 0
      %p165 = por %p163, %p164
      %p166 = scmp.ne.s32.totalorder %s155, %s158
      %p167 = scmp.eq.s32.totalorder %s86, 1
      %p168 = por %p166, %p167
      %p169 = scmp.ne.s32.totalorder %s158, %s159
      %p170 = scmp.eq.s32.totalorder %s86, 0
      %p171 = por %p169, %p170
      %p172 = scmp.ne.s32.totalorder %s158, %s159
      %p173 = scmp.eq.s32.totalorder %s87, 1
      %p174 = por %p172, %p173
      %p176 = scmp.ne.s32.totalorder %s159, %s175
      %p177 = scmp.eq.s32.totalorder %s87, 0
      %p178 = por %p176, %p177
      %s179 = ssub.s32 %s88, %s100
      %p180 = scmp.eq.s32.totalorder %s179, 0
      %s182 = sadd.s32 %s181, 1
      %s183 = scalar_select %p180, %s181, %s182
      %p186 = pneg %p180
      %p187 = scmp.eq.s32.totalorder %s81, 1
      %p188 = por %p186, %p187
      %p189 = scmp.ne.s32.totalorder %s181, %s184
      %p190 = scmp.eq.s32.totalorder %s81, 0
      %p191 = por %p189, %p190
      %p192 = scmp.ne.s32.totalorder %s181, %s184
      %p193 = scmp.eq.s32.totalorder %s86, 1
      %p194 = por %p192, %p193
      %p195 = scmp.ne.s32.totalorder %s184, %s185
      %p196 = scmp.eq.s32.totalorder %s86, 0
      %p197 = por %p195, %p196
      %p198 = scmp.ne.s32.totalorder %s184, %s185
      %p199 = scmp.eq.s32.totalorder %s87, 1
      %p200 = por %p198, %p199
      %p202 = scmp.ne.s32.totalorder %s185, %s201
      %p203 = scmp.eq.s32.totalorder %s87, 0
      %p204 = por %p202, %p203
      %s206 = sadd.s32 %s205, 1
      %p209 = scmp.eq.s32.totalorder %s81, 1
      %p210 = scmp.ne.s32.totalorder %s205, %s207
      %p211 = scmp.eq.s32.totalorder %s81, 0
      %p212 = por %p210, %p211
      %p213 = scmp.ne.s32.totalorder %s205, %s207
      %p214 = scmp.eq.s32.totalorder %s86, 1
      %p215 = por %p213, %p214
      %p216 = scmp.ne.s32.totalorder %s207, %s208
      %p217 = scmp.eq.s32.totalorder %s86, 0
      %p218 = por %p216, %p217
      %p219 = scmp.ne.s32.totalorder %s207, %s208
      %p220 = scmp.eq.s32.totalorder %s87, 1
      %p221 = por %p219, %p220
      %p223 = scmp.ne.s32.totalorder %s208, %s222
      %p224 = scmp.eq.s32.totalorder %s87, 0
      %p225 = por %p223, %p224
      %s227 = sadd.s32 %s226, 1
      %p230 = scmp.eq.s32.totalorder %s81, 1
      %p231 = scmp.ne.s32.totalorder %s226, %s228
      %p232 = scmp.eq.s32.totalorder %s81, 0
      %p233 = por %p231, %p232
      %p234 = scmp.ne.s32.totalorder %s226, %s228
      %p235 = scmp.eq.s32.totalorder %s86, 1
      %p236 = por %p234, %p235
      %p237 = scmp.ne.s32.totalorder %s228, %s229
      %p238 = scmp.eq.s32.totalorder %s86, 0
      %p239 = por %p237, %p238
      %p240 = scmp.ne.s32.totalorder %s228, %s229
      %p241 = scmp.eq.s32.totalorder %s87, 1
      %p242 = por %p240, %p241
      %p244 = scmp.ne.s32.totalorder %s229, %s243
      %p245 = scmp.eq.s32.totalorder %s87, 0
      %p246 = por %p244, %p245
      %s248 = sadd.s32 %s247, 1
      %p251 = scmp.eq.s32.totalorder %s81, 1
      %p252 = scmp.ne.s32.totalorder %s247, %s249
      %p253 = scmp.eq.s32.totalorder %s81, 0
      %p254 = por %p252, %p253
      %p255 = scmp.ne.s32.totalorder %s247, %s249
      %p256 = scmp.eq.s32.totalorder %s86, 1
      %p257 = por %p255, %p256
      %p258 = scmp.ne.s32.totalorder %s249, %s250
      %p259 = scmp.eq.s32.totalorder %s86, 0
      %p260 = por %p258, %p259
      %p261 = scmp.ne.s32.totalorder %s249, %s250
      %p262 = scmp.eq.s32.totalorder %s87, 1
      %p263 = por %p261, %p262
      %p265 = scmp.ne.s32.totalorder %s250, %s264
      %p266 = scmp.eq.s32.totalorder %s87, 0
      %p267 = por %p265, %p266
      %s269 = sadd.s32 %s268, 1
      %p272 = scmp.eq.s32.totalorder %s81, 1
      %p273 = scmp.ne.s32.totalorder %s268, %s270
      %p274 = scmp.eq.s32.totalorder %s81, 0
      %p275 = por %p273, %p274
      %p276 = scmp.ne.s32.totalorder %s268, %s270
      %p277 = scmp.eq.s32.totalorder %s86, 1
      %p278 = por %p276, %p277
      %p279 = scmp.ne.s32.totalorder %s270, %s271
      %p280 = scmp.eq.s32.totalorder %s86, 0
      %p281 = por %p279, %p280
      %p282 = scmp.ne.s32.totalorder %s270, %s271
      %p283 = scmp.eq.s32.totalorder %s87, 1
      %p284 = por %p282, %p283
      %p286 = scmp.ne.s32.totalorder %s271, %s285
      %p287 = scmp.eq.s32.totalorder %s87, 0
      %p288 = por %p286, %p287
      %s290 = sadd.s32 %s289, 1
      %p293 = scmp.eq.s32.totalorder %s81, 1
      %p294 = scmp.ne.s32.totalorder %s289, %s291
      %p295 = scmp.eq.s32.totalorder %s81, 0
      %p296 = por %p294, %p295
      %p297 = scmp.ne.s32.totalorder %s289, %s291
      %p298 = scmp.eq.s32.totalorder %s86, 1
      %p299 = por %p297, %p298
      %p300 = scmp.ne.s32.totalorder %s291, %s292
      %p301 = scmp.eq.s32.totalorder %s86, 0
      %p302 = por %p300, %p301
      %p303 = scmp.ne.s32.totalorder %s291, %s292
      %p304 = scmp.eq.s32.totalorder %s87, 1
      %p305 = por %p303, %p304
      %p307 = scmp.ne.s32.totalorder %s292, %s306
      %p308 = scmp.eq.s32.totalorder %s87, 0
      %p309 = por %p307, %p308
      %s311 = sadd.s32 %s310, 1
      %p314 = scmp.eq.s32.totalorder %s81, 1
      %p315 = scmp.ne.s32.totalorder %s310, %s312
      %p316 = scmp.eq.s32.totalorder %s81, 0
      %p317 = por %p315, %p316
      %p318 = scmp.ne.s32.totalorder %s310, %s312
      %p319 = scmp.eq.s32.totalorder %s86, 1
      %p320 = por %p318, %p319
      %p321 = scmp.ne.s32.totalorder %s312, %s313
      %p322 = scmp.eq.s32.totalorder %s86, 0
      %p323 = por %p321, %p322
      %p324 = scmp.ne.s32.totalorder %s312, %s313
      %p325 = scmp.eq.s32.totalorder %s87, 1
      %p326 = por %p324, %p325
      %p328 = scmp.ne.s32.totalorder %s313, %s327
      %p329 = scmp.eq.s32.totalorder %s87, 0
      %p330 = por %p328, %p329
      %s332 = sadd.s32 %s331, 1
      %p335 = scmp.eq.s32.totalorder %s81, 1
      %p336 = scmp.ne.s32.totalorder %s331, %s333
      %p337 = scmp.eq.s32.totalorder %s81, 0
      %p338 = por %p336, %p337
      %p339 = scmp.ne.s32.totalorder %s331, %s333
      %p340 = scmp.eq.s32.totalorder %s86, 1
      %p341 = por %p339, %p340
      %p342 = scmp.ne.s32.totalorder %s333, %s334
      %p343 = scmp.eq.s32.totalorder %s86, 0
      %p344 = por %p342, %p343
      %p345 = scmp.ne.s32.totalorder %s333, %s334
      %p346 = scmp.eq.s32.totalorder %s87, 1
      %p347 = por %p345, %p346
      %p349 = scmp.ne.s32.totalorder %s334, %s348
      %p350 = scmp.eq.s32.totalorder %s87, 0
      %p351 = por %p349, %p350
      %s353 = sadd.s32 %s352, 1
      %p356 = scmp.eq.s32.totalorder %s81, 1
      %p357 = scmp.ne.s32.totalorder %s352, %s354
      %p358 = scmp.eq.s32.totalorder %s81, 0
      %p359 = por %p357, %p358
      %p360 = scmp.ne.s32.totalorder %s352, %s354
      %p361 = scmp.eq.s32.totalorder %s86, 1
      %p362 = por %p360, %p361
      %p363 = scmp.ne.s32.totalorder %s354, %s355
      %p364 = scmp.eq.s32.totalorder %s86, 0
      %p365 = por %p363, %p364
      %p366 = scmp.ne.s32.totalorder %s354, %s355
      %p367 = scmp.eq.s32.totalorder %s87, 1
      %p368 = por %p366, %p367
      %p370 = scmp.ne.s32.totalorder %s355, %s369
      %p371 = scmp.eq.s32.totalorder %s87, 0
      %p372 = por %p370, %p371
      %s374 = sadd.s32 %s373, 1
      %p377 = scmp.eq.s32.totalorder %s81, 1
      %p378 = scmp.ne.s32.totalorder %s373, %s375
      %p379 = scmp.eq.s32.totalorder %s81, 0
      %p380 = por %p378, %p379
      %p381 = scmp.ne.s32.totalorder %s373, %s375
      %p382 = scmp.eq.s32.totalorder %s86, 1
      %p383 = por %p381, %p382
      %p384 = scmp.ne.s32.totalorder %s375, %s376
      %p385 = scmp.eq.s32.totalorder %s86, 0
      %p386 = por %p384, %p385
      %p387 = scmp.ne.s32.totalorder %s375, %s376
      %p388 = scmp.eq.s32.totalorder %s87, 1
      %p389 = por %p387, %p388
      %p391 = scmp.ne.s32.totalorder %s376, %s390
      %p392 = scmp.eq.s32.totalorder %s87, 0
      %p393 = por %p391, %p392
      %s395 = sadd.s32 %s394, 1
      %p398 = scmp.eq.s32.totalorder %s81, 1
      %p399 = scmp.ne.s32.totalorder %s394, %s396
      %p400 = scmp.eq.s32.totalorder %s81, 0
      %p401 = por %p399, %p400
      %p402 = scmp.ne.s32.totalorder %s394, %s396
      %p403 = scmp.eq.s32.totalorder %s86, 1
      %p404 = por %p402, %p403
      %p405 = scmp.ne.s32.totalorder %s396, %s397
      %p406 = scmp.eq.s32.totalorder %s86, 0
      %p407 = por %p405, %p406
      %p408 = scmp.ne.s32.totalorder %s396, %s397
      %p409 = scmp.eq.s32.totalorder %s87, 1
      %p410 = por %p408, %p409
      %p412 = scmp.ne.s32.totalorder %s397, %s411
      %p413 = scmp.eq.s32.totalorder %s87, 0
      %p414 = por %p412, %p413
      %s416 = sadd.s32 %s415, 1
      %p419 = scmp.eq.s32.totalorder %s81, 1
      %p420 = scmp.ne.s32.totalorder %s415, %s417
      %p421 = scmp.eq.s32.totalorder %s81, 0
      %p422 = por %p420, %p421
      %p423 = scmp.ne.s32.totalorder %s415, %s417
      %p424 = scmp.eq.s32.totalorder %s86, 1
      %p425 = por %p423, %p424
      %p426 = scmp.ne.s32.totalorder %s417, %s418
      %p427 = scmp.eq.s32.totalorder %s86, 0
      %p428 = por %p426, %p427
      %p429 = scmp.ne.s32.totalorder %s417, %s418
      %p430 = scmp.eq.s32.totalorder %s87, 1
      %p431 = por %p429, %p430
      %p433 = scmp.ne.s32.totalorder %s418, %s432
      %p434 = scmp.eq.s32.totalorder %s87, 0
      %p435 = por %p433, %p434
      %s437 = sadd.s32 %s436, 1
      %p440 = scmp.eq.s32.totalorder %s81, 1
      %p441 = scmp.ne.s32.totalorder %s436, %s438
      %p442 = scmp.eq.s32.totalorder %s81, 0
      %p443 = por %p441, %p442
      %p444 = scmp.ne.s32.totalorder %s436, %s438
      %p445 = scmp.eq.s32.totalorder %s86, 1
      %p446 = por %p444, %p445
      %p447 = scmp.ne.s32.totalorder %s438, %s439
      %p448 = scmp.eq.s32.totalorder %s86, 0
      %p449 = por %p447, %p448
      %p450 = scmp.ne.s32.totalorder %s438, %s439
      %p451 = scmp.eq.s32.totalorder %s87, 1
      %p452 = por %p450, %p451
      %p454 = scmp.ne.s32.totalorder %s439, %s453
      %p455 = scmp.eq.s32.totalorder %s87, 0
      %p456 = por %p454, %p455
      %s458 = sadd.s32 %s457, 1
      %p461 = scmp.eq.s32.totalorder %s81, 1
      %p462 = scmp.ne.s32.totalorder %s457, %s459
      %p463 = scmp.eq.s32.totalorder %s81, 0
      %p464 = por %p462, %p463
      %p465 = scmp.ne.s32.totalorder %s457, %s459
      %p466 = scmp.eq.s32.totalorder %s86, 1
      %p467 = por %p465, %p466
      %p468 = scmp.ne.s32.totalorder %s459, %s460
      %p469 = scmp.eq.s32.totalorder %s86, 0
      %p470 = por %p468, %p469
      %p471 = scmp.ne.s32.totalorder %s459, %s460
      %p472 = scmp.eq.s32.totalorder %s87, 1
      %p473 = por %p471, %p472
      %p475 = scmp.ne.s32.totalorder %s460, %s474
      %p476 = scmp.eq.s32.totalorder %s87, 0
      %p477 = por %p475, %p476
      %s479 = sadd.s32 %s478, 1
      %p482 = scmp.eq.s32.totalorder %s81, 1
      %p483 = scmp.ne.s32.totalorder %s478, %s480
      %p484 = scmp.eq.s32.totalorder %s81, 0
      %p485 = por %p483, %p484
      %p486 = scmp.ne.s32.totalorder %s478, %s480
      %p487 = scmp.eq.s32.totalorder %s86, 1
      %p488 = por %p486, %p487
      %p489 = scmp.ne.s32.totalorder %s480, %s481
      %p490 = scmp.eq.s32.totalorder %s86, 0
      %p491 = por %p489, %p490
      %p492 = scmp.ne.s32.totalorder %s480, %s481
      %p493 = scmp.eq.s32.totalorder %s87, 1
      %p494 = por %p492, %p493
      %p496 = scmp.ne.s32.totalorder %s481, %s495
      %p497 = scmp.eq.s32.totalorder %s87, 0
      %p498 = por %p496, %p497
      %s500 = sadd.s32 %s499, 1
      %p503 = scmp.eq.s32.totalorder %s81, 1
      %p504 = scmp.ne.s32.totalorder %s499, %s501
      %p505 = scmp.eq.s32.totalorder %s81, 0
      %p506 = por %p504, %p505
      %p507 = scmp.ne.s32.totalorder %s499, %s501
      %p508 = scmp.eq.s32.totalorder %s86, 1
      %p509 = por %p507, %p508
      %p510 = scmp.ne.s32.totalorder %s501, %s502
      %p511 = scmp.eq.s32.totalorder %s86, 0
      %p512 = por %p510, %p511
      %p513 = scmp.ne.s32.totalorder %s501, %s502
      %p514 = scmp.eq.s32.totalorder %s87, 1
      %p515 = por %p513, %p514
      %p517 = scmp.ne.s32.totalorder %s502, %s516
      %p518 = scmp.eq.s32.totalorder %s87, 0
      %p519 = por %p517, %p518
      %s521 = sadd.s32 %s520, 1
      %p524 = scmp.eq.s32.totalorder %s81, 1
      %p525 = scmp.ne.s32.totalorder %s520, %s522
      %p526 = scmp.eq.s32.totalorder %s81, 0
      %p527 = por %p525, %p526
      %p528 = scmp.ne.s32.totalorder %s520, %s522
      %p529 = scmp.eq.s32.totalorder %s86, 1
      %p530 = por %p528, %p529
      %p531 = scmp.ne.s32.totalorder %s522, %s523
      %p532 = scmp.eq.s32.totalorder %s86, 0
      %p533 = por %p531, %p532
      %p534 = scmp.ne.s32.totalorder %s522, %s523
      %p535 = scmp.eq.s32.totalorder %s87, 1
      %p536 = por %p534, %p535
      %p538 = scmp.ne.s32.totalorder %s523, %s537
      %p539 = scmp.eq.s32.totalorder %s87, 0
      %p540 = por %p538, %p539
      %s542 = sadd.s32 %s541, 1
      %p545 = scmp.eq.s32.totalorder %s81, 1
      %p546 = scmp.ne.s32.totalorder %s541, %s543
      %p547 = scmp.eq.s32.totalorder %s81, 0
      %p548 = por %p546, %p547
      %p549 = scmp.ne.s32.totalorder %s541, %s543
      %p550 = scmp.eq.s32.totalorder %s86, 1
      %p551 = por %p549, %p550
      %p552 = scmp.ne.s32.totalorder %s543, %s544
      %p553 = scmp.eq.s32.totalorder %s86, 0
      %p554 = por %p552, %p553
      %p555 = scmp.ne.s32.totalorder %s543, %s544
      %p556 = scmp.eq.s32.totalorder %s87, 1
      %p557 = por %p555, %p556
      %p559 = scmp.ne.s32.totalorder %s544, %s558
      %p560 = scmp.eq.s32.totalorder %s87, 0
      %p561 = por %p559, %p560
      %s563 = sadd.s32 %s562, 1
      %p566 = scmp.eq.s32.totalorder %s81, 1
      %p567 = scmp.ne.s32.totalorder %s562, %s564
      %p568 = scmp.eq.s32.totalorder %s81, 0
      %p569 = por %p567, %p568
      %p570 = scmp.ne.s32.totalorder %s562, %s564
      %p571 = scmp.eq.s32.totalorder %s86, 1
      %p572 = por %p570, %p571
      %p573 = scmp.ne.s32.totalorder %s564, %s565
      %p574 = scmp.eq.s32.totalorder %s86, 0
      %p575 = por %p573, %p574
      %p576 = scmp.ne.s32.totalorder %s564, %s565
      %p577 = scmp.eq.s32.totalorder %s87, 1
      %p578 = por %p576, %p577
      %p580 = scmp.ne.s32.totalorder %s565, %s579
      %p581 = scmp.eq.s32.totalorder %s87, 0
      %p582 = por %p580, %p581
      %s584 = sadd.s32 %s583, 1
      %p587 = scmp.eq.s32.totalorder %s81, 1
      %p588 = scmp.ne.s32.totalorder %s583, %s585
      %p589 = scmp.eq.s32.totalorder %s81, 0
      %p590 = por %p588, %p589
      %p591 = scmp.ne.s32.totalorder %s583, %s585
      %p592 = scmp.eq.s32.totalorder %s86, 1
      %p593 = por %p591, %p592
      %p594 = scmp.ne.s32.totalorder %s585, %s586
      %p595 = scmp.eq.s32.totalorder %s86, 0
      %p596 = por %p594, %p595
      %p597 = scmp.ne.s32.totalorder %s585, %s586
      %p598 = scmp.eq.s32.totalorder %s87, 1
      %p599 = por %p597, %p598
      %p601 = scmp.ne.s32.totalorder %s586, %s600
      %p602 = scmp.eq.s32.totalorder %s87, 0
      %p603 = por %p601, %p602
      %s605 = sadd.s32 %s604, 1
      %p608 = scmp.eq.s32.totalorder %s81, 1
      %p609 = scmp.ne.s32.totalorder %s604, %s606
      %p610 = scmp.eq.s32.totalorder %s81, 0
      %p611 = por %p609, %p610
      %p612 = scmp.ne.s32.totalorder %s604, %s606
      %p613 = scmp.eq.s32.totalorder %s86, 1
      %p614 = por %p612, %p613
      %p615 = scmp.ne.s32.totalorder %s606, %s607
      %p616 = scmp.eq.s32.totalorder %s86, 0
      %p617 = por %p615, %p616
      %p618 = scmp.ne.s32.totalorder %s606, %s607
      %p619 = scmp.eq.s32.totalorder %s87, 1
      %p620 = por %p618, %p619
      %p622 = scmp.ne.s32.totalorder %s607, %s621
      %p623 = scmp.eq.s32.totalorder %s87, 0
      %p624 = por %p622, %p623
      %s626 = sadd.s32 %s625, 1
      %p629 = scmp.eq.s32.totalorder %s81, 1
      %p630 = scmp.ne.s32.totalorder %s625, %s627
      %p631 = scmp.eq.s32.totalorder %s81, 0
      %p632 = por %p630, %p631
      %p633 = scmp.ne.s32.totalorder %s625, %s627
      %p634 = scmp.eq.s32.totalorder %s86, 1
      %p635 = por %p633, %p634
      %p636 = scmp.ne.s32.totalorder %s627, %s628
      %p637 = scmp.eq.s32.totalorder %s86, 0
      %p638 = por %p636, %p637
      %p639 = scmp.ne.s32.totalorder %s627, %s628
      %p640 = scmp.eq.s32.totalorder %s87, 1
      %p641 = por %p639, %p640
      %p643 = scmp.ne.s32.totalorder %s628, %s642
      %p644 = scmp.eq.s32.totalorder %s87, 0
      %p645 = por %p643, %p644
      %s647 = sadd.s32 %s646, 1
      %p650 = scmp.eq.s32.totalorder %s81, 1
      %p651 = scmp.ne.s32.totalorder %s646, %s648
      %p652 = scmp.eq.s32.totalorder %s81, 0
      %p653 = por %p651, %p652
      %p654 = scmp.ne.s32.totalorder %s646, %s648
      %p655 = scmp.eq.s32.totalorder %s86, 1
      %p656 = por %p654, %p655
      %p657 = scmp.ne.s32.totalorder %s648, %s649
      %p658 = scmp.eq.s32.totalorder %s86, 0
      %p659 = por %p657, %p658
      %p660 = scmp.ne.s32.totalorder %s648, %s649
      %p661 = scmp.eq.s32.totalorder %s87, 1
      %p662 = por %p660, %p661
      %p664 = scmp.ne.s32.totalorder %s649, %s663
      %p665 = scmp.eq.s32.totalorder %s87, 0
      %p666 = por %p664, %p665
      %s668 = sadd.s32 %s667, 1
      %p671 = scmp.eq.s32.totalorder %s81, 1
      %p672 = scmp.ne.s32.totalorder %s667, %s669
      %p673 = scmp.eq.s32.totalorder %s81, 0
      %p674 = por %p672, %p673
      %p675 = scmp.ne.s32.totalorder %s667, %s669
      %p676 = scmp.eq.s32.totalorder %s86, 1
      %p677 = por %p675, %p676
      %p678 = scmp.ne.s32.totalorder %s669, %s670
      %p679 = scmp.eq.s32.totalorder %s86, 0
      %p680 = por %p678, %p679
      %p681 = scmp.ne.s32.totalorder %s669, %s670
      %p682 = scmp.eq.s32.totalorder %s87, 1
      %p683 = por %p681, %p682
      %p685 = scmp.ne.s32.totalorder %s670, %s684
      %p686 = scmp.eq.s32.totalorder %s87, 0
      %p687 = por %p685, %p686
      %s689 = sadd.s32 %s688, 1
      %p692 = scmp.eq.s32.totalorder %s81, 1
      %p693 = scmp.ne.s32.totalorder %s688, %s690
      %p694 = scmp.eq.s32.totalorder %s81, 0
      %p695 = por %p693, %p694
      %p696 = scmp.ne.s32.totalorder %s688, %s690
      %p697 = scmp.eq.s32.totalorder %s86, 1
      %p698 = por %p696, %p697
      %p699 = scmp.ne.s32.totalorder %s690, %s691
      %p700 = scmp.eq.s32.totalorder %s86, 0
      %p701 = por %p699, %p700
      %p702 = scmp.ne.s32.totalorder %s690, %s691
      %p703 = scmp.eq.s32.totalorder %s87, 1
      %p704 = por %p702, %p703
      %p706 = scmp.ne.s32.totalorder %s691, %s705
      %p707 = scmp.eq.s32.totalorder %s87, 0
      %p708 = por %p706, %p707
      %s710 = sadd.s32 %s709, 1
      %p713 = scmp.eq.s32.totalorder %s81, 1
      %p714 = scmp.ne.s32.totalorder %s709, %s711
      %p715 = scmp.eq.s32.totalorder %s81, 0
      %p716 = por %p714, %p715
      %p717 = scmp.ne.s32.totalorder %s709, %s711
      %p718 = scmp.eq.s32.totalorder %s86, 1
      %p719 = por %p717, %p718
      %p720 = scmp.ne.s32.totalorder %s711, %s712
      %p721 = scmp.eq.s32.totalorder %s86, 0
      %p722 = por %p720, %p721
      %p723 = scmp.ne.s32.totalorder %s711, %s712
      %p724 = scmp.eq.s32.totalorder %s87, 1
      %p725 = por %p723, %p724
      %p727 = scmp.ne.s32.totalorder %s712, %s726
      %p728 = scmp.eq.s32.totalorder %s87, 0
      %p729 = por %p727, %p728
      %s731 = sadd.s32 %s730, 1
      %p734 = scmp.eq.s32.totalorder %s81, 1
      %p735 = scmp.ne.s32.totalorder %s730, %s732
      %p736 = scmp.eq.s32.totalorder %s81, 0
      %p737 = por %p735, %p736
      %p738 = scmp.ne.s32.totalorder %s730, %s732
      %p739 = scmp.eq.s32.totalorder %s86, 1
      %p740 = por %p738, %p739
      %p741 = scmp.ne.s32.totalorder %s732, %s733
      %p742 = scmp.eq.s32.totalorder %s86, 0
      %p743 = por %p741, %p742
      %p744 = scmp.ne.s32.totalorder %s732, %s733
      %p745 = scmp.eq.s32.totalorder %s87, 1
      %p746 = por %p744, %p745
      %p748 = scmp.ne.s32.totalorder %s733, %s747
      %p749 = scmp.eq.s32.totalorder %s87, 0
      %p750 = por %p748, %p749
      %s751 = ssub.s32 %s88, %s100
      %s752 = ssub.s32 %s89, %s96
      %s753 = sor.u32 %s751, %s752
      %p754 = scmp.eq.s32.totalorder %s753, 0
      %s756 = sadd.s32 %s755, 1
      %s757 = scalar_select %p754, %s755, %s756
      %p760 = pneg %p754
      %p761 = scmp.eq.s32.totalorder %s81, 1
      %p762 = por %p760, %p761
      %p763 = scmp.ne.s32.totalorder %s755, %s758
      %p764 = scmp.eq.s32.totalorder %s81, 0
      %p765 = por %p763, %p764
      %p766 = scmp.ne.s32.totalorder %s755, %s758
      %p767 = scmp.eq.s32.totalorder %s86, 1
      %p768 = por %p766, %p767
      %p769 = scmp.ne.s32.totalorder %s758, %s759
      %p770 = scmp.eq.s32.totalorder %s86, 0
      %p771 = por %p769, %p770
      %p772 = scmp.ne.s32.totalorder %s758, %s759
      %p773 = scmp.eq.s32.totalorder %s87, 1
      %p774 = por %p772, %p773
      %p776 = scmp.ne.s32.totalorder %s759, %s775
      %p777 = scmp.eq.s32.totalorder %s87, 0
      %p778 = por %p776, %p777
      %p779 = scmp.le.s32.totalorder 1, %s81
      %p780 = scmp.lt.s32.totalorder %s81, 3
      %p781 = pnand %p779, %p780
      %p782 = pneg %p781
      // Predicated region
      $region9: #{tpu_custom_call.1} parent=5 // pred_check
        _
      $region10: #{tpu_custom_call.1} parent=5 // pred_check_branch
        %784 = sbr.rel (%p781) target = $region12
      $region11: #{tpu_custom_call.1} parent=5 // pred_region
        %s785 = ssub.s32 %s81, 1
        // Predicated region
        $region13: #{tpu_custom_call.1} parent=11 // pred_check
          %p786 = pneg %p218
        $region14: #{tpu_custom_call.1} parent=11 // pred_check_branch
          %788 = sbr.rel (%p786) target = $region16
        $region15: #{tpu_custom_call.1} parent=11 // pred_region
          %s790 = ssub.s32 16, 16
          %791 = vsyncadd [#allocation9], %s790
          %s793 = sshll.u32 [#allocation8], 4
          %s794 = int_to_ptr.vmem [resolvable:$true] %s793
          %796 = dma.hbm_to_vmem [thread:$0]  %s9, 16, %s794, [#allocation9]
        $region16: #{tpu_custom_call.1} parent=11 // pred_fallthru
          _
        // Predicated region
        $region17: #{tpu_custom_call.1} parent=11 // pred_check
          %p797 = pneg %p239
        $region18: #{tpu_custom_call.1} parent=11 // pred_check_branch
          %799 = sbr.rel (%p797) target = $region20
        $region19: #{tpu_custom_call.1} parent=11 // pred_region
          %s801 = ssub.s32 16, 16
          %802 = vsyncadd [#allocation9], %s801
          %s804 = sshll.u32 [#allocation10], 4
          %s805 = int_to_ptr.vmem [resolvable:$true] %s804
          %807 = dma.hbm_to_vmem [thread:$0]  %s11, 16, %s805, [#allocation9]
        $region20: #{tpu_custom_call.1} parent=11 // pred_fallthru
          _
        // Predicated region
        $region21: #{tpu_custom_call.1} parent=11 // pred_check
          %p808 = pneg %p260
        $region22: #{tpu_custom_call.1} parent=11 // pred_check_branch
          %810 = sbr.rel (%p808) target = $region24
        $region23: #{tpu_custom_call.1} parent=11 // pred_region
          %s812 = ssub.s32 16, 16
          %813 = vsyncadd [#allocation12], %s812
          %s815 = sshll.u32 [#allocation11], 4
          %s816 = int_to_ptr.vmem [resolvable:$true] %s815
          %818 = dma.hbm_to_vmem [thread:$0]  %s13, 16, %s816, [#allocation12]
        $region24: #{tpu_custom_call.1} parent=11 // pred_fallthru
          _
        // Predicated region
        $region25: #{tpu_custom_call.1} parent=11 // pred_check
          %p819 = pneg %p281
        $region26: #{tpu_custom_call.1} parent=11 // pred_check_branch
          %821 = sbr.rel (%p819) target = $region28
        $region27: #{tpu_custom_call.1} parent=11 // pred_region
          %s823 = ssub.s32 16, 16
          %824 = vsyncadd [#allocation12], %s823
          %s826 = sshll.u32 [#allocation13], 4
          %s827 = int_to_ptr.vmem [resolvable:$true] %s826
          %829 = dma.hbm_to_vmem [thread:$0]  %s15, 16, %s827, [#allocation12]
        $region28: #{tpu_custom_call.1} parent=11 // pred_fallthru
          _
        // Predicated region
        $region29: #{tpu_custom_call.1} parent=11 // pred_check
          %p830 = pneg %p302
        $region30: #{tpu_custom_call.1} parent=11 // pred_check_branch
          %832 = sbr.rel (%p830) target = $region32
        $region31: #{tpu_custom_call.1} parent=11 // pred_region
          %s834 = ssub.s32 16, 16
          %835 = vsyncadd [#allocation15], %s834
          %s837 = sshll.u32 [#allocation14], 4
          %s838 = int_to_ptr.vmem [resolvable:$true] %s837
          %840 = dma.hbm_to_vmem [thread:$0]  %s17, 16, %s838, [#allocation15]
        $region32: #{tpu_custom_call.1} parent=11 // pred_fallthru
          _
        // Predicated region
        $region33: #{tpu_custom_call.1} parent=11 // pred_check
          %p841 = pneg %p323
        $region34: #{tpu_custom_call.1} parent=11 // pred_check_branch
          %843 = sbr.rel (%p841) target = $region36
        $region35: #{tpu_custom_call.1} parent=11 // pred_region
          %s845 = ssub.s32 16, 16
          %846 = vsyncadd [#allocation15], %s845
          %s848 = sshll.u32 [#allocation16], 4
          %s849 = int_to_ptr.vmem [resolvable:$true] %s848
          %851 = dma.hbm_to_vmem [thread:$0]  %s19, 16, %s849, [#allocation15]
        $region36: #{tpu_custom_call.1} parent=11 // pred_fallthru
          _
        // Predicated region
        $region37: #{tpu_custom_call.1} parent=11 // pred_check
          %p852 = pneg %p344
        $region38: #{tpu_custom_call.1} parent=11 // pred_check_branch
          %854 = sbr.rel (%p852) target = $region40
        $region39: #{tpu_custom_call.1} parent=11 // pred_region
          _
        $region40: #{tpu_custom_call.1} parent=11 // pred_fallthru
          _
        // Predicated region
        $region41: #{tpu_custom_call.1} parent=11 // pred_check
          %p855 = pneg %p365
        $region42: #{tpu_custom_call.1} parent=11 // pred_check_branch
          %857 = sbr.rel (%p855) target = $region44
        $region43: #{tpu_custom_call.1} parent=11 // pred_region
          %s859 = ssub.s32 16, 16
          %860 = vsyncadd [#allocation18], %s859
          %s862 = sshll.u32 [#allocation17], 4
          %s863 = int_to_ptr.vmem [resolvable:$true] %s862
          %865 = dma.hbm_to_vmem [thread:$0]  %s23, 16, %s863, [#allocation18]
        $region44: #{tpu_custom_call.1} parent=11 // pred_fallthru
          _
        // Predicated region
        $region45: #{tpu_custom_call.1} parent=11 // pred_check
          %p866 = pneg %p386
        $region46: #{tpu_custom_call.1} parent=11 // pred_check_branch
          %868 = sbr.rel (%p866) target = $region48
        $region47: #{tpu_custom_call.1} parent=11 // pred_region
          _
        $region48: #{tpu_custom_call.1} parent=11 // pred_fallthru
          _
        // Predicated region
        $region49: #{tpu_custom_call.1} parent=11 // pred_check
          %p869 = pneg %p407
        $region50: #{tpu_custom_call.1} parent=11 // pred_check_branch
          %871 = sbr.rel (%p869) target = $region52
        $region51: #{tpu_custom_call.1} parent=11 // pred_region
          %s873 = ssub.s32 16, 16
          %874 = vsyncadd [#allocation18], %s873
          %s876 = sshll.u32 [#allocation19], 4
          %s877 = int_to_ptr.vmem [resolvable:$true] %s876
          %879 = dma.hbm_to_vmem [thread:$0]  %s27, 16, %s877, [#allocation18]
        $region52: #{tpu_custom_call.1} parent=11 // pred_fallthru
          _
        // Predicated region
        $region53: #{tpu_custom_call.1} parent=11 // pred_check
          %p880 = pneg %p428
        $region54: #{tpu_custom_call.1} parent=11 // pred_check_branch
          %882 = sbr.rel (%p880) target = $region56
        $region55: #{tpu_custom_call.1} parent=11 // pred_region
          _
        $region56: #{tpu_custom_call.1} parent=11 // pred_fallthru
          _
        // Predicated region
        $region57: #{tpu_custom_call.1} parent=11 // pred_check
          %p883 = pneg %p449
        $region58: #{tpu_custom_call.1} parent=11 // pred_check_branch
          %885 = sbr.rel (%p883) target = $region60
        $region59: #{tpu_custom_call.1} parent=11 // pred_region
          %s887 = ssub.s32 16, 16
          %888 = vsyncadd [#allocation21], %s887
          %s890 = sshll.u32 [#allocation20], 4
          %s891 = int_to_ptr.vmem [resolvable:$true] %s890
          %893 = dma.hbm_to_vmem [thread:$0]  %s31, 16, %s891, [#allocation21]
        $region60: #{tpu_custom_call.1} parent=11 // pred_fallthru
          _
        // Predicated region
        $region61: #{tpu_custom_call.1} parent=11 // pred_check
          %p894 = pneg %p470
        $region62: #{tpu_custom_call.1} parent=11 // pred_check_branch
          %896 = sbr.rel (%p894) target = $region64
        $region63: #{tpu_custom_call.1} parent=11 // pred_region
          _
        $region64: #{tpu_custom_call.1} parent=11 // pred_fallthru
          _
        // Predicated region
        $region65: #{tpu_custom_call.1} parent=11 // pred_check
          %p897 = pneg %p491
        $region66: #{tpu_custom_call.1} parent=11 // pred_check_branch
          %899 = sbr.rel (%p897) target = $region68
        $region67: #{tpu_custom_call.1} parent=11 // pred_region
          %s901 = ssub.s32 16, 16
          %902 = vsyncadd [#allocation21], %s901
          %s904 = sshll.u32 [#allocation22], 4
          %s905 = int_to_ptr.vmem [resolvable:$true] %s904
          %907 = dma.hbm_to_vmem [thread:$0]  %s35, 16, %s905, [#allocation21]
        $region68: #{tpu_custom_call.1} parent=11 // pred_fallthru
          _
        // Predicated region
        $region69: #{tpu_custom_call.1} parent=11 // pred_check
          %p908 = pneg %p512
        $region70: #{tpu_custom_call.1} parent=11 // pred_check_branch
          %910 = sbr.rel (%p908) target = $region72
        $region71: #{tpu_custom_call.1} parent=11 // pred_region
          _
        $region72: #{tpu_custom_call.1} parent=11 // pred_fallthru
          _
        // Predicated region
        $region73: #{tpu_custom_call.1} parent=11 // pred_check
          %p911 = pneg %p533
        $region74: #{tpu_custom_call.1} parent=11 // pred_check_branch
          %913 = sbr.rel (%p911) target = $region76
        $region75: #{tpu_custom_call.1} parent=11 // pred_region
          _
        $region76: #{tpu_custom_call.1} parent=11 // pred_fallthru
          _
        // Predicated region
        $region77: #{tpu_custom_call.1} parent=11 // pred_check
          %p914 = pneg %p554
        $region78: #{tpu_custom_call.1} parent=11 // pred_check_branch
          %916 = sbr.rel (%p914) target = $region80
        $region79: #{tpu_custom_call.1} parent=11 // pred_region
          _
        $region80: #{tpu_custom_call.1} parent=11 // pred_fallthru
          _
        // Predicated region
        $region81: #{tpu_custom_call.1} parent=11 // pred_check
          %p917 = pneg %p575
        $region82: #{tpu_custom_call.1} parent=11 // pred_check_branch
          %919 = sbr.rel (%p917) target = $region84
        $region83: #{tpu_custom_call.1} parent=11 // pred_region
          _
        $region84: #{tpu_custom_call.1} parent=11 // pred_fallthru
          _
        // Predicated region
        $region85: #{tpu_custom_call.1} parent=11 // pred_check
          %p920 = pneg %p596
        $region86: #{tpu_custom_call.1} parent=11 // pred_check_branch
          %922 = sbr.rel (%p920) target = $region88
        $region87: #{tpu_custom_call.1} parent=11 // pred_region
          _
        $region88: #{tpu_custom_call.1} parent=11 // pred_fallthru
          _
        // Predicated region
        $region89: #{tpu_custom_call.1} parent=11 // pred_check
          %p923 = pneg %p617
        $region90: #{tpu_custom_call.1} parent=11 // pred_check_branch
          %925 = sbr.rel (%p923) target = $region92
        $region91: #{tpu_custom_call.1} parent=11 // pred_region
          _
        $region92: #{tpu_custom_call.1} parent=11 // pred_fallthru
          _
        // Predicated region
        $region93: #{tpu_custom_call.1} parent=11 // pred_check
          %p926 = pneg %p638
        $region94: #{tpu_custom_call.1} parent=11 // pred_check_branch
          %928 = sbr.rel (%p926) target = $region96
        $region95: #{tpu_custom_call.1} parent=11 // pred_region
          _
        $region96: #{tpu_custom_call.1} parent=11 // pred_fallthru
          _
        // Predicated region
        $region97: #{tpu_custom_call.1} parent=11 // pred_check
          %p929 = pneg %p659
        $region98: #{tpu_custom_call.1} parent=11 // pred_check_branch
          %931 = sbr.rel (%p929) target = $region100
        $region99: #{tpu_custom_call.1} parent=11 // pred_region
          _
        $region100: #{tpu_custom_call.1} parent=11 // pred_fallthru
          _
        // Predicated region
        $region101: #{tpu_custom_call.1} parent=11 // pred_check
          %p932 = pneg %p680
        $region102: #{tpu_custom_call.1} parent=11 // pred_check_branch
          %934 = sbr.rel (%p932) target = $region104
        $region103: #{tpu_custom_call.1} parent=11 // pred_region
          _
        $region104: #{tpu_custom_call.1} parent=11 // pred_fallthru
          _
        // Predicated region
        $region105: #{tpu_custom_call.1} parent=11 // pred_check
          %p935 = pneg %p701
        $region106: #{tpu_custom_call.1} parent=11 // pred_check_branch
          %937 = sbr.rel (%p935) target = $region108
        $region107: #{tpu_custom_call.1} parent=11 // pred_region
          _
        $region108: #{tpu_custom_call.1} parent=11 // pred_fallthru
          _
        // Predicated region
        $region109: #{tpu_custom_call.1} parent=11 // pred_check
          %p938 = pneg %p722
        $region110: #{tpu_custom_call.1} parent=11 // pred_check_branch
          %940 = sbr.rel (%p938) target = $region112
        $region111: #{tpu_custom_call.1} parent=11 // pred_region
          _
        $region112: #{tpu_custom_call.1} parent=11 // pred_fallthru
          _
        // Predicated region
        $region113: #{tpu_custom_call.1} parent=11 // pred_check
          %p941 = pneg %p743
        $region114: #{tpu_custom_call.1} parent=11 // pred_check_branch
          %943 = sbr.rel (%p941) target = $region116
        $region115: #{tpu_custom_call.1} parent=11 // pred_region
          _
        $region116: #{tpu_custom_call.1} parent=11 // pred_fallthru
          _
      $region12: #{tpu_custom_call.1} parent=5 // pred_fallthru
        _
      %p944 = scmp.lt.s32.totalorder %s81, 2
      // Predicated region
      $region117: #{tpu_custom_call.1} parent=5 // pred_check
        %p945 = pneg %p944
      $region118: #{tpu_custom_call.1} parent=5 // pred_check_branch
        %947 = sbr.rel (%p945) target = $region120
      $region119: #{tpu_custom_call.1} parent=5 // pred_region
        // Predicated region
        $region121: #{tpu_custom_call.1} parent=119 // pred_check
          %p948 = pneg %p113
        $region122: #{tpu_custom_call.1} parent=119 // pred_check_branch
          %950 = sbr.rel (%p948) target = $region124
        $region123: #{tpu_custom_call.1} parent=119 // pred_region
          %s951 = sand.u32 %s103, 1
          %s952 = scalar_lea.sflag [#allocation3], %s951
          %s953 = sand.u32 %s103, 1
          %s954 = smul.addr %s953, 4
          %s955 = scalar_lea.vmem [#allocation2], %s954
          %s957 = ssub.s32 64, 64
          %958 = vsyncadd %s952, %s957
          %s959 = smul.addr %s88, 64
          %s960 = scalar_lea.hbm %s1, %s959
          %s962 = sshll.u32 %s955, 4
          %s963 = int_to_ptr.vmem [resolvable:$true] %s962
          %965 = dma.hbm_to_vmem [thread:$0]  %s960, 64, %s963, %s952
        $region124: #{tpu_custom_call.1} parent=119 // pred_fallthru
          _
        // Predicated region
        $region125: #{tpu_custom_call.1} parent=119 // pred_check
          %p966 = pneg %p139
        $region126: #{tpu_custom_call.1} parent=119 // pred_check_branch
          %968 = sbr.rel (%p966) target = $region128
        $region127: #{tpu_custom_call.1} parent=119 // pred_region
          %p969 = scmp.lt.s32.totalorder %s88, 1
          %s970 = scalar_select %p969, %s88, 1
          %s971 = smul.addr %s970, 2
          %s972 = smul.addr %s971, 4
          %s973 = scalar_lea.vmem %s3, %s972
        $region128: #{tpu_custom_call.1} parent=119 // pred_fallthru
          _
        // Predicated region
        $region129: #{tpu_custom_call.1} parent=119 // pred_check
          %p974 = pneg %p165
        $region130: #{tpu_custom_call.1} parent=119 // pred_check_branch
          %976 = sbr.rel (%p974) target = $region132
        $region131: #{tpu_custom_call.1} parent=119 // pred_region
          %s977 = sand.u32 %s81, 1
          %s978 = scalar_lea.sflag [#allocation6], %s977
          %s979 = sand.u32 %s155, 1
          %s980 = scalar_lea.vmem [#allocation5], %s979
          %s982 = ssub.s32 16, 16
          %983 = vsyncadd %s978, %s982
          %s984 = smul.addr %s88, 16
          %s985 = scalar_lea.hbm %s5, %s984
          %s987 = sshll.u32 %s980, 4
          %s988 = int_to_ptr.vmem [resolvable:$true] %s987
          %990 = dma.hbm_to_vmem [thread:$0]  %s985, 16, %s988, %s978
        $region132: #{tpu_custom_call.1} parent=119 // pred_fallthru
          _
        // Predicated region
        $region133: #{tpu_custom_call.1} parent=119 // pred_check
          %p991 = pneg %p191
        $region134: #{tpu_custom_call.1} parent=119 // pred_check_branch
          %993 = sbr.rel (%p991) target = $region136
        $region135: #{tpu_custom_call.1} parent=119 // pred_region
          %s994 = sand.u32 %s81, 1
          %s995 = scalar_lea.sflag [#allocation6], %s994
          %s996 = sand.u32 %s181, 1
          %s997 = scalar_lea.vmem [#allocation7], %s996
          %s999 = ssub.s32 16, 16
          %1000 = vsyncadd %s995, %s999
          %s1001 = smul.addr %s88, 16
          %s1002 = scalar_lea.hbm %s7, %s1001
          %s1004 = sshll.u32 %s997, 4
          %s1005 = int_to_ptr.vmem [resolvable:$true] %s1004
          %1007 = dma.hbm_to_vmem [thread:$0]  %s1002, 16, %s1005, %s995
        $region136: #{tpu_custom_call.1} parent=119 // pred_fallthru
          _
      $region120: #{tpu_custom_call.1} parent=5 // pred_fallthru
        _
      %p1008 = scmp.le.s32.totalorder 1, %s81
      %p1009 = scmp.lt.s32.totalorder %s81, 3
      %p1010 = pnand %p1008, %p1009
      %p1011 = pneg %p1010
      // Predicated region
      $region137: #{tpu_custom_call.1} parent=5 // pred_check
        _
      $region138: #{tpu_custom_call.1} parent=5 // pred_check_branch
        %1013 = sbr.rel (%p1010) target = $region140
      $region139: #{tpu_custom_call.1} parent=5 // pred_region
        %s1014 = ssub.s32 %s81, 1
        %s1015 = sand.u32 %s106, 1
        %s1016 = scalar_lea.sflag [#allocation3], %s1015
        %s1017 = sand.u32 %s106, 1
        %s1018 = smul.addr %s1017, 4
        %s1019 = scalar_lea.vmem [#allocation2], %s1018
        // Predicated region
        $region141: #{tpu_custom_call.1} parent=139 // pred_check
          %p1020 = pneg %p119
        $region142: #{tpu_custom_call.1} parent=139 // pred_check_branch
          %1022 = sbr.rel (%p1020) target = $region144
        $region143: #{tpu_custom_call.1} parent=139 // pred_region
          %1023 = dma.done %s1016, 64
        $region144: #{tpu_custom_call.1} parent=139 // pred_fallthru
          _
        %s1024 = sand.u32 %s86, 1
        %s1025 = scalar_lea.sflag [#allocation6], %s1024
        %s1026 = sand.u32 %s158, 1
        %s1027 = scalar_lea.vmem [#allocation5], %s1026
        // Predicated region
        $region145: #{tpu_custom_call.1} parent=139 // pred_check
          %p1028 = pneg %p171
        $region146: #{tpu_custom_call.1} parent=139 // pred_check_branch
          %1030 = sbr.rel (%p1028) target = $region148
        $region147: #{tpu_custom_call.1} parent=139 // pred_region
          %1031 = dma.done %s1025, 16
        $region148: #{tpu_custom_call.1} parent=139 // pred_fallthru
          _
        %s1032 = sand.u32 %s86, 1
        %s1033 = scalar_lea.sflag [#allocation6], %s1032
        %s1034 = sand.u32 %s184, 1
        %s1035 = scalar_lea.vmem [#allocation7], %s1034
        // Predicated region
        $region149: #{tpu_custom_call.1} parent=139 // pred_check
          %p1036 = pneg %p197
        $region150: #{tpu_custom_call.1} parent=139 // pred_check_branch
          %1038 = sbr.rel (%p1036) target = $region152
        $region151: #{tpu_custom_call.1} parent=139 // pred_region
          %1039 = dma.done %s1033, 16
        $region152: #{tpu_custom_call.1} parent=139 // pred_fallthru
          _
        // Predicated region
        $region153: #{tpu_custom_call.1} parent=139 // pred_check
          %p1040 = pneg %p218
        $region154: #{tpu_custom_call.1} parent=139 // pred_check_branch
          %1042 = sbr.rel (%p1040) target = $region156
        $region155: #{tpu_custom_call.1} parent=139 // pred_region
          %1043 = dma.done [#allocation9], 16
        $region156: #{tpu_custom_call.1} parent=139 // pred_fallthru
          _
        // Predicated region
        $region157: #{tpu_custom_call.1} parent=139 // pred_check
          %p1044 = pneg %p239
        $region158: #{tpu_custom_call.1} parent=139 // pred_check_branch
          %1046 = sbr.rel (%p1044) target = $region160
        $region159: #{tpu_custom_call.1} parent=139 // pred_region
          %1047 = dma.done [#allocation9], 16
        $region160: #{tpu_custom_call.1} parent=139 // pred_fallthru
          _
        // Predicated region
        $region161: #{tpu_custom_call.1} parent=139 // pred_check
          %p1048 = pneg %p260
        $region162: #{tpu_custom_call.1} parent=139 // pred_check_branch
          %1050 = sbr.rel (%p1048) target = $region164
        $region163: #{tpu_custom_call.1} parent=139 // pred_region
          %1051 = dma.done [#allocation12], 16
        $region164: #{tpu_custom_call.1} parent=139 // pred_fallthru
          _
        // Predicated region
        $region165: #{tpu_custom_call.1} parent=139 // pred_check
          %p1052 = pneg %p281
        $region166: #{tpu_custom_call.1} parent=139 // pred_check_branch
          %1054 = sbr.rel (%p1052) target = $region168
        $region167: #{tpu_custom_call.1} parent=139 // pred_region
          %1055 = dma.done [#allocation12], 16
        $region168: #{tpu_custom_call.1} parent=139 // pred_fallthru
          _
        // Predicated region
        $region169: #{tpu_custom_call.1} parent=139 // pred_check
          %p1056 = pneg %p302
        $region170: #{tpu_custom_call.1} parent=139 // pred_check_branch
          %1058 = sbr.rel (%p1056) target = $region172
        $region171: #{tpu_custom_call.1} parent=139 // pred_region
          %1059 = dma.done [#allocation15], 16
        $region172: #{tpu_custom_call.1} parent=139 // pred_fallthru
          _
        // Predicated region
        $region173: #{tpu_custom_call.1} parent=139 // pred_check
          %p1060 = pneg %p323
        $region174: #{tpu_custom_call.1} parent=139 // pred_check_branch
          %1062 = sbr.rel (%p1060) target = $region176
        $region175: #{tpu_custom_call.1} parent=139 // pred_region
          %1063 = dma.done [#allocation15], 16
        $region176: #{tpu_custom_call.1} parent=139 // pred_fallthru
          _
        // Predicated region
        $region177: #{tpu_custom_call.1} parent=139 // pred_check
          %p1064 = pneg %p365
        $region178: #{tpu_custom_call.1} parent=139 // pred_check_branch
          %1066 = sbr.rel (%p1064) target = $region180
        $region179: #{tpu_custom_call.1} parent=139 // pred_region
          %1067 = dma.done [#allocation18], 16
        $region180: #{tpu_custom_call.1} parent=139 // pred_fallthru
          _
        // Predicated region
        $region181: #{tpu_custom_call.1} parent=139 // pred_check
          %p1068 = pneg %p407
        $region182: #{tpu_custom_call.1} parent=139 // pred_check_branch
          %1070 = sbr.rel (%p1068) target = $region184
        $region183: #{tpu_custom_call.1} parent=139 // pred_region
          %1071 = dma.done [#allocation18], 16
        $region184: #{tpu_custom_call.1} parent=139 // pred_fallthru
          _
        // Predicated region
        $region185: #{tpu_custom_call.1} parent=139 // pred_check
          %p1072 = pneg %p449
        $region186: #{tpu_custom_call.1} parent=139 // pred_check_branch
          %1074 = sbr.rel (%p1072) target = $region188
        $region187: #{tpu_custom_call.1} parent=139 // pred_region
          %1075 = dma.done [#allocation21], 16
        $region188: #{tpu_custom_call.1} parent=139 // pred_fallthru
          _
        // Predicated region
        $region189: #{tpu_custom_call.1} parent=139 // pred_check
          %p1076 = pneg %p491
        $region190: #{tpu_custom_call.1} parent=139 // pred_check_branch
          %1078 = sbr.rel (%p1076) target = $region192
        $region191: #{tpu_custom_call.1} parent=139 // pred_region
          %1079 = dma.done [#allocation21], 16
        $region192: #{tpu_custom_call.1} parent=139 // pred_fallthru
          _
        %s1080 = sand.u32 %s106, 1
        %s1081 = scalar_lea.sflag [#allocation3], %s1080
        %s1082 = sand.u32 %s106, 1
        %s1083 = smul.addr %s1082, 4
        %s1084 = scalar_lea.vmem [#allocation2], %s1083
        %p1085 = pneg %p119
        %p1086 = pneg %p116
        %p1087 = scmp.lt.s32.totalorder %s90, 1
        %s1088 = scalar_select %p1087, %s90, 1
        %s1089 = smul.addr %s1088, 2
        %s1090 = smul.addr %s1089, 4
        %s1091 = scalar_lea.vmem %s3, %s1090
        %p1092 = pneg %p145
        %p1093 = pneg %p142
        %s1094 = sand.u32 %s86, 1
        %s1095 = scalar_lea.sflag [#allocation6], %s1094
        %s1096 = sand.u32 %s158, 1
        %s1097 = scalar_lea.vmem [#allocation5], %s1096
        %p1098 = pneg %p171
        %p1099 = pneg %p168
        %s1100 = sand.u32 %s86, 1
        %s1101 = scalar_lea.sflag [#allocation6], %s1100
        %s1102 = sand.u32 %s184, 1
        %s1103 = scalar_lea.vmem [#allocation7], %s1102
        %p1104 = pneg %p197
        %p1105 = pneg %p194
        %p1106 = pneg %p218
        %p1107 = pneg %p215
        %p1108 = pneg %p239
        %p1109 = pneg %p236
        %p1110 = pneg %p260
        %p1111 = pneg %p257
        %p1112 = pneg %p281
        %p1113 = pneg %p278
        %p1114 = pneg %p302
        %p1115 = pneg %p299
        %p1116 = pneg %p323
        %p1117 = pneg %p320
        %p1118 = pneg %p344
        %p1119 = pneg %p341
        %p1120 = pneg %p365
        %p1121 = pneg %p362
        %p1122 = pneg %p386
        %p1123 = pneg %p383
        %p1124 = pneg %p407
        %p1125 = pneg %p404
        %p1126 = pneg %p428
        %p1127 = pneg %p425
        %p1128 = pneg %p449
        %p1129 = pneg %p446
        %p1130 = pneg %p470
        %p1131 = pneg %p467
        %p1132 = pneg %p491
        %p1133 = pneg %p488
        %p1134 = pneg %p512
        %p1135 = pneg %p509
        %p1136 = pneg %p533
        %p1137 = pneg %p530
        %p1138 = pneg %p554
        %p1139 = pneg %p551
        %p1140 = pneg %p575
        %p1141 = pneg %p572
        %p1142 = pneg %p596
        %p1143 = pneg %p593
        %p1144 = pneg %p617
        %p1145 = pneg %p614
        %p1146 = pneg %p638
        %p1147 = pneg %p635
        %p1148 = pneg %p659
        %p1149 = pneg %p656
        %p1150 = pneg %p680
        %p1151 = pneg %p677
        %p1152 = pneg %p701
        %p1153 = pneg %p698
        %p1154 = pneg %p722
        %p1155 = pneg %p719
        %p1156 = pneg %p743
        %p1157 = pneg %p740
        %p1158 = pneg %p771
        %p1159 = pneg %p768
        %s1160 = sand.u32 %s758, 1
        %s1161 = scalar_lea.sflag [#allocation4], %s1160
        %s1162 = sand.u32 %s758, 1
        %s1163 = smul.addr %s1162, 4
        %s1164 = scalar_lea.vmem [#allocation23], %s1163
        %p1165 = scmp.lt.s32.totalorder %s90, 1
        %s1166 = scalar_select %p1165, %s90, 1
        %s1167 = smul.addr %s1166, 2
        %s1168 = smul.addr %s1167, 4
        %s1169 = scalar_lea.vmem %s3, %s1168
        %s1171 = smul.u32 %s91, 8
        %v1172 = vld [vmem:[%s1019] sm:$0xf]
        %v1173 = vld [vmem:[%s1169] sm:$0xf]
        %v1174 = vld [vmem:[%s1169 + $0x4] sm:$0x3]
        %s1175 = sshra.s32 %s1171, 3
        %s1176 = sand.u32 %s1171, 7
        %s1177 = smul.addr %s1175, 4
        %s1178 = scalar_lea.vmem %s1019, %s1177 [#allocation2]
        %v1179 = vld [vmem:[%s1178] sm:$0xf]
        %v1180 = vunpack.c.l.bf16 %v1179
        %v1181 = vlaneseq
        %v1182 = vshrl.u32 %v1181, 7
        %v1183 = vstv %s1171
        %v1184 = vadd.s32 %v1183, %v1182
        %v1185 = vlaneseq
        %v1186 = vand.u32 %v1185, 127
        %v1187 = vld [vmem:[%s1027] sm:$0x1]
        %vm1188 = vcmp.gt.f32.partialorder %v1187, 0.5
        %vm1189 = vcmp.ge.s32.totalorder %v1184, %v1186
        %v1190 = vsel %vm1188, 1, 0
        %v1191 = vlaneseq
        %v1192 = vshrl.u32 %v1191, 7
        %v1193 = vsub.s32 0, %v1192
        %v1194 = vrot.slane %v1190, %v1193
        %vm1195 = vcmp.eq.s32.totalorder %v1194, 1
        %vm1196 = vmand %vm1189, %vm1195
        %v1197 = vsel %vm1196, 0.0, -10000.0
        %v1198 = vld [vmem:[%s1035] sm:$0x1]
        %vm1199 = vcmp.gt.f32.partialorder %v1198, 0.5
        %v1200 = vsel %vm1199, 0.0, -10000.0
        %v1201 = vld [vmem:[%s21] sm:$0xf]
        %v1202 = vld [vmem:[%s21 + $0x4] sm:$0xf]
        %v1203 = vld [vmem:[%s21 + $0x8] sm:$0xf]
        %v1204 = vld [vmem:[%s21 + $0xc] sm:$0xf]
        %v1205 = vld [vmem:[#allocation17] sm:$0x1]
        %v1207 = vlaneseq
        %v1208 = vshrl.u32 %v1207, 7
        %v1209 = vsub.s32 0, %v1208
        %v1210 = vrot.slane %v1205, %v1209
        %v1216 = vunpack.c.l.b16 %v1201
        %v1217 = vunpack.c.l.b16 %v1202
        %v1218 = vunpack.c.l.b16 %v1203
        %v1219 = vunpack.c.l.b16 %v1204
        %v1220 = vpack.c.b16 %v1217, %v1216
        %v1221 = vpack.c.b16 %v1219, %v1218
        %vm1224 = vcmask 261120
        %v1226 = vsel %vm1224, %v1179, 0
        %1228 = vmatprep.subr.bf16.mxu0 0
        %1229 = vmatpush1.bf16.msra.mxu0 %v1220
        %1230 = vmatprep.subr.bf16.mxu0 0
        %1231 = vmatpush1.bf16.msra.mxu0 %v1221
        %1232 = vmatprep.subr.bf16.mxu0 0
        %1233 = vmatpush1.bf16.msra.mxu0 0
        %1234 = vmatprep.subr.bf16.mxu0 0
        %1235 = vmatpush1.bf16.msra.mxu0 0
        %1236 = vmatprep.subr.bf16.mxu0 0
        %1237 = vmatpush1.bf16.msra.mxu0 0
        %1238 = vmatprep.subr.bf16.mxu0 0
        %1239 = vmatpush1.bf16.msra.mxu0 0
        %1240 = vmatprep.subr.bf16.mxu0 0
        %1241 = vmatpush1.bf16.msra.mxu0 0
        %1242 = vmatprep.subr.bf16.mxu0 0
        %1243 = vmatpush1.bf16.msra.mxu0 0
        %1244 = vmatprep.subr.bf16.mxu0 0
        %1245 = vmatpush1.bf16.msra.mxu0 0
        %1246 = vmatprep.subr.bf16.mxu0 0
        %1247 = vmatpush1.bf16.msra.mxu0 0
        %1248 = vmatprep.subr.bf16.mxu0 0
        %1249 = vmatpush1.bf16.msra.mxu0 0
        %1250 = vmatprep.subr.bf16.mxu0 0
        %1251 = vmatpush1.bf16.msra.mxu0 0
        %1252 = vmatprep.subr.bf16.mxu0 0
        %1253 = vmatpush1.bf16.msra.mxu0 0
        %1254 = vmatprep.subr.bf16.mxu0 0
        %1255 = vmatpush1.bf16.msra.mxu0 0
        %1256 = vmatprep.subr.bf16.mxu0 0
        %1257 = vmatpush1.bf16.msra.mxu0 0
        %1258 = vmatprep.subr.bf16.mxu0 0
        %1259 = vmatpush1.bf16.msra.mxu0 0
        %1260 = vmatprep.mubr.bf16.mxu0 0
        %1261 = vmatmul.mubr.bf16.gmra.mrb[0].mxu0 %v1226
        %v1262 = vpop.f32.mrb[0].mxu0
        %v1263 = vadd.f32 %v1210, %v1262
        %v1264 = vpop.f32.mrb[0].mxu0
        %v1265 = vpop.f32.mrb[0].mxu0
        %v1266 = vpop.f32.mrb[0].mxu0
        %1267 = vdwg.mxu0
        %v1268 = vpack.c.bf16 %v1263, %v1263
        %v1269 = vld [vmem:[%s25] sm:$0xf]
        %v1270 = vld [vmem:[%s25 + $0x4] sm:$0xf]
        %v1271 = vld [vmem:[%s25 + $0x8] sm:$0xf]
        %v1272 = vld [vmem:[%s25 + $0xc] sm:$0xf]
        %v1273 = vld [vmem:[#allocation19] sm:$0x1]
        %v1275 = vlaneseq
        %v1276 = vshrl.u32 %v1275, 7
        %v1277 = vsub.s32 0, %v1276
        %v1278 = vrot.slane %v1273, %v1277
        %v1284 = vunpack.c.l.b16 %v1269
        %v1285 = vunpack.c.l.b16 %v1270
        %v1286 = vunpack.c.l.b16 %v1271
        %v1287 = vunpack.c.l.b16 %v1272
        %v1288 = vpack.c.b16 %v1285, %v1284
        %v1289 = vpack.c.b16 %v1287, %v1286
        %v1293 = vsel %vm1224, %v1172, 0
        %1295 = vmatprep.subr.bf16.mxu0 0
        %1296 = vmatpush1.bf16.msra.mxu0 %v1288
        %1297 = vmatprep.subr.bf16.mxu0 0
        %1298 = vmatpush1.bf16.msra.mxu0 %v1289
        %1299 = vmatprep.subr.bf16.mxu0 0
        %1300 = vmatpush1.bf16.msra.mxu0 0
        %1301 = vmatprep.subr.bf16.mxu0 0
        %1302 = vmatpush1.bf16.msra.mxu0 0
        %1303 = vmatprep.subr.bf16.mxu0 0
        %1304 = vmatpush1.bf16.msra.mxu0 0
        %1305 = vmatprep.subr.bf16.mxu0 0
        %1306 = vmatpush1.bf16.msra.mxu0 0
        %1307 = vmatprep.subr.bf16.mxu0 0
        %1308 = vmatpush1.bf16.msra.mxu0 0
        %1309 = vmatprep.subr.bf16.mxu0 0
        %1310 = vmatpush1.bf16.msra.mxu0 0
        %1311 = vmatprep.subr.bf16.mxu0 0
        %1312 = vmatpush1.bf16.msra.mxu0 0
        %1313 = vmatprep.subr.bf16.mxu0 0
        %1314 = vmatpush1.bf16.msra.mxu0 0
        %1315 = vmatprep.subr.bf16.mxu0 0
        %1316 = vmatpush1.bf16.msra.mxu0 0
        %1317 = vmatprep.subr.bf16.mxu0 0
        %1318 = vmatpush1.bf16.msra.mxu0 0
        %1319 = vmatprep.subr.bf16.mxu0 0
        %1320 = vmatpush1.bf16.msra.mxu0 0
        %1321 = vmatprep.subr.bf16.mxu0 0
        %1322 = vmatpush1.bf16.msra.mxu0 0
        %1323 = vmatprep.subr.bf16.mxu0 0
        %1324 = vmatpush1.bf16.msra.mxu0 0
        %1325 = vmatprep.subr.bf16.mxu0 0
        %1326 = vmatpush1.bf16.msra.mxu0 0
        %1327 = vmatprep.mubr.bf16.mxu0 0
        %1328 = vmatmul.mubr.bf16.gmra.mrb[0].mxu0 %v1293
        %v1329 = vpop.f32.mrb[0].mxu0
        %v1330 = vadd.f32 %v1278, %v1329
        %v1331 = vpop.f32.mrb[0].mxu0
        %v1332 = vpop.f32.mrb[0].mxu0
        %v1333 = vpop.f32.mrb[0].mxu0
        %1334 = vdwg.mxu0
        %v1335 = vpack.c.bf16 %v1330, %v1330
        %v1336 = vld [vmem:[%s29] sm:$0xf]
        %v1337 = vld [vmem:[%s29 + $0x4] sm:$0xf]
        %v1338 = vld [vmem:[%s29 + $0x8] sm:$0xf]
        %v1339 = vld [vmem:[%s29 + $0xc] sm:$0xf]
        %v1340 = vld [vmem:[#allocation20] sm:$0x1]
        %v1342 = vlaneseq
        %v1343 = vshrl.u32 %v1342, 7
        %v1344 = vsub.s32 0, %v1343
        %v1345 = vrot.slane %v1340, %v1344
        %v1351 = vunpack.c.l.b16 %v1336
        %v1352 = vunpack.c.l.b16 %v1337
        %v1353 = vunpack.c.l.b16 %v1338
        %v1354 = vunpack.c.l.b16 %v1339
        %v1355 = vpack.c.b16 %v1352, %v1351
        %v1356 = vpack.c.b16 %v1354, %v1353
        %1359 = vmatprep.subr.bf16.mxu0 0
        %1360 = vmatpush1.bf16.msra.mxu0 %v1355
        %1361 = vmatprep.subr.bf16.mxu0 0
        %1362 = vmatpush1.bf16.msra.mxu0 %v1356
        %1363 = vmatprep.subr.bf16.mxu0 0
        %1364 = vmatpush1.bf16.msra.mxu0 0
        %1365 = vmatprep.subr.bf16.mxu0 0
        %1366 = vmatpush1.bf16.msra.mxu0 0
        %1367 = vmatprep.subr.bf16.mxu0 0
        %1368 = vmatpush1.bf16.msra.mxu0 0
        %1369 = vmatprep.subr.bf16.mxu0 0
        %1370 = vmatpush1.bf16.msra.mxu0 0
        %1371 = vmatprep.subr.bf16.mxu0 0
        %1372 = vmatpush1.bf16.msra.mxu0 0
        %1373 = vmatprep.subr.bf16.mxu0 0
        %1374 = vmatpush1.bf16.msra.mxu0 0
        %1375 = vmatprep.subr.bf16.mxu0 0
        %1376 = vmatpush1.bf16.msra.mxu0 0
        %1377 = vmatprep.subr.bf16.mxu0 0
        %1378 = vmatpush1.bf16.msra.mxu0 0
        %1379 = vmatprep.subr.bf16.mxu0 0
        %1380 = vmatpush1.bf16.msra.mxu0 0
        %1381 = vmatprep.subr.bf16.mxu0 0
        %1382 = vmatpush1.bf16.msra.mxu0 0
        %1383 = vmatprep.subr.bf16.mxu0 0
        %1384 = vmatpush1.bf16.msra.mxu0 0
        %1385 = vmatprep.subr.bf16.mxu0 0
        %1386 = vmatpush1.bf16.msra.mxu0 0
        %1387 = vmatprep.subr.bf16.mxu0 0
        %1388 = vmatpush1.bf16.msra.mxu0 0
        %1389 = vmatprep.subr.bf16.mxu0 0
        %1390 = vmatpush1.bf16.msra.mxu0 0
        %1391 = vmatprep.mubr.bf16.mxu0 0
        %1392 = vmatmul.mubr.bf16.gmra.mrb[0].mxu0 %v1293
        %v1393 = vpop.f32.mrb[0].mxu0
        %v1394 = vadd.f32 %v1345, %v1393
        %v1395 = vpop.f32.mrb[0].mxu0
        %v1396 = vpop.f32.mrb[0].mxu0
        %v1397 = vpop.f32.mrb[0].mxu0
        %1398 = vdwg.mxu0
        %v1399 = vpack.c.bf16 %v1394, %v1394
        %v1400 = vld [vmem:[%s33] sm:$0xf]
        %v1401 = vld [vmem:[%s33 + $0x4] sm:$0xf]
        %v1402 = vld [vmem:[%s33 + $0x8] sm:$0xf]
        %v1403 = vld [vmem:[%s33 + $0xc] sm:$0xf]
        %vm1404 = vcmask 130048
        %v1406 = vsel %vm1404, %v1268, 0
        %v1409 = vsel %vm1404, %v1335, 0
        %1411 = vmatprep.subr.bf16.mxu0 0
        %1412 = vmatpush1.bf16.xpose.msra.mxu0 %v1409
        %1413 = vmatprep.subr.bf16.mxu0 0
        %1414 = vmatpush1.bf16.xpose.msra.mxu0 0
        %1415 = vmatprep.subr.bf16.mxu0 0
        %1416 = vmatpush1.bf16.xpose.msra.mxu0 0
        %1417 = vmatprep.subr.bf16.mxu0 0
        %1418 = vmatpush1.bf16.xpose.msra.mxu0 0
        %1419 = vmatprep.subr.bf16.mxu0 0
        %1420 = vmatpush1.bf16.xpose.msra.mxu0 0
        %1421 = vmatprep.subr.bf16.mxu0 0
        %1422 = vmatpush1.bf16.xpose.msra.mxu0 0
        %1423 = vmatprep.subr.bf16.mxu0 0
        %1424 = vmatpush1.bf16.xpose.msra.mxu0 0
        %1425 = vmatprep.subr.bf16.mxu0 0
        %1426 = vmatpush1.bf16.xpose.msra.mxu0 0
        %1427 = vmatprep.subr.bf16.mxu0 0
        %1428 = vmatpush1.bf16.xpose.msra.mxu0 0
        %1429 = vmatprep.subr.bf16.mxu0 0
        %1430 = vmatpush1.bf16.xpose.msra.mxu0 0
        %1431 = vmatprep.subr.bf16.mxu0 0
        %1432 = vmatpush1.bf16.xpose.msra.mxu0 0
        %1433 = vmatprep.subr.bf16.mxu0 0
        %1434 = vmatpush1.bf16.xpose.msra.mxu0 0
        %1435 = vmatprep.subr.bf16.mxu0 0
        %1436 = vmatpush1.bf16.xpose.msra.mxu0 0
        %1437 = vmatprep.subr.bf16.mxu0 0
        %1438 = vmatpush1.bf16.xpose.msra.mxu0 0
        %1439 = vmatprep.subr.bf16.mxu0 0
        %1440 = vmatpush1.bf16.xpose.msra.mxu0 0
        %1441 = vmatprep.subr.bf16.mxu0 0
        %1442 = vmatpush1.bf16.xpose.msra.mxu0 0
        %1443 = vmatprep.mubr.bf16.mxu0 0
        %1444 = vmatmul.mubr.bf16.gmra.mrb[0].mxu0 %v1406
        %v1445 = vpop.f32.mrb[0].mxu0
        %v1446 = vadd.f32 %v1197, %v1445
        %v1447 = vpop.f32.mrb[0].mxu0
        %v1448 = vpop.f32.mrb[0].mxu0
        %v1449 = vpop.f32.mrb[0].mxu0
        %1450 = vdwg.mxu0
        %vm1451 = vcmask 64512
        %v1452 = vsel %vm1451, %v1446, -inf
        %1453 = vmax.xlane.f32.xlu0 %v1452
        %v1454 = vpop.xlane.xlu0 %1453
        %v1455 = vsub.f32 %v1446, %v1454
        %v1456 = vmul.f32 %v1455, 1.442695
        %v1457 = vpow.pop %v1456
        %v1458 = vsel %vm1451, %v1457, 0.0
        %1459 = vadd.xlane.f32.xlu0 %v1458
        %v1460 = vpop.xlane.xlu0 %1459
        %v1461 = vrcp.pop %v1460
        %v1462 = vmul.f32 %v1457, %v1461
        %v1463 = vpack.c.bf16 %v1462, %v1462
        %v1465 = vsel %vm1451, %v1463, 0
        %vm1467 = vcmask 1043456
        %v1469 = vsel %vm1467, %v1399, 0
        %1471 = vmatprep.subr.bf16.mxu0 0
        %1472 = vmatpush1.bf16.msra.mxu0 %v1469
        %1473 = vmatprep.subr.bf16.mxu0 0
        %1474 = vmatpush1.bf16.msra.mxu0 0
        %1475 = vmatprep.subr.bf16.mxu0 0
        %1476 = vmatpush1.bf16.msra.mxu0 0
        %1477 = vmatprep.subr.bf16.mxu0 0
        %1478 = vmatpush1.bf16.msra.mxu0 0
        %1479 = vmatprep.subr.bf16.mxu0 0
        %1480 = vmatpush1.bf16.msra.mxu0 0
        %1481 = vmatprep.subr.bf16.mxu0 0
        %1482 = vmatpush1.bf16.msra.mxu0 0
        %1483 = vmatprep.subr.bf16.mxu0 0
        %1484 = vmatpush1.bf16.msra.mxu0 0
        %1485 = vmatprep.subr.bf16.mxu0 0
        %1486 = vmatpush1.bf16.msra.mxu0 0
        %1487 = vmatprep.subr.bf16.mxu0 0
        %1488 = vmatpush1.bf16.msra.mxu0 0
        %1489 = vmatprep.subr.bf16.mxu0 0
        %1490 = vmatpush1.bf16.msra.mxu0 0
        %1491 = vmatprep.subr.bf16.mxu0 0
        %1492 = vmatpush1.bf16.msra.mxu0 0
        %1493 = vmatprep.subr.bf16.mxu0 0
        %1494 = vmatpush1.bf16.msra.mxu0 0
        %1495 = vmatprep.subr.bf16.mxu0 0
        %1496 = vmatpush1.bf16.msra.mxu0 0
        %1497 = vmatprep.subr.bf16.mxu0 0
        %1498 = vmatpush1.bf16.msra.mxu0 0
        %1499 = vmatprep.subr.bf16.mxu0 0
        %1500 = vmatpush1.bf16.msra.mxu0 0
        %1501 = vmatprep.subr.bf16.mxu0 0
        %1502 = vmatpush1.bf16.msra.mxu0 0
        %1503 = vmatprep.mubr.bf16.mxu0 0
        %1504 = vmatmul.mubr.bf16.gmra.mrb[0].mxu0 %v1465
        %v1505 = vpop.f32.mrb[0].mxu0
        %v1506 = vadd.f32 0.0, %v1505
        %v1507 = vpop.f32.mrb[0].mxu0
        %v1508 = vpop.f32.mrb[0].mxu0
        %v1509 = vpop.f32.mrb[0].mxu0
        %1510 = vdwg.mxu0
        %v1511 = vpack.c.bf16 %v1506, %v1506
        %1513 = vrot.lane.b32.xlu0 %v1268, 112
        %v1514 = vpop.permute.xlu0 %1513
        %1516 = vrot.lane.b32.xlu0 %v1335, 112
        %v1517 = vpop.permute.xlu0 %1516
        %v1519 = vsel %vm1404, %v1514, 0
        %v1522 = vsel %vm1404, %v1517, 0
        %1524 = vmatprep.subr.bf16.mxu0 0
        %1525 = vmatpush1.bf16.xpose.msra.mxu0 %v1522
        %1526 = vmatprep.subr.bf16.mxu0 0
        %1527 = vmatpush1.bf16.xpose.msra.mxu0 0
        %1528 = vmatprep.subr.bf16.mxu0 0
        %1529 = vmatpush1.bf16.xpose.msra.mxu0 0
        %1530 = vmatprep.subr.bf16.mxu0 0
        %1531 = vmatpush1.bf16.xpose.msra.mxu0 0
        %1532 = vmatprep.subr.bf16.mxu0 0
        %1533 = vmatpush1.bf16.xpose.msra.mxu0 0
        %1534 = vmatprep.subr.bf16.mxu0 0
        %1535 = vmatpush1.bf16.xpose.msra.mxu0 0
        %1536 = vmatprep.subr.bf16.mxu0 0
        %1537 = vmatpush1.bf16.xpose.msra.mxu0 0
        %1538 = vmatprep.subr.bf16.mxu0 0
        %1539 = vmatpush1.bf16.xpose.msra.mxu0 0
        %1540 = vmatprep.subr.bf16.mxu0 0
        %1541 = vmatpush1.bf16.xpose.msra.mxu0 0
        %1542 = vmatprep.subr.bf16.mxu0 0
        %1543 = vmatpush1.bf16.xpose.msra.mxu0 0
        %1544 = vmatprep.subr.bf16.mxu0 0
        %1545 = vmatpush1.bf16.xpose.msra.mxu0 0
        %1546 = vmatprep.subr.bf16.mxu0 0
        %1547 = vmatpush1.bf16.xpose.msra.mxu0 0
        %1548 = vmatprep.subr.bf16.mxu0 0
        %1549 = vmatpush1.bf16.xpose.msra.mxu0 0
        %1550 = vmatprep.subr.bf16.mxu0 0
        %1551 = vmatpush1.bf16.xpose.msra.mxu0 0
        %1552 = vmatprep.subr.bf16.mxu0 0
        %1553 = vmatpush1.bf16.xpose.msra.mxu0 0
        %1554 = vmatprep.subr.bf16.mxu0 0
        %1555 = vmatpush1.bf16.xpose.msra.mxu0 0
        %1556 = vmatprep.mubr.bf16.mxu0 0
        %1557 = vmatmul.mubr.bf16.gmra.mrb[0].mxu0 %v1519
        %v1558 = vpop.f32.mrb[0].mxu0
        %v1559 = vadd.f32 %v1197, %v1558
        %v1560 = vpop.f32.mrb[0].mxu0
        %v1561 = vpop.f32.mrb[0].mxu0
        %v1562 = vpop.f32.mrb[0].mxu0
        %1563 = vdwg.mxu0
        %v1564 = vsel %vm1451, %v1559, -inf
        %1565 = vmax.xlane.f32.xlu0 %v1564
        %v1566 = vpop.xlane.xlu0 %1565
        %v1567 = vsub.f32 %v1559, %v1566
        %v1568 = vmul.f32 %v1567, 1.442695
        %v1569 = vpow.pop %v1568
        %v1570 = vsel %vm1451, %v1569, 0.0
        %1571 = vadd.xlane.f32.xlu0 %v1570
        %v1572 = vpop.xlane.xlu0 %1571
        %v1573 = vrcp.pop %v1572
        %v1574 = vmul.f32 %v1569, %v1573
        %v1575 = vpack.c.bf16 %v1574, %v1574
        %1577 = vrot.lane.b32.xlu0 %v1399, 112
        %v1578 = vpop.permute.xlu0 %1577
        %v1580 = vsel %vm1451, %v1575, 0
        %v1583 = vsel %vm1467, %v1578, 0
        %1585 = vmatprep.subr.bf16.mxu0 0
        %1586 = vmatpush1.bf16.msra.mxu0 %v1583
        %1587 = vmatprep.subr.bf16.mxu0 0
        %1588 = vmatpush1.bf16.msra.mxu0 0
        %1589 = vmatprep.subr.bf16.mxu0 0
        %1590 = vmatpush1.bf16.msra.mxu0 0
        %1591 = vmatprep.subr.bf16.mxu0 0
        %1592 = vmatpush1.bf16.msra.mxu0 0
        %1593 = vmatprep.subr.bf16.mxu0 0
        %1594 = vmatpush1.bf16.msra.mxu0 0
        %1595 = vmatprep.subr.bf16.mxu0 0
        %1596 = vmatpush1.bf16.msra.mxu0 0
        %1597 = vmatprep.subr.bf16.mxu0 0
        %1598 = vmatpush1.bf16.msra.mxu0 0
        %1599 = vmatprep.subr.bf16.mxu0 0
        %1600 = vmatpush1.bf16.msra.mxu0 0
        %1601 = vmatprep.subr.bf16.mxu0 0
        %1602 = vmatpush1.bf16.msra.mxu0 0
        %1603 = vmatprep.subr.bf16.mxu0 0
        %1604 = vmatpush1.bf16.msra.mxu0 0
        %1605 = vmatprep.subr.bf16.mxu0 0
        %1606 = vmatpush1.bf16.msra.mxu0 0
        %1607 = vmatprep.subr.bf16.mxu0 0
        %1608 = vmatpush1.bf16.msra.mxu0 0
        %1609 = vmatprep.subr.bf16.mxu0 0
        %1610 = vmatpush1.bf16.msra.mxu0 0
        %1611 = vmatprep.subr.bf16.mxu0 0
        %1612 = vmatpush1.bf16.msra.mxu0 0
        %1613 = vmatprep.subr.bf16.mxu0 0
        %1614 = vmatpush1.bf16.msra.mxu0 0
        %1615 = vmatprep.subr.bf16.mxu0 0
        %1616 = vmatpush1.bf16.msra.mxu0 0
        %1617 = vmatprep.mubr.bf16.mxu0 0
        %1618 = vmatmul.mubr.bf16.gmra.mrb[0].mxu0 %v1580
        %v1619 = vpop.f32.mrb[0].mxu0
        %v1620 = vadd.f32 0.0, %v1619
        %v1621 = vpop.f32.mrb[0].mxu0
        %v1622 = vpop.f32.mrb[0].mxu0
        %v1623 = vpop.f32.mrb[0].mxu0
        %1624 = vdwg.mxu0
        %v1625 = vpack.c.bf16 %v1620, %v1620
        %v1628 = vunpack.c.l.b16 %v1402
        %v1629 = vunpack.c.l.b16 %v1403
        %v1630 = vpack.c.b16 %v1629, %v1628
        %v1633 = vsel %vm1404, %v1625, 0
        %1635 = vmatprep.subr.bf16.mxu0 0
        %1636 = vmatpush1.bf16.msra.mxu0 %v1630
        %1637 = vmatprep.subr.bf16.mxu0 0
        %1638 = vmatpush1.bf16.msra.mxu0 0
        %1639 = vmatprep.subr.bf16.mxu0 0
        %1640 = vmatpush1.bf16.msra.mxu0 0
        %1641 = vmatprep.subr.bf16.mxu0 0
        %1642 = vmatpush1.bf16.msra.mxu0 0
        %1643 = vmatprep.subr.bf16.mxu0 0
        %1644 = vmatpush1.bf16.msra.mxu0 0
        %1645 = vmatprep.subr.bf16.mxu0 0
        %1646 = vmatpush1.bf16.msra.mxu0 0
        %1647 = vmatprep.subr.bf16.mxu0 0
        %1648 = vmatpush1.bf16.msra.mxu0 0
        %1649 = vmatprep.subr.bf16.mxu0 0
        %1650 = vmatpush1.bf16.msra.mxu0 0
        %1651 = vmatprep.subr.bf16.mxu0 0
        %1652 = vmatpush1.bf16.msra.mxu0 0
        %1653 = vmatprep.subr.bf16.mxu0 0
        %1654 = vmatpush1.bf16.msra.mxu0 0
        %1655 = vmatprep.subr.bf16.mxu0 0
        %1656 = vmatpush1.bf16.msra.mxu0 0
        %1657 = vmatprep.subr.bf16.mxu0 0
        %1658 = vmatpush1.bf16.msra.mxu0 0
        %1659 = vmatprep.subr.bf16.mxu0 0
        %1660 = vmatpush1.bf16.msra.mxu0 0
        %1661 = vmatprep.subr.bf16.mxu0 0
        %1662 = vmatpush1.bf16.msra.mxu0 0
        %1663 = vmatprep.subr.bf16.mxu0 0
        %1664 = vmatpush1.bf16.msra.mxu0 0
        %1665 = vmatprep.subr.bf16.mxu0 0
        %1666 = vmatpush1.bf16.msra.mxu0 0
        %1667 = vmatprep.mubr.bf16.mxu0 0
        %1668 = vmatmul.mubr.bf16.gmra.mrb[0].mxu0 %v1633
        %v1669 = vpop.f32.mrb[0].mxu0
        %v1670 = vadd.f32 0.0, %v1669
        %v1671 = vpop.f32.mrb[0].mxu0
        %v1672 = vpop.f32.mrb[0].mxu0
        %v1673 = vpop.f32.mrb[0].mxu0
        %1674 = vdwg.mxu0
        %v1677 = vunpack.c.l.b16 %v1400
        %v1678 = vunpack.c.l.b16 %v1401
        %v1679 = vpack.c.b16 %v1678, %v1677
        %v1682 = vsel %vm1404, %v1511, 0
        %1684 = vmatprep.subr.bf16.mxu0 0
        %1685 = vmatpush1.bf16.msra.mxu0 %v1679
        %1686 = vmatprep.subr.bf16.mxu0 0
        %1687 = vmatpush1.bf16.msra.mxu0 0
        %1688 = vmatprep.subr.bf16.mxu0 0
        %1689 = vmatpush1.bf16.msra.mxu0 0
        %1690 = vmatprep.subr.bf16.mxu0 0
        %1691 = vmatpush1.bf16.msra.mxu0 0
        %1692 = vmatprep.subr.bf16.mxu0 0
        %1693 = vmatpush1.bf16.msra.mxu0 0
        %1694 = vmatprep.subr.bf16.mxu0 0
        %1695 = vmatpush1.bf16.msra.mxu0 0
        %1696 = vmatprep.subr.bf16.mxu0 0
        %1697 = vmatpush1.bf16.msra.mxu0 0
        %1698 = vmatprep.subr.bf16.mxu0 0
        %1699 = vmatpush1.bf16.msra.mxu0 0
        %1700 = vmatprep.subr.bf16.mxu0 0
        %1701 = vmatpush1.bf16.msra.mxu0 0
        %1702 = vmatprep.subr.bf16.mxu0 0
        %1703 = vmatpush1.bf16.msra.mxu0 0
        %1704 = vmatprep.subr.bf16.mxu0 0
        %1705 = vmatpush1.bf16.msra.mxu0 0
        %1706 = vmatprep.subr.bf16.mxu0 0
        %1707 = vmatpush1.bf16.msra.mxu0 0
        %1708 = vmatprep.subr.bf16.mxu0 0
        %1709 = vmatpush1.bf16.msra.mxu0 0
        %1710 = vmatprep.subr.bf16.mxu0 0
        %1711 = vmatpush1.bf16.msra.mxu0 0
        %1712 = vmatprep.subr.bf16.mxu0 0
        %1713 = vmatpush1.bf16.msra.mxu0 0
        %1714 = vmatprep.subr.bf16.mxu0 0
        %1715 = vmatpush1.bf16.msra.mxu0 0
        %1716 = vmatprep.mubr.bf16.mxu0 0
        %1717 = vmatmul.mubr.bf16.gmra.mrb[0].mxu0 %v1682
        %v1718 = vpop.f32.mrb[0].mxu0
        %v1719 = vadd.f32 %v1670, %v1718
        %v1720 = vpop.f32.mrb[0].mxu0
        %v1721 = vpop.f32.mrb[0].mxu0
        %v1722 = vpop.f32.mrb[0].mxu0
        %1723 = vdwg.mxu0
        %v1724 = vld [vmem:[#allocation22] sm:$0x1]
        %v1726 = vlaneseq
        %v1727 = vshrl.u32 %v1726, 7
        %v1728 = vsub.s32 0, %v1727
        %v1729 = vrot.slane %v1724, %v1728
        %v1731 = vadd.f32 %v1719, %v1729
        %v1732 = vadd.f32 %v1731, %v1180
        %v1733 = vsel %vm1224, %v1732, 0.0
        %1734 = vadd.xlane.f32.xlu0 %v1733
        %v1735 = vpop.xlane.xlu0 %1734
        %v1736 = vrcp.pop 32.0
        %v1737 = vmul.f32 %v1735, %v1736
        %v1738 = vsub.f32 %v1732, %v1737
        %v1739 = vmul.f32 %v1738, %v1738
        %v1740 = vsel %vm1224, %v1739, 0.0
        %1741 = vadd.xlane.f32.xlu0 %v1740
        %v1742 = vpop.xlane.xlu0 %1741
        %v1743 = vmul.f32 %v1742, %v1736
        %v1744 = vadd.f32 %v1743, 1e-05
        %v1745 = vrsqrt.pop %v1744
        %v1746 = vmul.f32 %v1738, %v1745
        %v1747 = vld [vmem:[#allocation8] sm:$0x1]
        %v1749 = vlaneseq
        %v1750 = vshrl.u32 %v1749, 7
        %v1751 = vsub.s32 0, %v1750
        %v1752 = vrot.slane %v1747, %v1751
        %v1754 = vmul.f32 %v1746, %v1752
        %v1755 = vld [vmem:[#allocation10] sm:$0x1]
        %v1757 = vlaneseq
        %v1758 = vshrl.u32 %v1757, 7
        %v1759 = vsub.s32 0, %v1758
        %v1760 = vrot.slane %v1755, %v1759
        %v1762 = vadd.f32 %v1754, %v1760
        %v1763 = vpack.c.bf16 %v1762, %v1762
        %v1764 = vld [vmem:[%s37] sm:$0xf]
        %v1765 = vld [vmem:[%s37 + $0x4] sm:$0xf]
        %v1766 = vld [vmem:[%s37 + $0x8] sm:$0xf]
        %v1767 = vld [vmem:[%s37 + $0xc] sm:$0xf]
        %v1768 = vld [vmem:[%s39] sm:$0x1]
        %v1770 = vlaneseq
        %v1771 = vshrl.u32 %v1770, 7
        %v1772 = vsub.s32 0, %v1771
        %v1773 = vrot.slane %v1768, %v1772
        %v1779 = vunpack.c.l.b16 %v1764
        %v1780 = vunpack.c.l.b16 %v1765
        %v1781 = vunpack.c.l.b16 %v1766
        %v1782 = vunpack.c.l.b16 %v1767
        %v1783 = vpack.c.b16 %v1780, %v1779
        %v1784 = vpack.c.b16 %v1782, %v1781
        %v1788 = vsel %vm1224, %v1763, 0
        %1790 = vmatprep.subr.bf16.mxu0 0
        %1791 = vmatpush1.bf16.msra.mxu0 %v1783
        %1792 = vmatprep.subr.bf16.mxu0 0
        %1793 = vmatpush1.bf16.msra.mxu0 %v1784
        %1794 = vmatprep.subr.bf16.mxu0 0
        %1795 = vmatpush1.bf16.msra.mxu0 0
        %1796 = vmatprep.subr.bf16.mxu0 0
        %1797 = vmatpush1.bf16.msra.mxu0 0
        %1798 = vmatprep.subr.bf16.mxu0 0
        %1799 = vmatpush1.bf16.msra.mxu0 0
        %1800 = vmatprep.subr.bf16.mxu0 0
        %1801 = vmatpush1.bf16.msra.mxu0 0
        %1802 = vmatprep.subr.bf16.mxu0 0
        %1803 = vmatpush1.bf16.msra.mxu0 0
        %1804 = vmatprep.subr.bf16.mxu0 0
        %1805 = vmatpush1.bf16.msra.mxu0 0
        %1806 = vmatprep.subr.bf16.mxu0 0
        %1807 = vmatpush1.bf16.msra.mxu0 0
        %1808 = vmatprep.subr.bf16.mxu0 0
        %1809 = vmatpush1.bf16.msra.mxu0 0
        %1810 = vmatprep.subr.bf16.mxu0 0
        %1811 = vmatpush1.bf16.msra.mxu0 0
        %1812 = vmatprep.subr.bf16.mxu0 0
        %1813 = vmatpush1.bf16.msra.mxu0 0
        %1814 = vmatprep.subr.bf16.mxu0 0
        %1815 = vmatpush1.bf16.msra.mxu0 0
        %1816 = vmatprep.subr.bf16.mxu0 0
        %1817 = vmatpush1.bf16.msra.mxu0 0
        %1818 = vmatprep.subr.bf16.mxu0 0
        %1819 = vmatpush1.bf16.msra.mxu0 0
        %1820 = vmatprep.subr.bf16.mxu0 0
        %1821 = vmatpush1.bf16.msra.mxu0 0
        %1822 = vmatprep.mubr.bf16.mxu0 0
        %1823 = vmatmul.mubr.bf16.gmra.mrb[0].mxu0 %v1788
        %v1824 = vpop.f32.mrb[0].mxu0
        %v1825 = vadd.f32 %v1773, %v1824
        %v1826 = vpop.f32.mrb[0].mxu0
        %v1827 = vpop.f32.mrb[0].mxu0
        %v1828 = vpop.f32.mrb[0].mxu0
        %1829 = vdwg.mxu0
        %v1830 = vpack.c.bf16 %v1825, %v1825
        %v1831 = vld [vmem:[%s41] sm:$0xf]
        %v1832 = vld [vmem:[%s41 + $0x4] sm:$0xf]
        %v1833 = vld [vmem:[%s41 + $0x8] sm:$0xf]
        %v1834 = vld [vmem:[%s41 + $0xc] sm:$0xf]
        %v1835 = vld [vmem:[%s43] sm:$0x1]
        %v1837 = vlaneseq
        %v1838 = vshrl.u32 %v1837, 7
        %v1839 = vsub.s32 0, %v1838
        %v1840 = vrot.slane %v1835, %v1839
        %v1844 = vunpack.c.l.b16 %v1173
        %v1845 = vunpack.c.l.b16 %v1174
        %v1846 = vpack.c.b16 %v1845, %v1844
        %v1851 = vunpack.c.l.b16 %v1831
        %v1852 = vunpack.c.l.b16 %v1832
        %v1853 = vunpack.c.l.b16 %v1833
        %v1854 = vunpack.c.l.b16 %v1834
        %v1855 = vpack.c.b16 %v1852, %v1851
        %v1856 = vpack.c.b16 %v1854, %v1853
        %v1860 = vsel %vm1224, %v1846, 0
        %1862 = vmatprep.subr.bf16.mxu0 0
        %1863 = vmatpush1.bf16.msra.mxu0 %v1855
        %1864 = vmatprep.subr.bf16.mxu0 0
        %1865 = vmatpush1.bf16.msra.mxu0 %v1856
        %1866 = vmatprep.subr.bf16.mxu0 0
        %1867 = vmatpush1.bf16.msra.mxu0 0
        %1868 = vmatprep.subr.bf16.mxu0 0
        %1869 = vmatpush1.bf16.msra.mxu0 0
        %1870 = vmatprep.subr.bf16.mxu0 0
        %1871 = vmatpush1.bf16.msra.mxu0 0
        %1872 = vmatprep.subr.bf16.mxu0 0
        %1873 = vmatpush1.bf16.msra.mxu0 0
        %1874 = vmatprep.subr.bf16.mxu0 0
        %1875 = vmatpush1.bf16.msra.mxu0 0
        %1876 = vmatprep.subr.bf16.mxu0 0
        %1877 = vmatpush1.bf16.msra.mxu0 0
        %1878 = vmatprep.subr.bf16.mxu0 0
        %1879 = vmatpush1.bf16.msra.mxu0 0
        %1880 = vmatprep.subr.bf16.mxu0 0
        %1881 = vmatpush1.bf16.msra.mxu0 0
        %1882 = vmatprep.subr.bf16.mxu0 0
        %1883 = vmatpush1.bf16.msra.mxu0 0
        %1884 = vmatprep.subr.bf16.mxu0 0
        %1885 = vmatpush1.bf16.msra.mxu0 0
        %1886 = vmatprep.subr.bf16.mxu0 0
        %1887 = vmatpush1.bf16.msra.mxu0 0
        %1888 = vmatprep.subr.bf16.mxu0 0
        %1889 = vmatpush1.bf16.msra.mxu0 0
        %1890 = vmatprep.subr.bf16.mxu0 0
        %1891 = vmatpush1.bf16.msra.mxu0 0
        %1892 = vmatprep.subr.bf16.mxu0 0
        %1893 = vmatpush1.bf16.msra.mxu0 0
        %1894 = vmatprep.mubr.bf16.mxu0 0
        %1895 = vmatmul.mubr.bf16.gmra.mrb[0].mxu0 %v1860
        %v1896 = vpop.f32.mrb[0].mxu0
        %v1897 = vadd.f32 %v1840, %v1896
        %v1898 = vpop.f32.mrb[0].mxu0
        %v1899 = vpop.f32.mrb[0].mxu0
        %v1900 = vadd.f32 %v1840, %v1899
        %v1901 = vpop.f32.mrb[0].mxu0
        %1902 = vdwg.mxu0
        %v1903 = vpack.c.bf16 %v1900, %v1897
        %v1904 = vld [vmem:[%s45] sm:$0xf]
        %v1905 = vld [vmem:[%s45 + $0x4] sm:$0xf]
        %v1906 = vld [vmem:[%s45 + $0x8] sm:$0xf]
        %v1907 = vld [vmem:[%s45 + $0xc] sm:$0xf]
        %v1908 = vld [vmem:[%s47] sm:$0x1]
        %v1910 = vlaneseq
        %v1911 = vshrl.u32 %v1910, 7
        %v1912 = vsub.s32 0, %v1911
        %v1913 = vrot.slane %v1908, %v1912
        %v1919 = vunpack.c.l.b16 %v1904
        %v1920 = vunpack.c.l.b16 %v1905
        %v1921 = vunpack.c.l.b16 %v1906
        %v1922 = vunpack.c.l.b16 %v1907
        %v1923 = vpack.c.b16 %v1920, %v1919
        %v1924 = vpack.c.b16 %v1922, %v1921
        %1927 = vmatprep.subr.bf16.mxu0 0
        %1928 = vmatpush1.bf16.msra.mxu0 %v1923
        %1929 = vmatprep.subr.bf16.mxu0 0
        %1930 = vmatpush1.bf16.msra.mxu0 %v1924
        %1931 = vmatprep.subr.bf16.mxu0 0
        %1932 = vmatpush1.bf16.msra.mxu0 0
        %1933 = vmatprep.subr.bf16.mxu0 0
        %1934 = vmatpush1.bf16.msra.mxu0 0
        %1935 = vmatprep.subr.bf16.mxu0 0
        %1936 = vmatpush1.bf16.msra.mxu0 0
        %1937 = vmatprep.subr.bf16.mxu0 0
        %1938 = vmatpush1.bf16.msra.mxu0 0
        %1939 = vmatprep.subr.bf16.mxu0 0
        %1940 = vmatpush1.bf16.msra.mxu0 0
        %1941 = vmatprep.subr.bf16.mxu0 0
        %1942 = vmatpush1.bf16.msra.mxu0 0
        %1943 = vmatprep.subr.bf16.mxu0 0
        %1944 = vmatpush1.bf16.msra.mxu0 0
        %1945 = vmatprep.subr.bf16.mxu0 0
        %1946 = vmatpush1.bf16.msra.mxu0 0
        %1947 = vmatprep.subr.bf16.mxu0 0
        %1948 = vmatpush1.bf16.msra.mxu0 0
        %1949 = vmatprep.subr.bf16.mxu0 0
        %1950 = vmatpush1.bf16.msra.mxu0 0
        %1951 = vmatprep.subr.bf16.mxu0 0
        %1952 = vmatpush1.bf16.msra.mxu0 0
        %1953 = vmatprep.subr.bf16.mxu0 0
        %1954 = vmatpush1.bf16.msra.mxu0 0
        %1955 = vmatprep.subr.bf16.mxu0 0
        %1956 = vmatpush1.bf16.msra.mxu0 0
        %1957 = vmatprep.subr.bf16.mxu0 0
        %1958 = vmatpush1.bf16.msra.mxu0 0
        %1959 = vmatprep.mubr.bf16.mxu0 0
        %1960 = vmatmul.mubr.bf16.gmra.mrb[0].mxu0 %v1860
        %v1961 = vpop.f32.mrb[0].mxu0
        %v1962 = vadd.f32 %v1913, %v1961
        %v1963 = vpop.f32.mrb[0].mxu0
        %v1964 = vpop.f32.mrb[0].mxu0
        %v1965 = vadd.f32 %v1913, %v1964
        %v1966 = vpop.f32.mrb[0].mxu0
        %1967 = vdwg.mxu0
        %v1968 = vpack.c.bf16 %v1965, %v1962
        %v1969 = vld [vmem:[%s49] sm:$0xf]
        %v1970 = vld [vmem:[%s49 + $0x4] sm:$0xf]
        %v1971 = vld [vmem:[%s49 + $0x8] sm:$0xf]
        %v1972 = vld [vmem:[%s49 + $0xc] sm:$0xf]
        %v1974 = vlaneseq
        %v1975 = vshrl.u32 %v1974, 7
        %v1976 = vsub.s32 0, %v1975
        %v1977 = vrot.slane %v1200, %v1976
        %v1980 = vsel %vm1404, %v1830, 0
        %v1983 = vsel %vm1404, %v1903, 0
        %1985 = vmatprep.subr.bf16.mxu0 0
        %1986 = vmatpush1.bf16.xpose.msra.mxu0 %v1983
        %1987 = vmatprep.subr.bf16.mxu0 0
        %1988 = vmatpush1.bf16.xpose.msra.mxu0 0
        %1989 = vmatprep.subr.bf16.mxu0 0
        %1990 = vmatpush1.bf16.xpose.msra.mxu0 0
        %1991 = vmatprep.subr.bf16.mxu0 0
        %1992 = vmatpush1.bf16.xpose.msra.mxu0 0
        %1993 = vmatprep.subr.bf16.mxu0 0
        %1994 = vmatpush1.bf16.xpose.msra.mxu0 0
        %1995 = vmatprep.subr.bf16.mxu0 0
        %1996 = vmatpush1.bf16.xpose.msra.mxu0 0
        %1997 = vmatprep.subr.bf16.mxu0 0
        %1998 = vmatpush1.bf16.xpose.msra.mxu0 0
        %1999 = vmatprep.subr.bf16.mxu0 0
        %2000 = vmatpush1.bf16.xpose.msra.mxu0 0
        %2001 = vmatprep.subr.bf16.mxu0 0
        %2002 = vmatpush1.bf16.xpose.msra.mxu0 0
        %2003 = vmatprep.subr.bf16.mxu0 0
        %2004 = vmatpush1.bf16.xpose.msra.mxu0 0
        %2005 = vmatprep.subr.bf16.mxu0 0
        %2006 = vmatpush1.bf16.xpose.msra.mxu0 0
        %2007 = vmatprep.subr.bf16.mxu0 0
        %2008 = vmatpush1.bf16.xpose.msra.mxu0 0
        %2009 = vmatprep.subr.bf16.mxu0 0
        %2010 = vmatpush1.bf16.xpose.msra.mxu0 0
        %2011 = vmatprep.subr.bf16.mxu0 0
        %2012 = vmatpush1.bf16.xpose.msra.mxu0 0
        %2013 = vmatprep.subr.bf16.mxu0 0
        %2014 = vmatpush1.bf16.xpose.msra.mxu0 0
        %2015 = vmatprep.subr.bf16.mxu0 0
        %2016 = vmatpush1.bf16.xpose.msra.mxu0 0
        %2017 = vmatprep.mubr.bf16.mxu0 0
        %2018 = vmatmul.mubr.bf16.gmra.mrb[0].mxu0 %v1980
        %v2019 = vpop.f32.mrb[0].mxu0
        %v2020 = vadd.f32 %v1977, %v2019
        %v2021 = vpop.f32.mrb[0].mxu0
        %v2022 = vpop.f32.mrb[0].mxu0
        %v2023 = vpop.f32.mrb[0].mxu0
        %2024 = vdwg.mxu0
        %vm2025 = vcmask 97280
        %v2026 = vsel %vm2025, %v2020, -inf
        %2027 = vmax.xlane.f32.xlu0 %v2026
        %v2028 = vpop.xlane.xlu0 %2027
        %v2029 = vsub.f32 %v2020, %v2028
        %v2030 = vmul.f32 %v2029, 1.442695
        %v2031 = vpow.pop %v2030
        %v2032 = vsel %vm2025, %v2031, 0.0
        %2033 = vadd.xlane.f32.xlu0 %v2032
        %v2034 = vpop.xlane.xlu0 %2033
        %v2035 = vrcp.pop %v2034
        %v2036 = vmul.f32 %v2031, %v2035
        %v2037 = vpack.c.bf16 %v2036, %v2036
        %v2039 = vsel %vm2025, %v2037, 0
        %vm2041 = vcmask 1045504
        %v2043 = vsel %vm2041, %v1968, 0
        %2045 = vmatprep.subr.bf16.mxu0 0
        %2046 = vmatpush1.bf16.msra.mxu0 %v2043
        %2047 = vmatprep.subr.bf16.mxu0 0
        %2048 = vmatpush1.bf16.msra.mxu0 0
        %2049 = vmatprep.subr.bf16.mxu0 0
        %2050 = vmatpush1.bf16.msra.mxu0 0
        %2051 = vmatprep.subr.bf16.mxu0 0
        %2052 = vmatpush1.bf16.msra.mxu0 0
        %2053 = vmatprep.subr.bf16.mxu0 0
        %2054 = vmatpush1.bf16.msra.mxu0 0
        %2055 = vmatprep.subr.bf16.mxu0 0
        %2056 = vmatpush1.bf16.msra.mxu0 0
        %2057 = vmatprep.subr.bf16.mxu0 0
        %2058 = vmatpush1.bf16.msra.mxu0 0
        %2059 = vmatprep.subr.bf16.mxu0 0
        %2060 = vmatpush1.bf16.msra.mxu0 0
        %2061 = vmatprep.subr.bf16.mxu0 0
        %2062 = vmatpush1.bf16.msra.mxu0 0
        %2063 = vmatprep.subr.bf16.mxu0 0
        %2064 = vmatpush1.bf16.msra.mxu0 0
        %2065 = vmatprep.subr.bf16.mxu0 0
        %2066 = vmatpush1.bf16.msra.mxu0 0
        %2067 = vmatprep.subr.bf16.mxu0 0
        %2068 = vmatpush1.bf16.msra.mxu0 0
        %2069 = vmatprep.subr.bf16.mxu0 0
        %2070 = vmatpush1.bf16.msra.mxu0 0
        %2071 = vmatprep.subr.bf16.mxu0 0
        %2072 = vmatpush1.bf16.msra.mxu0 0
        %2073 = vmatprep.subr.bf16.mxu0 0
        %2074 = vmatpush1.bf16.msra.mxu0 0
        %2075 = vmatprep.subr.bf16.mxu0 0
        %2076 = vmatpush1.bf16.msra.mxu0 0
        %2077 = vmatprep.mubr.bf16.mxu0 0
        %2078 = vmatmul.mubr.bf16.gmra.mrb[0].mxu0 %v2039
        %v2079 = vpop.f32.mrb[0].mxu0
        %v2080 = vadd.f32 0.0, %v2079
        %v2081 = vpop.f32.mrb[0].mxu0
        %v2082 = vpop.f32.mrb[0].mxu0
        %v2083 = vpop.f32.mrb[0].mxu0
        %2084 = vdwg.mxu0
        %v2085 = vpack.c.bf16 %v2080, %v2080
        %2087 = vrot.lane.b32.xlu0 %v1830, 112
        %v2088 = vpop.permute.xlu0 %2087
        %2090 = vrot.lane.b32.xlu0 %v1903, 112
        %v2091 = vpop.permute.xlu0 %2090
        %v2093 = vsel %vm1404, %v2088, 0
        %v2096 = vsel %vm1404, %v2091, 0
        %2098 = vmatprep.subr.bf16.mxu0 0
        %2099 = vmatpush1.bf16.xpose.msra.mxu0 %v2096
        %2100 = vmatprep.subr.bf16.mxu0 0
        %2101 = vmatpush1.bf16.xpose.msra.mxu0 0
        %2102 = vmatprep.subr.bf16.mxu0 0
        %2103 = vmatpush1.bf16.xpose.msra.mxu0 0
        %2104 = vmatprep.subr.bf16.mxu0 0
        %2105 = vmatpush1.bf16.xpose.msra.mxu0 0
        %2106 = vmatprep.subr.bf16.mxu0 0
        %2107 = vmatpush1.bf16.xpose.msra.mxu0 0
        %2108 = vmatprep.subr.bf16.mxu0 0
        %2109 = vmatpush1.bf16.xpose.msra.mxu0 0
        %2110 = vmatprep.subr.bf16.mxu0 0
        %2111 = vmatpush1.bf16.xpose.msra.mxu0 0
        %2112 = vmatprep.subr.bf16.mxu0 0
        %2113 = vmatpush1.bf16.xpose.msra.mxu0 0
        %2114 = vmatprep.subr.bf16.mxu0 0
        %2115 = vmatpush1.bf16.xpose.msra.mxu0 0
        %2116 = vmatprep.subr.bf16.mxu0 0
        %2117 = vmatpush1.bf16.xpose.msra.mxu0 0
        %2118 = vmatprep.subr.bf16.mxu0 0
        %2119 = vmatpush1.bf16.xpose.msra.mxu0 0
        %2120 = vmatprep.subr.bf16.mxu0 0
        %2121 = vmatpush1.bf16.xpose.msra.mxu0 0
        %2122 = vmatprep.subr.bf16.mxu0 0
        %2123 = vmatpush1.bf16.xpose.msra.mxu0 0
        %2124 = vmatprep.subr.bf16.mxu0 0
        %2125 = vmatpush1.bf16.xpose.msra.mxu0 0
        %2126 = vmatprep.subr.bf16.mxu0 0
        %2127 = vmatpush1.bf16.xpose.msra.mxu0 0
        %2128 = vmatprep.subr.bf16.mxu0 0
        %2129 = vmatpush1.bf16.xpose.msra.mxu0 0
        %2130 = vmatprep.mubr.bf16.mxu0 0
        %2131 = vmatmul.mubr.bf16.gmra.mrb[0].mxu0 %v2093
        %v2132 = vpop.f32.mrb[0].mxu0
        %v2133 = vadd.f32 %v1977, %v2132
        %v2134 = vpop.f32.mrb[0].mxu0
        %v2135 = vpop.f32.mrb[0].mxu0
        %v2136 = vpop.f32.mrb[0].mxu0
        %2137 = vdwg.mxu0
        %v2138 = vsel %vm2025, %v2133, -inf
        %2139 = vmax.xlane.f32.xlu0 %v2138
        %v2140 = vpop.xlane.xlu0 %2139
        %v2141 = vsub.f32 %v2133, %v2140
        %v2142 = vmul.f32 %v2141, 1.442695
        %v2143 = vpow.pop %v2142
        %v2144 = vsel %vm2025, %v2143, 0.0
        %2145 = vadd.xlane.f32.xlu0 %v2144
        %v2146 = vpop.xlane.xlu0 %2145
        %v2147 = vrcp.pop %v2146
        %v2148 = vmul.f32 %v2143, %v2147
        %v2149 = vpack.c.bf16 %v2148, %v2148
        %2151 = vrot.lane.b32.xlu0 %v1968, 112
        %v2152 = vpop.permute.xlu0 %2151
        %v2154 = vsel %vm2025, %v2149, 0
        %v2157 = vsel %vm2041, %v2152, 0
        %2159 = vmatprep.subr.bf16.mxu0 0
        %2160 = vmatpush1.bf16.msra.mxu0 %v2157
        %2161 = vmatprep.subr.bf16.mxu0 0
        %2162 = vmatpush1.bf16.msra.mxu0 0
        %2163 = vmatprep.subr.bf16.mxu0 0
        %2164 = vmatpush1.bf16.msra.mxu0 0
        %2165 = vmatprep.subr.bf16.mxu0 0
        %2166 = vmatpush1.bf16.msra.mxu0 0
        %2167 = vmatprep.subr.bf16.mxu0 0
        %2168 = vmatpush1.bf16.msra.mxu0 0
        %2169 = vmatprep.subr.bf16.mxu0 0
        %2170 = vmatpush1.bf16.msra.mxu0 0
        %2171 = vmatprep.subr.bf16.mxu0 0
        %2172 = vmatpush1.bf16.msra.mxu0 0
        %2173 = vmatprep.subr.bf16.mxu0 0
        %2174 = vmatpush1.bf16.msra.mxu0 0
        %2175 = vmatprep.subr.bf16.mxu0 0
        %2176 = vmatpush1.bf16.msra.mxu0 0
        %2177 = vmatprep.subr.bf16.mxu0 0
        %2178 = vmatpush1.bf16.msra.mxu0 0
        %2179 = vmatprep.subr.bf16.mxu0 0
        %2180 = vmatpush1.bf16.msra.mxu0 0
        %2181 = vmatprep.subr.bf16.mxu0 0
        %2182 = vmatpush1.bf16.msra.mxu0 0
        %2183 = vmatprep.subr.bf16.mxu0 0
        %2184 = vmatpush1.bf16.msra.mxu0 0
        %2185 = vmatprep.subr.bf16.mxu0 0
        %2186 = vmatpush1.bf16.msra.mxu0 0
        %2187 = vmatprep.subr.bf16.mxu0 0
        %2188 = vmatpush1.bf16.msra.mxu0 0
        %2189 = vmatprep.subr.bf16.mxu0 0
        %2190 = vmatpush1.bf16.msra.mxu0 0
        %2191 = vmatprep.mubr.bf16.mxu0 0
        %2192 = vmatmul.mubr.bf16.gmra.mrb[0].mxu0 %v2154
        %v2193 = vpop.f32.mrb[0].mxu0
        %v2194 = vadd.f32 0.0, %v2193
        %v2195 = vpop.f32.mrb[0].mxu0
        %v2196 = vpop.f32.mrb[0].mxu0
        %v2197 = vpop.f32.mrb[0].mxu0
        %2198 = vdwg.mxu0
        %v2199 = vpack.c.bf16 %v2194, %v2194
        %v2202 = vunpack.c.l.b16 %v1971
        %v2203 = vunpack.c.l.b16 %v1972
        %v2204 = vpack.c.b16 %v2203, %v2202
        %v2207 = vsel %vm1404, %v2199, 0
        %2209 = vmatprep.subr.bf16.mxu0 0
        %2210 = vmatpush1.bf16.msra.mxu0 %v2204
        %2211 = vmatprep.subr.bf16.mxu0 0
        %2212 = vmatpush1.bf16.msra.mxu0 0
        %2213 = vmatprep.subr.bf16.mxu0 0
        %2214 = vmatpush1.bf16.msra.mxu0 0
        %2215 = vmatprep.subr.bf16.mxu0 0
        %2216 = vmatpush1.bf16.msra.mxu0 0
        %2217 = vmatprep.subr.bf16.mxu0 0
        %2218 = vmatpush1.bf16.msra.mxu0 0
        %2219 = vmatprep.subr.bf16.mxu0 0
        %2220 = vmatpush1.bf16.msra.mxu0 0
        %2221 = vmatprep.subr.bf16.mxu0 0
        %2222 = vmatpush1.bf16.msra.mxu0 0
        %2223 = vmatprep.subr.bf16.mxu0 0
        %2224 = vmatpush1.bf16.msra.mxu0 0
        %2225 = vmatprep.subr.bf16.mxu0 0
        %2226 = vmatpush1.bf16.msra.mxu0 0
        %2227 = vmatprep.subr.bf16.mxu0 0
        %2228 = vmatpush1.bf16.msra.mxu0 0
        %2229 = vmatprep.subr.bf16.mxu0 0
        %2230 = vmatpush1.bf16.msra.mxu0 0
        %2231 = vmatprep.subr.bf16.mxu0 0
        %2232 = vmatpush1.bf16.msra.mxu0 0
        %2233 = vmatprep.subr.bf16.mxu0 0
        %2234 = vmatpush1.bf16.msra.mxu0 0
        %2235 = vmatprep.subr.bf16.mxu0 0
        %2236 = vmatpush1.bf16.msra.mxu0 0
        %2237 = vmatprep.subr.bf16.mxu0 0
        %2238 = vmatpush1.bf16.msra.mxu0 0
        %2239 = vmatprep.subr.bf16.mxu0 0
        %2240 = vmatpush1.bf16.msra.mxu0 0
        %2241 = vmatprep.mubr.bf16.mxu0 0
        %2242 = vmatmul.mubr.bf16.gmra.mrb[0].mxu0 %v2207
        %v2243 = vpop.f32.mrb[0].mxu0
        %v2244 = vadd.f32 0.0, %v2243
        %v2245 = vpop.f32.mrb[0].mxu0
        %v2246 = vpop.f32.mrb[0].mxu0
        %v2247 = vpop.f32.mrb[0].mxu0
        %2248 = vdwg.mxu0
        %v2251 = vunpack.c.l.b16 %v1969
        %v2252 = vunpack.c.l.b16 %v1970
        %v2253 = vpack.c.b16 %v2252, %v2251
        %v2256 = vsel %vm1404, %v2085, 0
        %2258 = vmatprep.subr.bf16.mxu0 0
        %2259 = vmatpush1.bf16.msra.mxu0 %v2253
        %2260 = vmatprep.subr.bf16.mxu0 0
        %2261 = vmatpush1.bf16.msra.mxu0 0
        %2262 = vmatprep.subr.bf16.mxu0 0
        %2263 = vmatpush1.bf16.msra.mxu0 0
        %2264 = vmatprep.subr.bf16.mxu0 0
        %2265 = vmatpush1.bf16.msra.mxu0 0
        %2266 = vmatprep.subr.bf16.mxu0 0
        %2267 = vmatpush1.bf16.msra.mxu0 0
        %2268 = vmatprep.subr.bf16.mxu0 0
        %2269 = vmatpush1.bf16.msra.mxu0 0
        %2270 = vmatprep.subr.bf16.mxu0 0
        %2271 = vmatpush1.bf16.msra.mxu0 0
        %2272 = vmatprep.subr.bf16.mxu0 0
        %2273 = vmatpush1.bf16.msra.mxu0 0
        %2274 = vmatprep.subr.bf16.mxu0 0
        %2275 = vmatpush1.bf16.msra.mxu0 0
        %2276 = vmatprep.subr.bf16.mxu0 0
        %2277 = vmatpush1.bf16.msra.mxu0 0
        %2278 = vmatprep.subr.bf16.mxu0 0
        %2279 = vmatpush1.bf16.msra.mxu0 0
        %2280 = vmatprep.subr.bf16.mxu0 0
        %2281 = vmatpush1.bf16.msra.mxu0 0
        %2282 = vmatprep.subr.bf16.mxu0 0
        %2283 = vmatpush1.bf16.msra.mxu0 0
        %2284 = vmatprep.subr.bf16.mxu0 0
        %2285 = vmatpush1.bf16.msra.mxu0 0
        %2286 = vmatprep.subr.bf16.mxu0 0
        %2287 = vmatpush1.bf16.msra.mxu0 0
        %2288 = vmatprep.subr.bf16.mxu0 0
        %2289 = vmatpush1.bf16.msra.mxu0 0
        %2290 = vmatprep.mubr.bf16.mxu0 0
        %2291 = vmatmul.mubr.bf16.gmra.mrb[0].mxu0 %v2256
        %v2292 = vpop.f32.mrb[0].mxu0
        %v2293 = vadd.f32 %v2244, %v2292
        %v2294 = vpop.f32.mrb[0].mxu0
        %v2295 = vpop.f32.mrb[0].mxu0
        %v2296 = vpop.f32.mrb[0].mxu0
        %2297 = vdwg.mxu0
        %v2298 = vld [vmem:[%s51] sm:$0x1]
        %v2300 = vlaneseq
        %v2301 = vshrl.u32 %v2300, 7
        %v2302 = vsub.s32 0, %v2301
        %v2303 = vrot.slane %v2298, %v2302
        %v2305 = vadd.f32 %v2293, %v2303
        %v2306 = vadd.f32 %v2305, %v1762
        %v2307 = vsel %vm1224, %v2306, 0.0
        %2308 = vadd.xlane.f32.xlu0 %v2307
        %v2309 = vpop.xlane.xlu0 %2308
        %v2310 = vmul.f32 %v2309, %v1736
        %v2311 = vsub.f32 %v2306, %v2310
        %v2312 = vmul.f32 %v2311, %v2311
        %v2313 = vsel %vm1224, %v2312, 0.0
        %2314 = vadd.xlane.f32.xlu0 %v2313
        %v2315 = vpop.xlane.xlu0 %2314
        %v2316 = vmul.f32 %v2315, %v1736
        %v2317 = vadd.f32 %v2316, 1e-05
        %v2318 = vrsqrt.pop %v2317
        %v2319 = vmul.f32 %v2311, %v2318
        %v2320 = vld [vmem:[#allocation11] sm:$0x1]
        %v2322 = vlaneseq
        %v2323 = vshrl.u32 %v2322, 7
        %v2324 = vsub.s32 0, %v2323
        %v2325 = vrot.slane %v2320, %v2324
        %v2327 = vmul.f32 %v2319, %v2325
        %v2328 = vld [vmem:[#allocation13] sm:$0x1]
        %v2330 = vlaneseq
        %v2331 = vshrl.u32 %v2330, 7
        %v2332 = vsub.s32 0, %v2331
        %v2333 = vrot.slane %v2328, %v2332
        %v2335 = vadd.f32 %v2327, %v2333
        %v2336 = vpack.c.bf16 %v2335, %v2335
        %v2337 = vld [vmem:[%s53] sm:$0xf]
        %v2338 = vld [vmem:[%s53 + $0x4] sm:$0xf]
        %v2339 = vld [vmem:[%s53 + $0x8] sm:$0xf]
        %v2340 = vld [vmem:[%s53 + $0xc] sm:$0xf]
        %v2341 = vld [vmem:[%s55] sm:$0x1]
        %v2343 = vlaneseq
        %v2344 = vshrl.u32 %v2343, 7
        %v2345 = vsub.s32 0, %v2344
        %v2346 = vrot.slane %v2341, %v2345
        %v2352 = vunpack.c.l.b16 %v2337
        %v2353 = vunpack.c.l.b16 %v2338
        %v2354 = vunpack.c.l.b16 %v2339
        %v2355 = vunpack.c.l.b16 %v2340
        %v2356 = vpack.c.b16 %v2353, %v2352
        %v2357 = vpack.c.b16 %v2355, %v2354
        %v2361 = vsel %vm1224, %v2336, 0
        %2363 = vmatprep.subr.bf16.mxu0 0
        %2364 = vmatpush1.bf16.msra.mxu0 %v2356
        %2365 = vmatprep.subr.bf16.mxu0 0
        %2366 = vmatpush1.bf16.msra.mxu0 %v2357
        %2367 = vmatprep.subr.bf16.mxu0 0
        %2368 = vmatpush1.bf16.msra.mxu0 0
        %2369 = vmatprep.subr.bf16.mxu0 0
        %2370 = vmatpush1.bf16.msra.mxu0 0
        %2371 = vmatprep.subr.bf16.mxu0 0
        %2372 = vmatpush1.bf16.msra.mxu0 0
        %2373 = vmatprep.subr.bf16.mxu0 0
        %2374 = vmatpush1.bf16.msra.mxu0 0
        %2375 = vmatprep.subr.bf16.mxu0 0
        %2376 = vmatpush1.bf16.msra.mxu0 0
        %2377 = vmatprep.subr.bf16.mxu0 0
        %2378 = vmatpush1.bf16.msra.mxu0 0
        %2379 = vmatprep.subr.bf16.mxu0 0
        %2380 = vmatpush1.bf16.msra.mxu0 0
        %2381 = vmatprep.subr.bf16.mxu0 0
        %2382 = vmatpush1.bf16.msra.mxu0 0
        %2383 = vmatprep.subr.bf16.mxu0 0
        %2384 = vmatpush1.bf16.msra.mxu0 0
        %2385 = vmatprep.subr.bf16.mxu0 0
        %2386 = vmatpush1.bf16.msra.mxu0 0
        %2387 = vmatprep.subr.bf16.mxu0 0
        %2388 = vmatpush1.bf16.msra.mxu0 0
        %2389 = vmatprep.subr.bf16.mxu0 0
        %2390 = vmatpush1.bf16.msra.mxu0 0
        %2391 = vmatprep.subr.bf16.mxu0 0
        %2392 = vmatpush1.bf16.msra.mxu0 0
        %2393 = vmatprep.subr.bf16.mxu0 0
        %2394 = vmatpush1.bf16.msra.mxu0 0
        %2395 = vmatprep.mubr.bf16.mxu0 0
        %2396 = vmatmul.mubr.bf16.gmra.mrb[0].mxu0 %v2361
        %v2397 = vpop.f32.mrb[0].mxu0
        %v2398 = vadd.f32 %v2346, %v2397
        %v2399 = vpop.f32.mrb[0].mxu0
        %v2400 = vpop.f32.mrb[0].mxu0
        %v2401 = vpop.f32.mrb[0].mxu0
        %2402 = vdwg.mxu0
        %v2403 = vmax.f32 %v2398, 0.0
        %v2404 = vpack.c.bf16 %v2403, %v2403
        %v2405 = vld [vmem:[%s57] sm:$0xf]
        %v2406 = vld [vmem:[%s57 + $0x4] sm:$0xf]
        %v2407 = vld [vmem:[%s57 + $0x8] sm:$0xf]
        %v2408 = vld [vmem:[%s57 + $0xc] sm:$0xf]
        %v2409 = vld [vmem:[%s57 + $0x10] sm:$0xf]
        %v2410 = vld [vmem:[%s57 + $0x14] sm:$0xf]
        %v2411 = vld [vmem:[%s57 + $0x18] sm:$0xf]
        %v2412 = vld [vmem:[%s57 + $0x1c] sm:$0xf]
        %v2413 = vld [vmem:[%s59] sm:$0x1]
        %v2415 = vlaneseq
        %v2416 = vshrl.u32 %v2415, 7
        %v2417 = vsub.s32 0, %v2416
        %v2418 = vrot.slane %v2413, %v2417
        %v2428 = vunpack.c.l.b16 %v2405
        %v2429 = vunpack.c.l.b16 %v2406
        %v2430 = vunpack.c.l.b16 %v2407
        %v2431 = vunpack.c.l.b16 %v2408
        %v2432 = vunpack.c.l.b16 %v2409
        %v2433 = vunpack.c.l.b16 %v2410
        %v2434 = vunpack.c.l.b16 %v2411
        %v2435 = vunpack.c.l.b16 %v2412
        %v2436 = vpack.c.b16 %v2429, %v2428
        %v2437 = vpack.c.b16 %v2431, %v2430
        %v2438 = vpack.c.b16 %v2433, %v2432
        %v2439 = vpack.c.b16 %v2435, %v2434
        %vm2444 = vcmask 523264
        %v2446 = vsel %vm2444, %v2404, 0
        %2448 = vmatprep.subr.bf16.mxu0 0
        %2449 = vmatpush1.bf16.msra.mxu0 %v2436
        %2450 = vmatprep.subr.bf16.mxu0 0
        %2451 = vmatpush1.bf16.msra.mxu0 %v2437
        %2452 = vmatprep.subr.bf16.mxu0 0
        %2453 = vmatpush1.bf16.msra.mxu0 %v2438
        %2454 = vmatprep.subr.bf16.mxu0 0
        %2455 = vmatpush1.bf16.msra.mxu0 %v2439
        %2456 = vmatprep.subr.bf16.mxu0 0
        %2457 = vmatpush1.bf16.msra.mxu0 0
        %2458 = vmatprep.subr.bf16.mxu0 0
        %2459 = vmatpush1.bf16.msra.mxu0 0
        %2460 = vmatprep.subr.bf16.mxu0 0
        %2461 = vmatpush1.bf16.msra.mxu0 0
        %2462 = vmatprep.subr.bf16.mxu0 0
        %2463 = vmatpush1.bf16.msra.mxu0 0
        %2464 = vmatprep.subr.bf16.mxu0 0
        %2465 = vmatpush1.bf16.msra.mxu0 0
        %2466 = vmatprep.subr.bf16.mxu0 0
        %2467 = vmatpush1.bf16.msra.mxu0 0
        %2468 = vmatprep.subr.bf16.mxu0 0
        %2469 = vmatpush1.bf16.msra.mxu0 0
        %2470 = vmatprep.subr.bf16.mxu0 0
        %2471 = vmatpush1.bf16.msra.mxu0 0
        %2472 = vmatprep.subr.bf16.mxu0 0
        %2473 = vmatpush1.bf16.msra.mxu0 0
        %2474 = vmatprep.subr.bf16.mxu0 0
        %2475 = vmatpush1.bf16.msra.mxu0 0
        %2476 = vmatprep.subr.bf16.mxu0 0
        %2477 = vmatpush1.bf16.msra.mxu0 0
        %2478 = vmatprep.subr.bf16.mxu0 0
        %2479 = vmatpush1.bf16.msra.mxu0 0
        %2480 = vmatprep.mubr.bf16.mxu0 0
        %2481 = vmatmul.mubr.bf16.gmra.mrb[0].mxu0 %v2446
        %v2482 = vpop.f32.mrb[0].mxu0
        %v2483 = vadd.f32 %v2418, %v2482
        %v2484 = vpop.f32.mrb[0].mxu0
        %v2485 = vpop.f32.mrb[0].mxu0
        %v2486 = vpop.f32.mrb[0].mxu0
        %2487 = vdwg.mxu0
        %v2488 = vadd.f32 %v2483, %v2335
        %v2489 = vsel %vm1224, %v2488, 0.0
        %2490 = vadd.xlane.f32.xlu0 %v2489
        %v2491 = vpop.xlane.xlu0 %2490
        %v2492 = vmul.f32 %v2491, %v1736
        %v2493 = vsub.f32 %v2488, %v2492
        %v2494 = vmul.f32 %v2493, %v2493
        %v2495 = vsel %vm1224, %v2494, 0.0
        %2496 = vadd.xlane.f32.xlu0 %v2495
        %v2497 = vpop.xlane.xlu0 %2496
        %v2498 = vmul.f32 %v2497, %v1736
        %v2499 = vadd.f32 %v2498, 1e-05
        %v2500 = vrsqrt.pop %v2499
        %v2501 = vmul.f32 %v2493, %v2500
        %v2502 = vld [vmem:[#allocation14] sm:$0x1]
        %v2504 = vlaneseq
        %v2505 = vshrl.u32 %v2504, 7
        %v2506 = vsub.s32 0, %v2505
        %v2507 = vrot.slane %v2502, %v2506
        %v2509 = vmul.f32 %v2501, %v2507
        %v2510 = vld [vmem:[#allocation16] sm:$0x1]
        %v2512 = vlaneseq
        %v2513 = vshrl.u32 %v2512, 7
        %v2514 = vsub.s32 0, %v2513
        %v2515 = vrot.slane %v2510, %v2514
        %v2517 = vadd.f32 %v2509, %v2515
        %v2518 = vpack.c.bf16 %v2517, %v2517
        %vm2519 = vcmask 257024
        %2520 = vst.msk [vmem:[%s1164] sm:$0xf] %vm2519, %v2518
        %s2521 = sand.u32 %s758, 1
        %s2522 = scalar_lea.sflag [#allocation4], %s2521
        %s2523 = sand.u32 %s758, 1
        %s2524 = smul.addr %s2523, 4
        %s2525 = scalar_lea.vmem [#allocation23], %s2524
        // Predicated region
        $region193: #{tpu_custom_call.1} parent=139 // pred_check
          %p2526 = pneg %p768
        $region194: #{tpu_custom_call.1} parent=139 // pred_check_branch
          %2528 = sbr.rel (%p2526) target = $region196
        $region195: #{tpu_custom_call.1} parent=139 // pred_region
          %s2530 = ssub.s32 64, 64
          %2531 = vsyncadd %s2522, %s2530
          %s2532 = sadd.s32 %s91, %s90
          %s2533 = smul.addr %s2532, 64
          %s2534 = scalar_lea.hbm %s61, %s2533
          %s2536 = sshll.u32 %s2525, 4
          %s2537 = int_to_ptr.vmem [resolvable:$true] %s2536
          %2539 = dma.vmem_to_hbm [thread:$0]  %s2537, 64, %s2534, %s2522
        $region196: #{tpu_custom_call.1} parent=139 // pred_fallthru
          _
      $region140: #{tpu_custom_call.1} parent=5 // pred_fallthru
        _
      %p2540 = scmp.le.s32.totalorder 2, %s81
      // Predicated region
      $region197: #{tpu_custom_call.1} parent=5 // pred_check
        %p2541 = pneg %p2540
      $region198: #{tpu_custom_call.1} parent=5 // pred_check_branch
        %2543 = sbr.rel (%p2541) target = $region200
      $region199: #{tpu_custom_call.1} parent=5 // pred_region
        %s2544 = ssub.s32 %s81, 2
        // Predicated region
        $region201: #{tpu_custom_call.1} parent=199 // pred_check
          %p2545 = pneg %p774
        $region202: #{tpu_custom_call.1} parent=199 // pred_check_branch
          %2547 = sbr.rel (%p2545) target = $region204
        $region203: #{tpu_custom_call.1} parent=199 // pred_region
          %s2548 = sand.u32 %s759, 1
          %s2549 = scalar_lea.sflag [#allocation4], %s2548
          %s2550 = sand.u32 %s759, 1
          %s2551 = smul.addr %s2550, 4
          %s2552 = scalar_lea.vmem [#allocation23], %s2551
          %2553 = dma.done %s2549, 64
        $region204: #{tpu_custom_call.1} parent=199 // pred_fallthru
          _
      $region200: #{tpu_custom_call.1} parent=5 // pred_fallthru
        _
    $region6: #{tpu_custom_call.1} parent=1 // loop_footer
      %s85 = sadd.s32 1, %s81
    $region7: #{tpu_custom_call.1} parent=1 // loop_footer_branch
      %80 = sbr.rel target = $region3
    $region8: #{tpu_custom_call.1} parent=1 // loop_exit
      _
    %2554 = vsyncpa [#allocation3], 1
    %s2555 = scalar_lea.sflag [#allocation3], 1
    %2556 = vsyncpa %s2555, 1
    %2557 = vsyncpa [#allocation6], 1
    %s2558 = scalar_lea.sflag [#allocation6], 1
    %2559 = vsyncpa %s2558, 1
    %2560 = vsyncpa [#allocation9], 1
    %2561 = vsyncpa [#allocation12], 1
    %2562 = vsyncpa [#allocation15], 1
    %2563 = vsyncpa [#allocation18], 1
    %2564 = vsyncpa [#allocation21], 1
    %2565 = vsyncpa [#allocation4], 1
    %s2566 = scalar_lea.sflag [#allocation4], 1
    %2567 = vsyncpa %s2566, 1

</llo_original>
